<compile_context>
chip_gen: v7x
topology: tpu7x:2x2x1
jax: 0.10.0
libtpu: 0.0.40
codegen_flags: <defaults>
</compile_context>

<pallas_src>
import functools

import jax
import jax.numpy as jnp
from jax.experimental import pallas as pl
from jax.experimental.pallas import tpu as pltpu


# ----------------------------------------------------------------------------
# Fused kernel: input projection + bidirectional LSTM + linear + argmax
# ----------------------------------------------------------------------------
def _fused_lstm_ner_kernel(x_ref, wih_ref, whh_ref, bias_ref, wc_ref, bc_ref,
                           logits_ref, idx_ref, xg_sc, hsf_sc, hsb_sc,
                           *, hidden, seq_len, batch_pad):
    H, L, BP = hidden, seq_len, batch_pad
    G = 4 * H                                             # 128 lanes per direction

    # -------- prologue: x @ W_ih for every timestep & both directions -------
    # One MXU GEMM [L*BP, E] @ [E, 8H]; bias (b_ih + b_hh, both dirs) folded in
    # once so the recurrent loop never re-adds it.
    xg = jnp.dot(x_ref[...], wih_ref[...], preferred_element_type=jnp.float32)
    xg_sc[...] = xg + bias_ref[...]                       # (L*BP, 8H)

    # Loop-invariant recurrent weights (per direction), hoisted out of the loop.
    whh_f = whh_ref[0:H, :]                               # (H, 4H)
    whh_b = whh_ref[H:2 * H, :]                           # (H, 4H)

    # -------- recurrence: fwd(t) and bwd(L-1-t) fused into one serial step ---
    def step(t, carry):
        h_f, c_f, h_b, c_b = carry
        rf = pl.multiple_of(t * BP, BP)                   # fwd time t
        rb = pl.multiple_of((L - 1 - t) * BP, BP)         # bwd time L-1-t

        # Full-sublane, 128-lane-aligned loads of the precomputed input gates.
        g_f = (xg_sc[pl.ds(rf, BP), 0:G]
               + jnp.dot(h_f, whh_f, preferred_element_type=jnp.float32))
        g_b = (xg_sc[pl.ds(rb, BP), G:2 * G]
               + jnp.dot(h_b, whh_b, preferred_element_type=jnp.float32))

        # Two full-vreg EUP pushes per direction; gates are lane-selected.
        sf = jax.nn.sigmoid(g_f)
        tf = jnp.tanh(g_f)
        sb = jax.nn.sigmoid(g_b)
        tb = jnp.tanh(g_b)

        # gate layout per direction: [i | f | g | o], each H lanes
        c_f = sf[:, H:2 * H] * c_f + sf[:, 0:H] * tf[:, 2 * H:3 * H]
        c_b = sb[:, H:2 * H] * c_b + sb[:, 0:H] * tb[:, 2 * H:3 * H]
        h_f = sf[:, 3 * H:4 * H] * jnp.tanh(c_f)
        h_b = sb[:, 3 * H:4 * H] * jnp.tanh(c_b)

        # Per-direction slabs in (l, b) row order; stores are off the carried
        # dependency path, so they hide under the next step's MXU/EUP latency.
        hsf_sc[pl.ds(rf, BP), :] = h_f
        hsb_sc[pl.ds(rb, BP), :] = h_b
        return h_f, c_f, h_b, c_b

    zero = jnp.zeros((BP, H), jnp.float32)
    jax.lax.fori_loop(0, L, step, (zero, zero, zero, zero), unroll=True)

    # -------- epilogue: classifier (linear + argmax), fused in VMEM ----------
    logits = (jnp.dot(hsf_sc[...], wc_ref[0:H, :],
                      preferred_element_type=jnp.float32)
              + jnp.dot(hsb_sc[...], wc_ref[H:2 * H, :],
                        preferred_element_type=jnp.float32)
              + bc_ref[...])                              # (L*BP, C)
    logits_ref[...] = logits

    C = logits.shape[-1]
    ids = jax.lax.broadcasted_iota(jnp.int32, logits.shape, 1)
    maxv = jnp.max(logits, axis=-1, keepdims=True)
    cand = jnp.where(logits == maxv, ids, jnp.int32(C))   # first max on ties
    idx_ref[...] = jnp.min(cand, axis=-1, keepdims=True)


def fused_forward(x2d, wihc, whh2, biasc, wc, bc, *, batch_pad, seq_len, hidden):
    """x2d: [L*BP, E] (time-major rows, batch zero-padded to BP);
    wihc: [E, 8H]; whh2: [2H, 4H]; biasc: [1, 8H]; wc: [2H, C]; bc: [1, C].
    Returns (logits [L*BP, C], idx [L*BP, 1]) in (l, b_padded) row order."""
    BP, L, H = batch_pad, seq_len, hidden
    assert BP % 8 == 0, "batch must be padded to a multiple of 8 sublanes"
    N = L * BP
    E = x2d.shape[1]
    C = wc.shape[1]

    kernel = functools.partial(_fused_lstm_ner_kernel,
                               hidden=H, seq_len=L, batch_pad=BP)
    return pl.pallas_call(
        kernel,
        out_shape=(
            jax.ShapeDtypeStruct((N, C), jnp.float32),
            jax.ShapeDtypeStruct((N, 1), jnp.int32),
        ),
        grid_spec=pltpu.PrefetchScalarGridSpec(
            num_scalar_prefetch=0,
            grid=(1,),                       # single invocation: everything fused
            in_specs=[
                pl.BlockSpec((N, E), lambda i: (0, 0)),
                pl.BlockSpec((E, 8 * H), lambda i: (0, 0)),
                pl.BlockSpec((2 * H, 4 * H), lambda i: (0, 0)),
                pl.BlockSpec((1, 8 * H), lambda i: (0, 0)),
                pl.BlockSpec((2 * H, C), lambda i: (0, 0)),
                pl.BlockSpec((1, C), lambda i: (0, 0)),
            ],
            out_specs=(
                pl.BlockSpec((N, C), lambda i: (0, 0)),
                pl.BlockSpec((N, 1), lambda i: (0, 0)),
            ),
            scratch_shapes=[
                pltpu.VMEM((N, 8 * H), jnp.float32),   # precomputed x@W_ih + b
                pltpu.VMEM((N, H), jnp.float32),       # hidden slab, forward dir
                pltpu.VMEM((N, H), jnp.float32),       # hidden slab, backward dir
            ],
        ),
        compiler_params=pltpu.CompilerParams(
            dimension_semantics=("arbitrary",),
        ),
    )(x2d, wihc, whh2, biasc, wc, bc)


# ----------------------------------------------------------------------------
# Model: parameters + forward
# ----------------------------------------------------------------------------
def init_params(key, token_num, class_num, embedding_num, hidden_num):
    ks = jax.random.split(key, 8)
    H, E, C = hidden_num, embedding_num, class_num
    k_lstm = 1.0 / jnp.sqrt(H)
    k_cls = 1.0 / jnp.sqrt(2 * H)
    u = lambda k, shp, s: jax.random.uniform(k, shp, jnp.float32, -s, s)
    return {
        "embedding": jax.random.normal(ks[0], (token_num, E), jnp.float32),
        # stacked [forward, backward], PyTorch layouts
        "w_ih": u(ks[1], (2, 4 * H, E), k_lstm),
        "w_hh": u(ks[2], (2, 4 * H, H), k_lstm),
        "b_ih": u(ks[3], (2, 4 * H), k_lstm),
        "b_hh": u(ks[4], (2, 4 * H), k_lstm),
        "w_cls": u(ks[5], (C, 2 * H), k_cls),
        "b_cls": u(ks[6], (C,), k_cls),
    }


def forward_logits(params, text):
    """text: int32 [B, L]. Returns logits [B*L, C] and flat argmax indices [B*L]."""
    B, L = text.shape
    H = params["w_hh"].shape[2]
    BP = max(8, ((B + 7) // 8) * 8)        # pad batch to full 8-sublane tiles

    # Embedding gather stays in XLA (tiny table lookup).
    emb = jnp.take(params["embedding"], text, axis=0)           # [B, L, E]
    x_t = jnp.transpose(emb, (1, 0, 2)).astype(jnp.float32)     # [L, B, E]
    x_p = jnp.pad(x_t, ((0, 0), (0, BP - B), (0, 0)))           # [L, BP, E]
    x2d = x_p.reshape(L * BP, -1)

    # Kernel-friendly weight layouts (tiny, done per call).
    wih_t = jnp.transpose(params["w_ih"], (0, 2, 1))            # [2, E, 4H]
    wihc = jnp.concatenate([wih_t[0], wih_t[1]], axis=-1)       # [E, 8H]
    whh_t = jnp.transpose(params["w_hh"], (0, 2, 1))            # [2, H, 4H]
    whh2 = jnp.concatenate([whh_t[0], whh_t[1]], axis=0)        # [2H, 4H]
    biasc = (params["b_ih"] + params["b_hh"]).reshape(1, 8 * H) # [1, 8H]
    wc = params["w_cls"].T                                      # [2H, C]
    bc = params["b_cls"].reshape(1, -1)                         # [1, C]

    logits_lb, idx_lb = fused_forward(
        x2d, wihc, whh2, biasc, wc, bc, batch_pad=BP, seq_len=L, hidden=H)

    # Drop pad rows; reorder tiny outputs from (l, b) rows to PyTorch's (b, l).
    C = logits_lb.shape[-1]
    logits = jnp.transpose(
        logits_lb.reshape(L, BP, C)[:, :B, :], (1, 0, 2)).reshape(B * L, C)
    idx = jnp.transpose(idx_lb.reshape(L, BP)[:, :B], (1, 0)).reshape(-1)
    return logits, idx


@jax.jit
def predict(params, text):
    # label is None -> return argmax(pred, -1).reshape(-1)
    _, idx = forward_logits(params, text)
    return idx


@jax.jit
def loss_fn(params, text, label):
    # CrossEntropyLoss(pred.reshape(-1, C), label.reshape(-1)), mean reduction
    logits, _ = forward_logits(params, text)
    lbl = label.reshape(-1)
    lse = jax.scipy.special.logsumexp(logits, axis=-1)
    picked = jnp.take_along_axis(logits, lbl[:, None], axis=-1)[:, 0]
    return jnp.mean(lse - picked)


# ----------------------------------------------------------------------------
# Pure-JAX reference (lax.scan) for a correctness sanity check
# ----------------------------------------------------------------------------
def _ref_forward(params, text):
    B, L = text.shape
    H = params["w_hh"].shape[2]
    emb = jnp.take(params["embedding"], text, axis=0)  # [B, L, E]

    def run_dir(d, xs):  # xs: [L, B, E] in processing order
        w_ih, w_hh = params["w_ih"][d], params["w_hh"][d]
        b = params["b_ih"][d] + params["b_hh"][d]

        def step(carry, x_t):
            h, c = carry
            g = x_t @ w_ih.T + h @ w_hh.T + b
            i, f, gg, o = jnp.split(g, 4, axis=-1)
            c = jax.nn.sigmoid(f) * c + jax.nn.sigmoid(i) * jnp.tanh(gg)
            h = jax.nn.sigmoid(o) * jnp.tanh(c)
            return (h, c), h

        init = (jnp.zeros((B, H), jnp.float32), jnp.zeros((B, H), jnp.float32))
        _, hs = jax.lax.scan(step, init, xs)
        return hs  # [L, B, H]

    x = jnp.transpose(emb, (1, 0, 2))
    h_f = run_dir(0, x)
    h_b = run_dir(1, x[::-1])[::-1]
    out = jnp.transpose(jnp.concatenate([h_f, h_b], axis=-1), (1, 0, 2))  # [B, L, 2H]
    logits = out.reshape(B * L, -1) @ params["w_cls"].T + params["b_cls"]
    return logits, jnp.argmax(logits, axis=-1).astype(jnp.int32)


if __name__ == "__main__":
    token_num, class_num, embedding_num, hidden_num = 50, 5, 16, 32
    B, L = 2, 8

    key = jax.random.PRNGKey(0)
    k_param, k_text, k_label = jax.random.split(key, 3)
    params = init_params(k_param, token_num, class_num, embedding_num, hidden_num)
    text = jax.random.randint(k_text, (B, L), 0, token_num, dtype=jnp.int32)
    label = jax.random.randint(k_label, (B, L), 0, class_num, dtype=jnp.int32)

    pred = jax.block_until_ready(predict(params, text))            # [B*L] int32
    loss = jax.block_until_ready(loss_fn(params, text, label))     # scalar

    # sanity-check kernel against pure-JAX reference
    ref_logits, ref_pred = _ref_forward(params, text)
    ker_logits, _ = forward_logits(params, text)
    assert jnp.allclose(ker_logits, ref_logits, atol=1e-4, rtol=1e-4)
    assert jnp.array_equal(pred, ref_pred)
    assert pred.shape == (B * L,)
    assert jnp.isfinite(loss)

    print("KERNEL_OK")
</pallas_src>

<mosaic_0001>
module attributes {stable_mosaic.version = 11 : i64} {
  func.func @_fused_lstm_ner_kernel(%arg0: i32, %arg1: memref<64x16xf32, #tpu.memory_space<vmem>>, %arg2: memref<16x256xf32, #tpu.memory_space<vmem>>, %arg3: memref<64x128xf32, #tpu.memory_space<vmem>>, %arg4: memref<1x256xf32, #tpu.memory_space<vmem>>, %arg5: memref<64x5xf32, #tpu.memory_space<vmem>>, %arg6: memref<1x5xf32, #tpu.memory_space<vmem>>, %arg7: memref<64x5xf32, #tpu.memory_space<vmem>>, %arg8: memref<64x1xi32, #tpu.memory_space<vmem>>, %arg9: memref<64x256xf32, #tpu.memory_space<vmem>>, %arg10: memref<64x32xf32, #tpu.memory_space<vmem>>, %arg11: memref<64x32xf32, #tpu.memory_space<vmem>>) attributes {dimension_semantics = [#tpu.dimension_semantics<arbitrary>], iteration_bounds = array<i64: 1>, scalar_prefetch = 0 : i64, scratch_operands = 3 : i64, tpu.core_type = #tpu.core_type<tc>, window_params = [{pipeline_mode = #tpu.pipeline_mode<synchronous>, transform_indices = @transform_0, window_bounds = array<i64: 64, 16>}, {pipeline_mode = #tpu.pipeline_mode<synchronous>, transform_indices = @transform_1, window_bounds = array<i64: 16, 256>}, {pipeline_mode = #tpu.pipeline_mode<synchronous>, transform_indices = @transform_2, window_bounds = array<i64: 64, 128>}, {pipeline_mode = #tpu.pipeline_mode<synchronous>, transform_indices = @transform_3, window_bounds = array<i64: 1, 256>}, {pipeline_mode = #tpu.pipeline_mode<synchronous>, transform_indices = @transform_4, window_bounds = array<i64: 64, 5>}, {pipeline_mode = #tpu.pipeline_mode<synchronous>, transform_indices = @transform_5, window_bounds = array<i64: 1, 5>}, {pipeline_mode = #tpu.pipeline_mode<synchronous>, transform_indices = @transform_6, window_bounds = array<i64: 64, 5>}, {pipeline_mode = #tpu.pipeline_mode<synchronous>, transform_indices = @transform_7, window_bounds = array<i64: 64, 1>}]} {
    %c0 = arith.constant 0 : index
    %c0_0 = arith.constant 0 : index
    %0 = vector.load %arg1[%c0, %c0_0] : memref<64x16xf32, #tpu.memory_space<vmem>>, vector<64x16xf32>
    %c0_1 = arith.constant 0 : index
    %c0_2 = arith.constant 0 : index
    %1 = vector.load %arg2[%c0_1, %c0_2] : memref<16x256xf32, #tpu.memory_space<vmem>>, vector<16x256xf32>
    %cst = arith.constant dense<0.000000e+00> : vector<64x256xf32>
    %2 = tpu.matmul %0, %1, %cst {dimension_numbers = #tpu.dot_dimension_numbers<[1], [0], [0], [1], [0, 0, 1, 1], [], []>} : vector<64x16xf32>, vector<16x256xf32>, vector<64x256xf32> -> vector<64x256xf32>
    %c0_3 = arith.constant 0 : index
    %c0_4 = arith.constant 0 : index
    %3 = vector.load %arg4[%c0_3, %c0_4] : memref<1x256xf32, #tpu.memory_space<vmem>>, vector<1x256xf32>
    %4 = vector.broadcast %3 : vector<1x256xf32> to vector<64x256xf32>
    %5 = arith.addf %2, %4 : vector<64x256xf32>
    %c0_5 = arith.constant 0 : index
    %c0_6 = arith.constant 0 : index
    %6 = vector.load %arg9[%c0_5, %c0_6] : memref<64x256xf32, #tpu.memory_space<vmem>>, vector<64x256xf32>
    tpu.vector_store %arg9[%c0_5, %c0_6], %5 {strides = array<i32>} : memref<64x256xf32, #tpu.memory_space<vmem>>, vector<64x256xf32>,
    %c0_7 = arith.constant 0 : index
    %c0_8 = arith.constant 0 : index
    %7 = vector.load %arg3[%c0_7, %c0_8] : memref<64x128xf32, #tpu.memory_space<vmem>>, vector<32x128xf32>
    %c32 = arith.constant 32 : index
    %c0_9 = arith.constant 0 : index
    %8 = vector.load %arg3[%c32, %c0_9] : memref<64x128xf32, #tpu.memory_space<vmem>>, vector<32x128xf32>
    %cst_10 = arith.constant 0.000000e+00 : f32
    %9 = vector.broadcast %cst_10 : f32 to vector<8x32xf32>
    %c0_i32 = arith.constant 0 : i32
    %c8_i32 = arith.constant 8 : i32
    %10 = arith.muli %c0_i32, %c8_i32 : i32
    %11 = tpu.assume_multiple %10, 8 : i32
    %c7_i32 = arith.constant 7 : i32
    %12 = arith.subi %c7_i32, %c0_i32 : i32
    %c8_i32_11 = arith.constant 8 : i32
    %13 = arith.muli %12, %c8_i32_11 : i32
    %14 = tpu.assume_multiple %13, 8 : i32
    %15 = arith.index_cast %11 : i32 to index
    %c0_12 = arith.constant 0 : index
    %16 = vector.load %arg9[%15, %c0_12] : memref<64x256xf32, #tpu.memory_space<vmem>>, vector<8x128xf32>
    %cst_13 = arith.constant dense<0.000000e+00> : vector<8x128xf32>
    %17 = tpu.matmul %9, %7, %cst_13 {dimension_numbers = #tpu.dot_dimension_numbers<[1], [0], [0], [1], [0, 0, 1, 1], [], []>} : vector<8x32xf32>, vector<32x128xf32>, vector<8x128xf32> -> vector<8x128xf32>
    %18 = arith.addf %16, %17 : vector<8x128xf32>
    %19 = arith.index_cast %14 : i32 to index
    %c128 = arith.constant 128 : index
    %20 = vector.load %arg9[%19, %c128] : memref<64x256xf32, #tpu.memory_space<vmem>>, vector<8x128xf32>
    %cst_14 = arith.constant dense<0.000000e+00> : vector<8x128xf32>
    %21 = tpu.matmul %9, %8, %cst_14 {dimension_numbers = #tpu.dot_dimension_numbers<[1], [0], [0], [1], [0, 0, 1, 1], [], []>} : vector<8x32xf32>, vector<32x128xf32>, vector<8x128xf32> -> vector<8x128xf32>
    %22 = arith.addf %20, %21 : vector<8x128xf32>
    %23 = arith.negf %18 : vector<8x128xf32>
    %24 = math.exp %23 : vector<8x128xf32>
    %cst_15 = arith.constant 1.000000e+00 : f32
    %25 = vector.broadcast %cst_15 : f32 to vector<8x128xf32>
    %26 = arith.addf %25, %24 : vector<8x128xf32>
    %27 = arith.divf %25, %26 : vector<8x128xf32>
    %28 = math.tanh %18 : vector<8x128xf32>
    %29 = arith.negf %22 : vector<8x128xf32>
    %30 = math.exp %29 : vector<8x128xf32>
    %cst_16 = arith.constant 1.000000e+00 : f32
    %31 = vector.broadcast %cst_16 : f32 to vector<8x128xf32>
    %32 = arith.addf %31, %30 : vector<8x128xf32>
    %33 = arith.divf %31, %32 : vector<8x128xf32>
    %34 = math.tanh %22 : vector<8x128xf32>
    %35 = vector.extract_strided_slice %27 {offsets = [0, 32], sizes = [8, 32], strides = [1, 1]} : vector<8x128xf32> to vector<8x32xf32>
    %36 = arith.mulf %35, %9 : vector<8x32xf32>
    %37 = vector.extract_strided_slice %27 {offsets = [0, 0], sizes = [8, 32], strides = [1, 1]} : vector<8x128xf32> to vector<8x32xf32>
    %38 = vector.extract_strided_slice %28 {offsets = [0, 64], sizes = [8, 32], strides = [1, 1]} : vector<8x128xf32> to vector<8x32xf32>
    %39 = arith.mulf %37, %38 : vector<8x32xf32>
    %40 = arith.addf %36, %39 : vector<8x32xf32>
    %41 = vector.extract_strided_slice %33 {offsets = [0, 32], sizes = [8, 32], strides = [1, 1]} : vector<8x128xf32> to vector<8x32xf32>
    %42 = arith.mulf %41, %9 : vector<8x32xf32>
    %43 = vector.extract_strided_slice %33 {offsets = [0, 0], sizes = [8, 32], strides = [1, 1]} : vector<8x128xf32> to vector<8x32xf32>
    %44 = vector.extract_strided_slice %34 {offsets = [0, 64], sizes = [8, 32], strides = [1, 1]} : vector<8x128xf32> to vector<8x32xf32>
    %45 = arith.mulf %43, %44 : vector<8x32xf32>
    %46 = arith.addf %42, %45 : vector<8x32xf32>
    %47 = vector.extract_strided_slice %27 {offsets = [0, 96], sizes = [8, 32], strides = [1, 1]} : vector<8x128xf32> to vector<8x32xf32>
    %48 = math.tanh %40 : vector<8x32xf32>
    %49 = arith.mulf %47, %48 : vector<8x32xf32>
    %50 = vector.extract_strided_slice %33 {offsets = [0, 96], sizes = [8, 32], strides = [1, 1]} : vector<8x128xf32> to vector<8x32xf32>
    %51 = math.tanh %46 : vector<8x32xf32>
    %52 = arith.mulf %50, %51 : vector<8x32xf32>
    %53 = arith.index_cast %11 : i32 to index
    %c0_17 = arith.constant 0 : index
    %54 = vector.load %arg10[%53, %c0_17] : memref<64x32xf32, #tpu.memory_space<vmem>>, vector<8x32xf32>
    tpu.vector_store %arg10[%53, %c0_17], %49 {strides = array<i32>} : memref<64x32xf32, #tpu.memory_space<vmem>>, vector<8x32xf32>,
    %55 = arith.index_cast %14 : i32 to index
    %c0_18 = arith.constant 0 : index
    %56 = vector.load %arg11[%55, %c0_18] : memref<64x32xf32, #tpu.memory_space<vmem>>, vector<8x32xf32>
    tpu.vector_store %arg11[%55, %c0_18], %52 {strides = array<i32>} : memref<64x32xf32, #tpu.memory_space<vmem>>, vector<8x32xf32>,
    %c1_i32 = arith.constant 1 : i32
    %c8_i32_19 = arith.constant 8 : i32
    %57 = arith.muli %c1_i32, %c8_i32_19 : i32
    %58 = tpu.assume_multiple %57, 8 : i32
    %c7_i32_20 = arith.constant 7 : i32
    %59 = arith.subi %c7_i32_20, %c1_i32 : i32
    %c8_i32_21 = arith.constant 8 : i32
    %60 = arith.muli %59, %c8_i32_21 : i32
    %61 = tpu.assume_multiple %60, 8 : i32
    %62 = arith.index_cast %58 : i32 to index
    %c0_22 = arith.constant 0 : index
    %63 = vector.load %arg9[%62, %c0_22] : memref<64x256xf32, #tpu.memory_space<vmem>>, vector<8x128xf32>
    %cst_23 = arith.constant dense<0.000000e+00> : vector<8x128xf32>
    %64 = tpu.matmul %49, %7, %cst_23 {dimension_numbers = #tpu.dot_dimension_numbers<[1], [0], [0], [1], [0, 0, 1, 1], [], []>} : vector<8x32xf32>, vector<32x128xf32>, vector<8x128xf32> -> vector<8x128xf32>
    %65 = arith.addf %63, %64 : vector<8x128xf32>
    %66 = arith.index_cast %61 : i32 to index
    %c128_24 = arith.constant 128 : index
    %67 = vector.load %arg9[%66, %c128_24] : memref<64x256xf32, #tpu.memory_space<vmem>>, vector<8x128xf32>
    %cst_25 = arith.constant dense<0.000000e+00> : vector<8x128xf32>
    %68 = tpu.matmul %52, %8, %cst_25 {dimension_numbers = #tpu.dot_dimension_numbers<[1], [0], [0], [1], [0, 0, 1, 1], [], []>} : vector<8x32xf32>, vector<32x128xf32>, vector<8x128xf32> -> vector<8x128xf32>
    %69 = arith.addf %67, %68 : vector<8x128xf32>
    %70 = arith.negf %65 : vector<8x128xf32>
    %71 = math.exp %70 : vector<8x128xf32>
    %cst_26 = arith.constant 1.000000e+00 : f32
    %72 = vector.broadcast %cst_26 : f32 to vector<8x128xf32>
    %73 = arith.addf %72, %71 : vector<8x128xf32>
    %74 = arith.divf %72, %73 : vector<8x128xf32>
    %75 = math.tanh %65 : vector<8x128xf32>
    %76 = arith.negf %69 : vector<8x128xf32>
    %77 = math.exp %76 : vector<8x128xf32>
    %cst_27 = arith.constant 1.000000e+00 : f32
    %78 = vector.broadcast %cst_27 : f32 to vector<8x128xf32>
    %79 = arith.addf %78, %77 : vector<8x128xf32>
    %80 = arith.divf %78, %79 : vector<8x128xf32>
    %81 = math.tanh %69 : vector<8x128xf32>
    %82 = vector.extract_strided_slice %74 {offsets = [0, 32], sizes = [8, 32], strides = [1, 1]} : vector<8x128xf32> to vector<8x32xf32>
    %83 = arith.mulf %82, %40 : vector<8x32xf32>
    %84 = vector.extract_strided_slice %74 {offsets = [0, 0], sizes = [8, 32], strides = [1, 1]} : vector<8x128xf32> to vector<8x32xf32>
    %85 = vector.extract_strided_slice %75 {offsets = [0, 64], sizes = [8, 32], strides = [1, 1]} : vector<8x128xf32> to vector<8x32xf32>
    %86 = arith.mulf %84, %85 : vector<8x32xf32>
    %87 = arith.addf %83, %86 : vector<8x32xf32>
    %88 = vector.extract_strided_slice %80 {offsets = [0, 32], sizes = [8, 32], strides = [1, 1]} : vector<8x128xf32> to vector<8x32xf32>
    %89 = arith.mulf %88, %46 : vector<8x32xf32>
    %90 = vector.extract_strided_slice %80 {offsets = [0, 0], sizes = [8, 32], strides = [1, 1]} : vector<8x128xf32> to vector<8x32xf32>
    %91 = vector.extract_strided_slice %81 {offsets = [0, 64], sizes = [8, 32], strides = [1, 1]} : vector<8x128xf32> to vector<8x32xf32>
    %92 = arith.mulf %90, %91 : vector<8x32xf32>
    %93 = arith.addf %89, %92 : vector<8x32xf32>
    %94 = vector.extract_strided_slice %74 {offsets = [0, 96], sizes = [8, 32], strides = [1, 1]} : vector<8x128xf32> to vector<8x32xf32>
    %95 = math.tanh %87 : vector<8x32xf32>
    %96 = arith.mulf %94, %95 : vector<8x32xf32>
    %97 = vector.extract_strided_slice %80 {offsets = [0, 96], sizes = [8, 32], strides = [1, 1]} : vector<8x128xf32> to vector<8x32xf32>
    %98 = math.tanh %93 : vector<8x32xf32>
    %99 = arith.mulf %97, %98 : vector<8x32xf32>
    %100 = arith.index_cast %58 : i32 to index
    %c0_28 = arith.constant 0 : index
    %101 = vector.load %arg10[%100, %c0_28] : memref<64x32xf32, #tpu.memory_space<vmem>>, vector<8x32xf32>
    tpu.vector_store %arg10[%100, %c0_28], %96 {strides = array<i32>} : memref<64x32xf32, #tpu.memory_space<vmem>>, vector<8x32xf32>,
    %102 = arith.index_cast %61 : i32 to index
    %c0_29 = arith.constant 0 : index
    %103 = vector.load %arg11[%102, %c0_29] : memref<64x32xf32, #tpu.memory_space<vmem>>, vector<8x32xf32>
    tpu.vector_store %arg11[%102, %c0_29], %99 {strides = array<i32>} : memref<64x32xf32, #tpu.memory_space<vmem>>, vector<8x32xf32>,
    %c2_i32 = arith.constant 2 : i32
    %c8_i32_30 = arith.constant 8 : i32
    %104 = arith.muli %c2_i32, %c8_i32_30 : i32
    %105 = tpu.assume_multiple %104, 8 : i32
    %c7_i32_31 = arith.constant 7 : i32
    %106 = arith.subi %c7_i32_31, %c2_i32 : i32
    %c8_i32_32 = arith.constant 8 : i32
    %107 = arith.muli %106, %c8_i32_32 : i32
    %108 = tpu.assume_multiple %107, 8 : i32
    %109 = arith.index_cast %105 : i32 to index
    %c0_33 = arith.constant 0 : index
    %110 = vector.load %arg9[%109, %c0_33] : memref<64x256xf32, #tpu.memory_space<vmem>>, vector<8x128xf32>
    %cst_34 = arith.constant dense<0.000000e+00> : vector<8x128xf32>
    %111 = tpu.matmul %96, %7, %cst_34 {dimension_numbers = #tpu.dot_dimension_numbers<[1], [0], [0], [1], [0, 0, 1, 1], [], []>} : vector<8x32xf32>, vector<32x128xf32>, vector<8x128xf32> -> vector<8x128xf32>
    %112 = arith.addf %110, %111 : vector<8x128xf32>
    %113 = arith.index_cast %108 : i32 to index
    %c128_35 = arith.constant 128 : index
    %114 = vector.load %arg9[%113, %c128_35] : memref<64x256xf32, #tpu.memory_space<vmem>>, vector<8x128xf32>
    %cst_36 = arith.constant dense<0.000000e+00> : vector<8x128xf32>
    %115 = tpu.matmul %99, %8, %cst_36 {dimension_numbers = #tpu.dot_dimension_numbers<[1], [0], [0], [1], [0, 0, 1, 1], [], []>} : vector<8x32xf32>, vector<32x128xf32>, vector<8x128xf32> -> vector<8x128xf32>
    %116 = arith.addf %114, %115 : vector<8x128xf32>
    %117 = arith.negf %112 : vector<8x128xf32>
    %118 = math.exp %117 : vector<8x128xf32>
    %cst_37 = arith.constant 1.000000e+00 : f32
    %119 = vector.broadcast %cst_37 : f32 to vector<8x128xf32>
    %120 = arith.addf %119, %118 : vector<8x128xf32>
    %121 = arith.divf %119, %120 : vector<8x128xf32>
    %122 = math.tanh %112 : vector<8x128xf32>
    %123 = arith.negf %116 : vector<8x128xf32>
    %124 = math.exp %123 : vector<8x128xf32>
    %cst_38 = arith.constant 1.000000e+00 : f32
    %125 = vector.broadcast %cst_38 : f32 to vector<8x128xf32>
    %126 = arith.addf %125, %124 : vector<8x128xf32>
    %127 = arith.divf %125, %126 : vector<8x128xf32>
    %128 = math.tanh %116 : vector<8x128xf32>
    %129 = vector.extract_strided_slice %121 {offsets = [0, 32], sizes = [8, 32], strides = [1, 1]} : vector<8x128xf32> to vector<8x32xf32>
    %130 = arith.mulf %129, %87 : vector<8x32xf32>
    %131 = vector.extract_strided_slice %121 {offsets = [0, 0], sizes = [8, 32], strides = [1, 1]} : vector<8x128xf32> to vector<8x32xf32>
    %132 = vector.extract_strided_slice %122 {offsets = [0, 64], sizes = [8, 32], strides = [1, 1]} : vector<8x128xf32> to vector<8x32xf32>
    %133 = arith.mulf %131, %132 : vector<8x32xf32>
    %134 = arith.addf %130, %133 : vector<8x32xf32>
    %135 = vector.extract_strided_slice %127 {offsets = [0, 32], sizes = [8, 32], strides = [1, 1]} : vector<8x128xf32> to vector<8x32xf32>
    %136 = arith.mulf %135, %93 : vector<8x32xf32>
    %137 = vector.extract_strided_slice %127 {offsets = [0, 0], sizes = [8, 32], strides = [1, 1]} : vector<8x128xf32> to vector<8x32xf32>
    %138 = vector.extract_strided_slice %128 {offsets = [0, 64], sizes = [8, 32], strides = [1, 1]} : vector<8x128xf32> to vector<8x32xf32>
    %139 = arith.mulf %137, %138 : vector<8x32xf32>
    %140 = arith.addf %136, %139 : vector<8x32xf32>
    %141 = vector.extract_strided_slice %121 {offsets = [0, 96], sizes = [8, 32], strides = [1, 1]} : vector<8x128xf32> to vector<8x32xf32>
    %142 = math.tanh %134 : vector<8x32xf32>
    %143 = arith.mulf %141, %142 : vector<8x32xf32>
    %144 = vector.extract_strided_slice %127 {offsets = [0, 96], sizes = [8, 32], strides = [1, 1]} : vector<8x128xf32> to vector<8x32xf32>
    %145 = math.tanh %140 : vector<8x32xf32>
    %146 = arith.mulf %144, %145 : vector<8x32xf32>
    %147 = arith.index_cast %105 : i32 to index
    %c0_39 = arith.constant 0 : index
    %148 = vector.load %arg10[%147, %c0_39] : memref<64x32xf32, #tpu.memory_space<vmem>>, vector<8x32xf32>
    tpu.vector_store %arg10[%147, %c0_39], %143 {strides = array<i32>} : memref<64x32xf32, #tpu.memory_space<vmem>>, vector<8x32xf32>,
    %149 = arith.index_cast %108 : i32 to index
    %c0_40 = arith.constant 0 : index
    %150 = vector.load %arg11[%149, %c0_40] : memref<64x32xf32, #tpu.memory_space<vmem>>, vector<8x32xf32>
    tpu.vector_store %arg11[%149, %c0_40], %146 {strides = array<i32>} : memref<64x32xf32, #tpu.memory_space<vmem>>, vector<8x32xf32>,
    %c3_i32 = arith.constant 3 : i32
    %c8_i32_41 = arith.constant 8 : i32
    %151 = arith.muli %c3_i32, %c8_i32_41 : i32
    %152 = tpu.assume_multiple %151, 8 : i32
    %c7_i32_42 = arith.constant 7 : i32
    %153 = arith.subi %c7_i32_42, %c3_i32 : i32
    %c8_i32_43 = arith.constant 8 : i32
    %154 = arith.muli %153, %c8_i32_43 : i32
    %155 = tpu.assume_multiple %154, 8 : i32
    %156 = arith.index_cast %152 : i32 to index
    %c0_44 = arith.constant 0 : index
    %157 = vector.load %arg9[%156, %c0_44] : memref<64x256xf32, #tpu.memory_space<vmem>>, vector<8x128xf32>
    %cst_45 = arith.constant dense<0.000000e+00> : vector<8x128xf32>
    %158 = tpu.matmul %143, %7, %cst_45 {dimension_numbers = #tpu.dot_dimension_numbers<[1], [0], [0], [1], [0, 0, 1, 1], [], []>} : vector<8x32xf32>, vector<32x128xf32>, vector<8x128xf32> -> vector<8x128xf32>
    %159 = arith.addf %157, %158 : vector<8x128xf32>
    %160 = arith.index_cast %155 : i32 to index
    %c128_46 = arith.constant 128 : index
    %161 = vector.load %arg9[%160, %c128_46] : memref<64x256xf32, #tpu.memory_space<vmem>>, vector<8x128xf32>
    %cst_47 = arith.constant dense<0.000000e+00> : vector<8x128xf32>
    %162 = tpu.matmul %146, %8, %cst_47 {dimension_numbers = #tpu.dot_dimension_numbers<[1], [0], [0], [1], [0, 0, 1, 1], [], []>} : vector<8x32xf32>, vector<32x128xf32>, vector<8x128xf32> -> vector<8x128xf32>
    %163 = arith.addf %161, %162 : vector<8x128xf32>
    %164 = arith.negf %159 : vector<8x128xf32>
    %165 = math.exp %164 : vector<8x128xf32>
    %cst_48 = arith.constant 1.000000e+00 : f32
    %166 = vector.broadcast %cst_48 : f32 to vector<8x128xf32>
    %167 = arith.addf %166, %165 : vector<8x128xf32>
    %168 = arith.divf %166, %167 : vector<8x128xf32>
    %169 = math.tanh %159 : vector<8x128xf32>
    %170 = arith.negf %163 : vector<8x128xf32>
    %171 = math.exp %170 : vector<8x128xf32>
    %cst_49 = arith.constant 1.000000e+00 : f32
    %172 = vector.broadcast %cst_49 : f32 to vector<8x128xf32>
    %173 = arith.addf %172, %171 : vector<8x128xf32>
    %174 = arith.divf %172, %173 : vector<8x128xf32>
    %175 = math.tanh %163 : vector<8x128xf32>
    %176 = vector.extract_strided_slice %168 {offsets = [0, 32], sizes = [8, 32], strides = [1, 1]} : vector<8x128xf32> to vector<8x32xf32>
    %177 = arith.mulf %176, %134 : vector<8x32xf32>
    %178 = vector.extract_strided_slice %168 {offsets = [0, 0], sizes = [8, 32], strides = [1, 1]} : vector<8x128xf32> to vector<8x32xf32>
    %179 = vector.extract_strided_slice %169 {offsets = [0, 64], sizes = [8, 32], strides = [1, 1]} : vector<8x128xf32> to vector<8x32xf32>
    %180 = arith.mulf %178, %179 : vector<8x32xf32>
    %181 = arith.addf %177, %180 : vector<8x32xf32>
    %182 = vector.extract_strided_slice %174 {offsets = [0, 32], sizes = [8, 32], strides = [1, 1]} : vector<8x128xf32> to vector<8x32xf32>
    %183 = arith.mulf %182, %140 : vector<8x32xf32>
    %184 = vector.extract_strided_slice %174 {offsets = [0, 0], sizes = [8, 32], strides = [1, 1]} : vector<8x128xf32> to vector<8x32xf32>
    %185 = vector.extract_strided_slice %175 {offsets = [0, 64], sizes = [8, 32], strides = [1, 1]} : vector<8x128xf32> to vector<8x32xf32>
    %186 = arith.mulf %184, %185 : vector<8x32xf32>
    %187 = arith.addf %183, %186 : vector<8x32xf32>
    %188 = vector.extract_strided_slice %168 {offsets = [0, 96], sizes = [8, 32], strides = [1, 1]} : vector<8x128xf32> to vector<8x32xf32>
    %189 = math.tanh %181 : vector<8x32xf32>
    %190 = arith.mulf %188, %189 : vector<8x32xf32>
    %191 = vector.extract_strided_slice %174 {offsets = [0, 96], sizes = [8, 32], strides = [1, 1]} : vector<8x128xf32> to vector<8x32xf32>
    %192 = math.tanh %187 : vector<8x32xf32>
    %193 = arith.mulf %191, %192 : vector<8x32xf32>
    %194 = arith.index_cast %152 : i32 to index
    %c0_50 = arith.constant 0 : index
    %195 = vector.load %arg10[%194, %c0_50] : memref<64x32xf32, #tpu.memory_space<vmem>>, vector<8x32xf32>
    tpu.vector_store %arg10[%194, %c0_50], %190 {strides = array<i32>} : memref<64x32xf32, #tpu.memory_space<vmem>>, vector<8x32xf32>,
    %196 = arith.index_cast %155 : i32 to index
    %c0_51 = arith.constant 0 : index
    %197 = vector.load %arg11[%196, %c0_51] : memref<64x32xf32, #tpu.memory_space<vmem>>, vector<8x32xf32>
    tpu.vector_store %arg11[%196, %c0_51], %193 {strides = array<i32>} : memref<64x32xf32, #tpu.memory_space<vmem>>, vector<8x32xf32>,
    %c4_i32 = arith.constant 4 : i32
    %c8_i32_52 = arith.constant 8 : i32
    %198 = arith.muli %c4_i32, %c8_i32_52 : i32
    %199 = tpu.assume_multiple %198, 8 : i32
    %c7_i32_53 = arith.constant 7 : i32
    %200 = arith.subi %c7_i32_53, %c4_i32 : i32
    %c8_i32_54 = arith.constant 8 : i32
    %201 = arith.muli %200, %c8_i32_54 : i32
    %202 = tpu.assume_multiple %201, 8 : i32
    %203 = arith.index_cast %199 : i32 to index
    %c0_55 = arith.constant 0 : index
    %204 = vector.load %arg9[%203, %c0_55] : memref<64x256xf32, #tpu.memory_space<vmem>>, vector<8x128xf32>
    %cst_56 = arith.constant dense<0.000000e+00> : vector<8x128xf32>
    %205 = tpu.matmul %190, %7, %cst_56 {dimension_numbers = #tpu.dot_dimension_numbers<[1], [0], [0], [1], [0, 0, 1, 1], [], []>} : vector<8x32xf32>, vector<32x128xf32>, vector<8x128xf32> -> vector<8x128xf32>
    %206 = arith.addf %204, %205 : vector<8x128xf32>
    %207 = arith.index_cast %202 : i32 to index
    %c128_57 = arith.constant 128 : index
    %208 = vector.load %arg9[%207, %c128_57] : memref<64x256xf32, #tpu.memory_space<vmem>>, vector<8x128xf32>
    %cst_58 = arith.constant dense<0.000000e+00> : vector<8x128xf32>
    %209 = tpu.matmul %193, %8, %cst_58 {dimension_numbers = #tpu.dot_dimension_numbers<[1], [0], [0], [1], [0, 0, 1, 1], [], []>} : vector<8x32xf32>, vector<32x128xf32>, vector<8x128xf32> -> vector<8x128xf32>
    %210 = arith.addf %208, %209 : vector<8x128xf32>
    %211 = arith.negf %206 : vector<8x128xf32>
    %212 = math.exp %211 : vector<8x128xf32>
    %cst_59 = arith.constant 1.000000e+00 : f32
    %213 = vector.broadcast %cst_59 : f32 to vector<8x128xf32>
    %214 = arith.addf %213, %212 : vector<8x128xf32>
    %215 = arith.divf %213, %214 : vector<8x128xf32>
    %216 = math.tanh %206 : vector<8x128xf32>
    %217 = arith.negf %210 : vector<8x128xf32>
    %218 = math.exp %217 : vector<8x128xf32>
    %cst_60 = arith.constant 1.000000e+00 : f32
    %219 = vector.broadcast %cst_60 : f32 to vector<8x128xf32>
    %220 = arith.addf %219, %218 : vector<8x128xf32>
    %221 = arith.divf %219, %220 : vector<8x128xf32>
    %222 = math.tanh %210 : vector<8x128xf32>
    %223 = vector.extract_strided_slice %215 {offsets = [0, 32], sizes = [8, 32], strides = [1, 1]} : vector<8x128xf32> to vector<8x32xf32>
    %224 = arith.mulf %223, %181 : vector<8x32xf32>
    %225 = vector.extract_strided_slice %215 {offsets = [0, 0], sizes = [8, 32], strides = [1, 1]} : vector<8x128xf32> to vector<8x32xf32>
    %226 = vector.extract_strided_slice %216 {offsets = [0, 64], sizes = [8, 32], strides = [1, 1]} : vector<8x128xf32> to vector<8x32xf32>
    %227 = arith.mulf %225, %226 : vector<8x32xf32>
    %228 = arith.addf %224, %227 : vector<8x32xf32>
    %229 = vector.extract_strided_slice %221 {offsets = [0, 32], sizes = [8, 32], strides = [1, 1]} : vector<8x128xf32> to vector<8x32xf32>
    %230 = arith.mulf %229, %187 : vector<8x32xf32>
    %231 = vector.extract_strided_slice %221 {offsets = [0, 0], sizes = [8, 32], strides = [1, 1]} : vector<8x128xf32> to vector<8x32xf32>
    %232 = vector.extract_strided_slice %222 {offsets = [0, 64], sizes = [8, 32], strides = [1, 1]} : vector<8x128xf32> to vector<8x32xf32>
    %233 = arith.mulf %231, %232 : vector<8x32xf32>
    %234 = arith.addf %230, %233 : vector<8x32xf32>
    %235 = vector.extract_strided_slice %215 {offsets = [0, 96], sizes = [8, 32], strides = [1, 1]} : vector<8x128xf32> to vector<8x32xf32>
    %236 = math.tanh %228 : vector<8x32xf32>
    %237 = arith.mulf %235, %236 : vector<8x32xf32>
    %238 = vector.extract_strided_slice %221 {offsets = [0, 96], sizes = [8, 32], strides = [1, 1]} : vector<8x128xf32> to vector<8x32xf32>
    %239 = math.tanh %234 : vector<8x32xf32>
    %240 = arith.mulf %238, %239 : vector<8x32xf32>
    %241 = arith.index_cast %199 : i32 to index
    %c0_61 = arith.constant 0 : index
    %242 = vector.load %arg10[%241, %c0_61] : memref<64x32xf32, #tpu.memory_space<vmem>>, vector<8x32xf32>
    tpu.vector_store %arg10[%241, %c0_61], %237 {strides = array<i32>} : memref<64x32xf32, #tpu.memory_space<vmem>>, vector<8x32xf32>,
    %243 = arith.index_cast %202 : i32 to index
    %c0_62 = arith.constant 0 : index
    %244 = vector.load %arg11[%243, %c0_62] : memref<64x32xf32, #tpu.memory_space<vmem>>, vector<8x32xf32>
    tpu.vector_store %arg11[%243, %c0_62], %240 {strides = array<i32>} : memref<64x32xf32, #tpu.memory_space<vmem>>, vector<8x32xf32>,
    %c5_i32 = arith.constant 5 : i32
    %c8_i32_63 = arith.constant 8 : i32
    %245 = arith.muli %c5_i32, %c8_i32_63 : i32
    %246 = tpu.assume_multiple %245, 8 : i32
    %c7_i32_64 = arith.constant 7 : i32
    %247 = arith.subi %c7_i32_64, %c5_i32 : i32
    %c8_i32_65 = arith.constant 8 : i32
    %248 = arith.muli %247, %c8_i32_65 : i32
    %249 = tpu.assume_multiple %248, 8 : i32
    %250 = arith.index_cast %246 : i32 to index
    %c0_66 = arith.constant 0 : index
    %251 = vector.load %arg9[%250, %c0_66] : memref<64x256xf32, #tpu.memory_space<vmem>>, vector<8x128xf32>
    %cst_67 = arith.constant dense<0.000000e+00> : vector<8x128xf32>
    %252 = tpu.matmul %237, %7, %cst_67 {dimension_numbers = #tpu.dot_dimension_numbers<[1], [0], [0], [1], [0, 0, 1, 1], [], []>} : vector<8x32xf32>, vector<32x128xf32>, vector<8x128xf32> -> vector<8x128xf32>
    %253 = arith.addf %251, %252 : vector<8x128xf32>
    %254 = arith.index_cast %249 : i32 to index
    %c128_68 = arith.constant 128 : index
    %255 = vector.load %arg9[%254, %c128_68] : memref<64x256xf32, #tpu.memory_space<vmem>>, vector<8x128xf32>
    %cst_69 = arith.constant dense<0.000000e+00> : vector<8x128xf32>
    %256 = tpu.matmul %240, %8, %cst_69 {dimension_numbers = #tpu.dot_dimension_numbers<[1], [0], [0], [1], [0, 0, 1, 1], [], []>} : vector<8x32xf32>, vector<32x128xf32>, vector<8x128xf32> -> vector<8x128xf32>
    %257 = arith.addf %255, %256 : vector<8x128xf32>
    %258 = arith.negf %253 : vector<8x128xf32>
    %259 = math.exp %258 : vector<8x128xf32>
    %cst_70 = arith.constant 1.000000e+00 : f32
    %260 = vector.broadcast %cst_70 : f32 to vector<8x128xf32>
    %261 = arith.addf %260, %259 : vector<8x128xf32>
    %262 = arith.divf %260, %261 : vector<8x128xf32>
    %263 = math.tanh %253 : vector<8x128xf32>
    %264 = arith.negf %257 : vector<8x128xf32>
    %265 = math.exp %264 : vector<8x128xf32>
    %cst_71 = arith.constant 1.000000e+00 : f32
    %266 = vector.broadcast %cst_71 : f32 to vector<8x128xf32>
    %267 = arith.addf %266, %265 : vector<8x128xf32>
    %268 = arith.divf %266, %267 : vector<8x128xf32>
    %269 = math.tanh %257 : vector<8x128xf32>
    %270 = vector.extract_strided_slice %262 {offsets = [0, 32], sizes = [8, 32], strides = [1, 1]} : vector<8x128xf32> to vector<8x32xf32>
    %271 = arith.mulf %270, %228 : vector<8x32xf32>
    %272 = vector.extract_strided_slice %262 {offsets = [0, 0], sizes = [8, 32], strides = [1, 1]} : vector<8x128xf32> to vector<8x32xf32>
    %273 = vector.extract_strided_slice %263 {offsets = [0, 64], sizes = [8, 32], strides = [1, 1]} : vector<8x128xf32> to vector<8x32xf32>
    %274 = arith.mulf %272, %273 : vector<8x32xf32>
    %275 = arith.addf %271, %274 : vector<8x32xf32>
    %276 = vector.extract_strided_slice %268 {offsets = [0, 32], sizes = [8, 32], strides = [1, 1]} : vector<8x128xf32> to vector<8x32xf32>
    %277 = arith.mulf %276, %234 : vector<8x32xf32>
    %278 = vector.extract_strided_slice %268 {offsets = [0, 0], sizes = [8, 32], strides = [1, 1]} : vector<8x128xf32> to vector<8x32xf32>
    %279 = vector.extract_strided_slice %269 {offsets = [0, 64], sizes = [8, 32], strides = [1, 1]} : vector<8x128xf32> to vector<8x32xf32>
    %280 = arith.mulf %278, %279 : vector<8x32xf32>
    %281 = arith.addf %277, %280 : vector<8x32xf32>
    %282 = vector.extract_strided_slice %262 {offsets = [0, 96], sizes = [8, 32], strides = [1, 1]} : vector<8x128xf32> to vector<8x32xf32>
    %283 = math.tanh %275 : vector<8x32xf32>
    %284 = arith.mulf %282, %283 : vector<8x32xf32>
    %285 = vector.extract_strided_slice %268 {offsets = [0, 96], sizes = [8, 32], strides = [1, 1]} : vector<8x128xf32> to vector<8x32xf32>
    %286 = math.tanh %281 : vector<8x32xf32>
    %287 = arith.mulf %285, %286 : vector<8x32xf32>
    %288 = arith.index_cast %246 : i32 to index
    %c0_72 = arith.constant 0 : index
    %289 = vector.load %arg10[%288, %c0_72] : memref<64x32xf32, #tpu.memory_space<vmem>>, vector<8x32xf32>
    tpu.vector_store %arg10[%288, %c0_72], %284 {strides = array<i32>} : memref<64x32xf32, #tpu.memory_space<vmem>>, vector<8x32xf32>,
    %290 = arith.index_cast %249 : i32 to index
    %c0_73 = arith.constant 0 : index
    %291 = vector.load %arg11[%290, %c0_73] : memref<64x32xf32, #tpu.memory_space<vmem>>, vector<8x32xf32>
    tpu.vector_store %arg11[%290, %c0_73], %287 {strides = array<i32>} : memref<64x32xf32, #tpu.memory_space<vmem>>, vector<8x32xf32>,
    %c6_i32 = arith.constant 6 : i32
    %c8_i32_74 = arith.constant 8 : i32
    %292 = arith.muli %c6_i32, %c8_i32_74 : i32
    %293 = tpu.assume_multiple %292, 8 : i32
    %c7_i32_75 = arith.constant 7 : i32
    %294 = arith.subi %c7_i32_75, %c6_i32 : i32
    %c8_i32_76 = arith.constant 8 : i32
    %295 = arith.muli %294, %c8_i32_76 : i32
    %296 = tpu.assume_multiple %295, 8 : i32
    %297 = arith.index_cast %293 : i32 to index
    %c0_77 = arith.constant 0 : index
    %298 = vector.load %arg9[%297, %c0_77] : memref<64x256xf32, #tpu.memory_space<vmem>>, vector<8x128xf32>
    %cst_78 = arith.constant dense<0.000000e+00> : vector<8x128xf32>
    %299 = tpu.matmul %284, %7, %cst_78 {dimension_numbers = #tpu.dot_dimension_numbers<[1], [0], [0], [1], [0, 0, 1, 1], [], []>} : vector<8x32xf32>, vector<32x128xf32>, vector<8x128xf32> -> vector<8x128xf32>
    %300 = arith.addf %298, %299 : vector<8x128xf32>
    %301 = arith.index_cast %296 : i32 to index
    %c128_79 = arith.constant 128 : index
    %302 = vector.load %arg9[%301, %c128_79] : memref<64x256xf32, #tpu.memory_space<vmem>>, vector<8x128xf32>
    %cst_80 = arith.constant dense<0.000000e+00> : vector<8x128xf32>
    %303 = tpu.matmul %287, %8, %cst_80 {dimension_numbers = #tpu.dot_dimension_numbers<[1], [0], [0], [1], [0, 0, 1, 1], [], []>} : vector<8x32xf32>, vector<32x128xf32>, vector<8x128xf32> -> vector<8x128xf32>
    %304 = arith.addf %302, %303 : vector<8x128xf32>
    %305 = arith.negf %300 : vector<8x128xf32>
    %306 = math.exp %305 : vector<8x128xf32>
    %cst_81 = arith.constant 1.000000e+00 : f32
    %307 = vector.broadcast %cst_81 : f32 to vector<8x128xf32>
    %308 = arith.addf %307, %306 : vector<8x128xf32>
    %309 = arith.divf %307, %308 : vector<8x128xf32>
    %310 = math.tanh %300 : vector<8x128xf32>
    %311 = arith.negf %304 : vector<8x128xf32>
    %312 = math.exp %311 : vector<8x128xf32>
    %cst_82 = arith.constant 1.000000e+00 : f32
    %313 = vector.broadcast %cst_82 : f32 to vector<8x128xf32>
    %314 = arith.addf %313, %312 : vector<8x128xf32>
    %315 = arith.divf %313, %314 : vector<8x128xf32>
    %316 = math.tanh %304 : vector<8x128xf32>
    %317 = vector.extract_strided_slice %309 {offsets = [0, 32], sizes = [8, 32], strides = [1, 1]} : vector<8x128xf32> to vector<8x32xf32>
    %318 = arith.mulf %317, %275 : vector<8x32xf32>
    %319 = vector.extract_strided_slice %309 {offsets = [0, 0], sizes = [8, 32], strides = [1, 1]} : vector<8x128xf32> to vector<8x32xf32>
    %320 = vector.extract_strided_slice %310 {offsets = [0, 64], sizes = [8, 32], strides = [1, 1]} : vector<8x128xf32> to vector<8x32xf32>
    %321 = arith.mulf %319, %320 : vector<8x32xf32>
    %322 = arith.addf %318, %321 : vector<8x32xf32>
    %323 = vector.extract_strided_slice %315 {offsets = [0, 32], sizes = [8, 32], strides = [1, 1]} : vector<8x128xf32> to vector<8x32xf32>
    %324 = arith.mulf %323, %281 : vector<8x32xf32>
    %325 = vector.extract_strided_slice %315 {offsets = [0, 0], sizes = [8, 32], strides = [1, 1]} : vector<8x128xf32> to vector<8x32xf32>
    %326 = vector.extract_strided_slice %316 {offsets = [0, 64], sizes = [8, 32], strides = [1, 1]} : vector<8x128xf32> to vector<8x32xf32>
    %327 = arith.mulf %325, %326 : vector<8x32xf32>
    %328 = arith.addf %324, %327 : vector<8x32xf32>
    %329 = vector.extract_strided_slice %309 {offsets = [0, 96], sizes = [8, 32], strides = [1, 1]} : vector<8x128xf32> to vector<8x32xf32>
    %330 = math.tanh %322 : vector<8x32xf32>
    %331 = arith.mulf %329, %330 : vector<8x32xf32>
    %332 = vector.extract_strided_slice %315 {offsets = [0, 96], sizes = [8, 32], strides = [1, 1]} : vector<8x128xf32> to vector<8x32xf32>
    %333 = math.tanh %328 : vector<8x32xf32>
    %334 = arith.mulf %332, %333 : vector<8x32xf32>
    %335 = arith.index_cast %293 : i32 to index
    %c0_83 = arith.constant 0 : index
    %336 = vector.load %arg10[%335, %c0_83] : memref<64x32xf32, #tpu.memory_space<vmem>>, vector<8x32xf32>
    tpu.vector_store %arg10[%335, %c0_83], %331 {strides = array<i32>} : memref<64x32xf32, #tpu.memory_space<vmem>>, vector<8x32xf32>,
    %337 = arith.index_cast %296 : i32 to index
    %c0_84 = arith.constant 0 : index
    %338 = vector.load %arg11[%337, %c0_84] : memref<64x32xf32, #tpu.memory_space<vmem>>, vector<8x32xf32>
    tpu.vector_store %arg11[%337, %c0_84], %334 {strides = array<i32>} : memref<64x32xf32, #tpu.memory_space<vmem>>, vector<8x32xf32>,
    %c7_i32_85 = arith.constant 7 : i32
    %c8_i32_86 = arith.constant 8 : i32
    %339 = arith.muli %c7_i32_85, %c8_i32_86 : i32
    %340 = tpu.assume_multiple %339, 8 : i32
    %c7_i32_87 = arith.constant 7 : i32
    %341 = arith.subi %c7_i32_87, %c7_i32_85 : i32
    %c8_i32_88 = arith.constant 8 : i32
    %342 = arith.muli %341, %c8_i32_88 : i32
    %343 = tpu.assume_multiple %342, 8 : i32
    %344 = arith.index_cast %340 : i32 to index
    %c0_89 = arith.constant 0 : index
    %345 = vector.load %arg9[%344, %c0_89] : memref<64x256xf32, #tpu.memory_space<vmem>>, vector<8x128xf32>
    %cst_90 = arith.constant dense<0.000000e+00> : vector<8x128xf32>
    %346 = tpu.matmul %331, %7, %cst_90 {dimension_numbers = #tpu.dot_dimension_numbers<[1], [0], [0], [1], [0, 0, 1, 1], [], []>} : vector<8x32xf32>, vector<32x128xf32>, vector<8x128xf32> -> vector<8x128xf32>
    %347 = arith.addf %345, %346 : vector<8x128xf32>
    %348 = arith.index_cast %343 : i32 to index
    %c128_91 = arith.constant 128 : index
    %349 = vector.load %arg9[%348, %c128_91] : memref<64x256xf32, #tpu.memory_space<vmem>>, vector<8x128xf32>
    %cst_92 = arith.constant dense<0.000000e+00> : vector<8x128xf32>
    %350 = tpu.matmul %334, %8, %cst_92 {dimension_numbers = #tpu.dot_dimension_numbers<[1], [0], [0], [1], [0, 0, 1, 1], [], []>} : vector<8x32xf32>, vector<32x128xf32>, vector<8x128xf32> -> vector<8x128xf32>
    %351 = arith.addf %349, %350 : vector<8x128xf32>
    %352 = arith.negf %347 : vector<8x128xf32>
    %353 = math.exp %352 : vector<8x128xf32>
    %cst_93 = arith.constant 1.000000e+00 : f32
    %354 = vector.broadcast %cst_93 : f32 to vector<8x128xf32>
    %355 = arith.addf %354, %353 : vector<8x128xf32>
    %356 = arith.divf %354, %355 : vector<8x128xf32>
    %357 = math.tanh %347 : vector<8x128xf32>
    %358 = arith.negf %351 : vector<8x128xf32>
    %359 = math.exp %358 : vector<8x128xf32>
    %cst_94 = arith.constant 1.000000e+00 : f32
    %360 = vector.broadcast %cst_94 : f32 to vector<8x128xf32>
    %361 = arith.addf %360, %359 : vector<8x128xf32>
    %362 = arith.divf %360, %361 : vector<8x128xf32>
    %363 = math.tanh %351 : vector<8x128xf32>
    %364 = vector.extract_strided_slice %356 {offsets = [0, 32], sizes = [8, 32], strides = [1, 1]} : vector<8x128xf32> to vector<8x32xf32>
    %365 = arith.mulf %364, %322 : vector<8x32xf32>
    %366 = vector.extract_strided_slice %356 {offsets = [0, 0], sizes = [8, 32], strides = [1, 1]} : vector<8x128xf32> to vector<8x32xf32>
    %367 = vector.extract_strided_slice %357 {offsets = [0, 64], sizes = [8, 32], strides = [1, 1]} : vector<8x128xf32> to vector<8x32xf32>
    %368 = arith.mulf %366, %367 : vector<8x32xf32>
    %369 = arith.addf %365, %368 : vector<8x32xf32>
    %370 = vector.extract_strided_slice %362 {offsets = [0, 32], sizes = [8, 32], strides = [1, 1]} : vector<8x128xf32> to vector<8x32xf32>
    %371 = arith.mulf %370, %328 : vector<8x32xf32>
    %372 = vector.extract_strided_slice %362 {offsets = [0, 0], sizes = [8, 32], strides = [1, 1]} : vector<8x128xf32> to vector<8x32xf32>
    %373 = vector.extract_strided_slice %363 {offsets = [0, 64], sizes = [8, 32], strides = [1, 1]} : vector<8x128xf32> to vector<8x32xf32>
    %374 = arith.mulf %372, %373 : vector<8x32xf32>
    %375 = arith.addf %371, %374 : vector<8x32xf32>
    %376 = vector.extract_strided_slice %356 {offsets = [0, 96], sizes = [8, 32], strides = [1, 1]} : vector<8x128xf32> to vector<8x32xf32>
    %377 = math.tanh %369 : vector<8x32xf32>
    %378 = arith.mulf %376, %377 : vector<8x32xf32>
    %379 = vector.extract_strided_slice %362 {offsets = [0, 96], sizes = [8, 32], strides = [1, 1]} : vector<8x128xf32> to vector<8x32xf32>
    %380 = math.tanh %375 : vector<8x32xf32>
    %381 = arith.mulf %379, %380 : vector<8x32xf32>
    %382 = arith.index_cast %340 : i32 to index
    %c0_95 = arith.constant 0 : index
    %383 = vector.load %arg10[%382, %c0_95] : memref<64x32xf32, #tpu.memory_space<vmem>>, vector<8x32xf32>
    tpu.vector_store %arg10[%382, %c0_95], %378 {strides = array<i32>} : memref<64x32xf32, #tpu.memory_space<vmem>>, vector<8x32xf32>,
    %384 = arith.index_cast %343 : i32 to index
    %c0_96 = arith.constant 0 : index
    %385 = vector.load %arg11[%384, %c0_96] : memref<64x32xf32, #tpu.memory_space<vmem>>, vector<8x32xf32>
    tpu.vector_store %arg11[%384, %c0_96], %381 {strides = array<i32>} : memref<64x32xf32, #tpu.memory_space<vmem>>, vector<8x32xf32>,
    %c8_i32_97 = arith.constant 8 : i32
    %c0_98 = arith.constant 0 : index
    %c0_99 = arith.constant 0 : index
    %386 = vector.load %arg10[%c0_98, %c0_99] : memref<64x32xf32, #tpu.memory_space<vmem>>, vector<64x32xf32>
    %c0_100 = arith.constant 0 : index
    %c0_101 = arith.constant 0 : index
    %387 = vector.load %arg5[%c0_100, %c0_101] : memref<64x5xf32, #tpu.memory_space<vmem>>, vector<32x5xf32>
    %cst_102 = arith.constant dense<0.000000e+00> : vector<64x5xf32>
    %388 = tpu.matmul %386, %387, %cst_102 {dimension_numbers = #tpu.dot_dimension_numbers<[1], [0], [0], [1], [0, 0, 1, 1], [], []>} : vector<64x32xf32>, vector<32x5xf32>, vector<64x5xf32> -> vector<64x5xf32>
    %c0_103 = arith.constant 0 : index
    %c0_104 = arith.constant 0 : index
    %389 = vector.load %arg11[%c0_103, %c0_104] : memref<64x32xf32, #tpu.memory_space<vmem>>, vector<64x32xf32>
    %c32_105 = arith.constant 32 : index
    %c0_106 = arith.constant 0 : index
    %390 = vector.load %arg5[%c32_105, %c0_106] : memref<64x5xf32, #tpu.memory_space<vmem>>, vector<32x5xf32>
    %cst_107 = arith.constant dense<0.000000e+00> : vector<64x5xf32>
    %391 = tpu.matmul %389, %390, %cst_107 {dimension_numbers = #tpu.dot_dimension_numbers<[1], [0], [0], [1], [0, 0, 1, 1], [], []>} : vector<64x32xf32>, vector<32x5xf32>, vector<64x5xf32> -> vector<64x5xf32>
    %392 = arith.addf %388, %391 : vector<64x5xf32>
    %c0_108 = arith.constant 0 : index
    %c0_109 = arith.constant 0 : index
    %393 = vector.load %arg6[%c0_108, %c0_109] : memref<1x5xf32, #tpu.memory_space<vmem>>, vector<1x5xf32>
    %394 = vector.broadcast %393 : vector<1x5xf32> to vector<64x5xf32>
    %395 = arith.addf %392, %394 : vector<64x5xf32>
    %c0_110 = arith.constant 0 : index
    %c0_111 = arith.constant 0 : index
    %396 = vector.load %arg7[%c0_110, %c0_111] : memref<64x5xf32, #tpu.memory_space<vmem>>, vector<64x5xf32>
    tpu.vector_store %arg7[%c0_110, %c0_111], %395 {strides = array<i32>} : memref<64x5xf32, #tpu.memory_space<vmem>>, vector<64x5xf32>,
    %397 = tpu.iota {dimensions = array<i32: 1>} : vector<64x5xi32>
    %cst_112 = arith.constant dense<0xFF800000> : vector<64xf32>
    %398 = vector.multi_reduction <maximumf>, %395, %cst_112 [1] : vector<64x5xf32> to vector<64xf32>
    %399 = vector.shape_cast %398 : vector<64xf32> to vector<64x1xf32>
    %400 = vector.broadcast %399 : vector<64x1xf32> to vector<64x5xf32>
    %401 = arith.cmpf oeq, %395, %400 : vector<64x5xf32>
    %c5_i32_113 = arith.constant 5 : i32
    %402 = vector.broadcast %c5_i32_113 : i32 to vector<64x5xi32>
    %403 = arith.select %401, %397, %402 : vector<64x5xi1>, vector<64x5xi32>
    %cst_114 = arith.constant dense<2147483647> : vector<64xi32>
    %404 = vector.multi_reduction <minsi>, %403, %cst_114 [1] : vector<64x5xi32> to vector<64xi32>
    %405 = vector.shape_cast %404 : vector<64xi32> to vector<64x1xi32>
    %c0_115 = arith.constant 0 : index
    %c0_116 = arith.constant 0 : index
    %406 = vector.load %arg8[%c0_115, %c0_116] : memref<64x1xi32, #tpu.memory_space<vmem>>, vector<64x1xi32>
    tpu.vector_store %arg8[%c0_115, %c0_116], %405 {strides = array<i32>} : memref<64x1xi32, #tpu.memory_space<vmem>>, vector<64x1xi32>,
    return
  }
  func.func @transform_0(%arg0: i32) -> (i32, i32) {
    %c0_i32 = arith.constant 0 : i32
    %c0_i32_0 = arith.constant 0 : i32
    %c0_i32_1 = arith.constant 0 : i32
    return %c0_i32, %c0_i32_0 : i32, i32
  }
  func.func @transform_1(%arg0: i32) -> (i32, i32) {
    %c0_i32 = arith.constant 0 : i32
    %c0_i32_0 = arith.constant 0 : i32
    %c0_i32_1 = arith.constant 0 : i32
    return %c0_i32, %c0_i32_0 : i32, i32
  }
  func.func @transform_2(%arg0: i32) -> (i32, i32) {
    %c0_i32 = arith.constant 0 : i32
    %c0_i32_0 = arith.constant 0 : i32
    %c0_i32_1 = arith.constant 0 : i32
    return %c0_i32, %c0_i32_0 : i32, i32
  }
  func.func @transform_3(%arg0: i32) -> (i32, i32) {
    %c0_i32 = arith.constant 0 : i32
    %c0_i32_0 = arith.constant 0 : i32
    %c0_i32_1 = arith.constant 0 : i32
    return %c0_i32, %c0_i32_0 : i32, i32
  }
  func.func @transform_4(%arg0: i32) -> (i32, i32) {
    %c0_i32 = arith.constant 0 : i32
    %c0_i32_0 = arith.constant 0 : i32
    %c0_i32_1 = arith.constant 0 : i32
    return %c0_i32, %c0_i32_0 : i32, i32
  }
  func.func @transform_5(%arg0: i32) -> (i32, i32) {
    %c0_i32 = arith.constant 0 : i32
    %c0_i32_0 = arith.constant 0 : i32
    %c0_i32_1 = arith.constant 0 : i32
    return %c0_i32, %c0_i32_0 : i32, i32
  }
  func.func @transform_6(%arg0: i32) -> (i32, i32) {
    %c0_i32 = arith.constant 0 : i32
    %c0_i32_0 = arith.constant 0 : i32
    %c0_i32_1 = arith.constant 0 : i32
    return %c0_i32, %c0_i32_0 : i32, i32
  }
  func.func @transform_7(%arg0: i32) -> (i32, i32) {
    %c0_i32 = arith.constant 0 : i32
    %c0_i32_0 = arith.constant 0 : i32
    %c0_i32_1 = arith.constant 0 : i32
    return %c0_i32, %c0_i32_0 : i32, i32
  }
}

</mosaic_0001>

<llo_original>
// kernel: predict.1
$region0: #{predict.1}
  #allocation0 [shape = 'u32[]', space=smem, size = 0x4, offset = 0x4, fixed_abs, tag = 'smem constant byte address 0x4 - core index']
  #allocation1 [shape = 'u32[144,128]{1,0:T(1,128)}', space=vmem, size = 0x12000, scoped, tag = 'internal scratch']
  #allocation2 [shape = 'f32[64,256]{1,0:T(8,128)}', space=vmem, size = 0x10000, scoped, tag = 'scratch operand']
  #allocation3 [shape = 'f32[64,32]{1,0:T(8,128)}', space=vmem, size = 0x8000, scoped, tag = 'scratch operand']
  #allocation4 [shape = 'f32[64,32]{1,0:T(8,128)}', space=vmem, size = 0x8000, scoped, tag = 'scratch operand']
  %s0 = inlined_call_operand.vmem [shape: f32[64,16], index: 0, kind: input, shape index: {}]
  %s1 = inlined_call_operand.vmem [shape: f32[16,256], index: 1, kind: input, shape index: {}]
  %s2 = inlined_call_operand.vmem [shape: f32[64,128], index: 2, kind: input, shape index: {}]
  %s3 = inlined_call_operand.vmem [shape: f32[1,256], index: 3, kind: input, shape index: {}]
  %s4 = inlined_call_operand.vmem [shape: f32[64,5], index: 4, kind: input, shape index: {}]
  %s5 = inlined_call_operand.vmem [shape: f32[1,5], index: 5, kind: input, shape index: {}]
  %s6 = inlined_call_operand.hbm [shape: f32[64,5], index: 6, kind: output, shape index: {0}]
  %s7 = inlined_call_operand.vmem [shape: s32[64,1], index: 7, kind: output, shape index: {1}]
  %8 = xla_tuple %s6, %s7
  %s9 = sld [smem:[#allocation0]]
  $region42: #{predict.1} parent=0
    _
  %s11 = ssub.s32 1, %s9
  %s12 = scalar_select 0, %s11, %s9
  $region1: #{predict.1} parent=0
    #allocation5 [shape = 'u8[32768]{0}', space=vmem, size = 0x8000, scoped, tag = 'output window, operand 0, single buffered']
    #allocation6 [shape = 's32[1]{0}', space=sflag, size = 0x4, scoped, tag = 'scoped memory for predict.1']
    %13 = vsyncpa [#allocation6], 0
    // Predicated region
    $region2: #{predict.1} parent=1 // pred_check
      _
    $region3: #{predict.1} parent=1 // pred_check_branch
      %15 = sbr.rel (0) target = $region5
    $region4: #{predict.1} parent=1 // pred_region
      _
    $region5: #{predict.1} parent=1 // pred_fallthru
      _
    // Predicated region
    $region6: #{predict.1} parent=1 // pred_check
      _
    $region7: #{predict.1} parent=1 // pred_check_branch
      %17 = sbr.rel (0) target = $region9
    $region8: #{predict.1} parent=1 // pred_region
      _
    $region9: #{predict.1} parent=1 // pred_fallthru
      _
    // Predicated region
    $region10: #{predict.1} parent=1 // pred_check
      _
    $region11: #{predict.1} parent=1 // pred_check_branch
      %19 = sbr.rel (0) target = $region13
    $region12: #{predict.1} parent=1 // pred_region
      _
    $region13: #{predict.1} parent=1 // pred_fallthru
      _
    // Predicated region
    $region14: #{predict.1} parent=1 // pred_check
      _
    $region15: #{predict.1} parent=1 // pred_check_branch
      %21 = sbr.rel (0) target = $region17
    $region16: #{predict.1} parent=1 // pred_region
      _
    $region17: #{predict.1} parent=1 // pred_fallthru
      _
    // Predicated region
    $region18: #{predict.1} parent=1 // pred_check
      _
    $region19: #{predict.1} parent=1 // pred_check_branch
      %23 = sbr.rel (0) target = $region21
    $region20: #{predict.1} parent=1 // pred_region
      _
    $region21: #{predict.1} parent=1 // pred_fallthru
      _
    // Predicated region
    $region22: #{predict.1} parent=1 // pred_check
      _
    $region23: #{predict.1} parent=1 // pred_check_branch
      %25 = sbr.rel (0) target = $region25
    $region24: #{predict.1} parent=1 // pred_region
      _
    $region25: #{predict.1} parent=1 // pred_fallthru
      _
    %v26 = vld [vmem:[%s0] sm:$0xff]
    %v27 = vld [vmem:[%s0 + $0x8] sm:$0xff]
    %v28 = vld [vmem:[%s0 + $0x10] sm:$0xff]
    %v29 = vld [vmem:[%s0 + $0x18] sm:$0xff]
    %v30 = vld [vmem:[%s0 + $0x20] sm:$0xff]
    %v31 = vld [vmem:[%s0 + $0x28] sm:$0xff]
    %v32 = vld [vmem:[%s0 + $0x30] sm:$0xff]
    %v33 = vld [vmem:[%s0 + $0x38] sm:$0xff]
    %v34 = vld [vmem:[%s1] sm:$0xff]
    %v35 = vld [vmem:[%s1 + $0x8] sm:$0xff]
    %v36 = vld [vmem:[%s1 + $0x10] sm:$0xff]
    %v37 = vld [vmem:[%s1 + $0x18] sm:$0xff]
    %v38 = vld [vmem:[%s3] sm:$0x3]
    %v40 = vlaneseq
    %v41 = vshrl.u32 %v40, 7
    %v42 = vsub.s32 0, %v41
    %v43 = vrot.slane %v38, %v42
    %v44 = vlaneseq
    %v45 = vshrl.u32 %v44, 7
    %v46 = vsub.s32 1, %v45
    %v47 = vrot.slane %v38, %v46
    %vm50 = vcmask 130048
    %v52 = vsel %vm50, %v26, 0
    %v55 = vsel %vm50, %v27, 0
    %v58 = vsel %vm50, %v28, 0
    %v61 = vsel %vm50, %v29, 0
    %v64 = vsel %vm50, %v30, 0
    %v67 = vsel %vm50, %v31, 0
    %v70 = vsel %vm50, %v32, 0
    %v73 = vsel %vm50, %v33, 0
    %75 = vmatprep.subr.mxu0 %v35
    %76 = vmatpush1.msra.mxu0 %v34
    %77 = vmatprep.subr.mxu0 %v37
    %78 = vmatpush1.msra.mxu0 %v36
    %79 = vmatprep.subr.mxu0 0.0
    %80 = vmatpush1.msra.mxu0 0.0
    %81 = vmatprep.subr.mxu0 0.0
    %82 = vmatpush1.msra.mxu0 0.0
    %83 = vmatprep.subr.mxu0 0.0
    %84 = vmatpush1.msra.mxu0 0.0
    %85 = vmatprep.subr.mxu0 0.0
    %86 = vmatpush1.msra.mxu0 0.0
    %87 = vmatprep.subr.mxu0 0.0
    %88 = vmatpush1.msra.mxu0 0.0
    %89 = vmatprep.subr.mxu0 0.0
    %90 = vmatpush1.msra.mxu0 0.0
    %91 = vmatprep.subr.mxu0 0.0
    %92 = vmatpush1.msra.mxu0 0.0
    %93 = vmatprep.subr.mxu0 0.0
    %94 = vmatpush1.msra.mxu0 0.0
    %95 = vmatprep.subr.mxu0 0.0
    %96 = vmatpush1.msra.mxu0 0.0
    %97 = vmatprep.subr.mxu0 0.0
    %98 = vmatpush1.msra.mxu0 0.0
    %99 = vmatprep.subr.mxu0 0.0
    %100 = vmatpush1.msra.mxu0 0.0
    %101 = vmatprep.subr.mxu0 0.0
    %102 = vmatpush1.msra.mxu0 0.0
    %103 = vmatprep.subr.mxu0 0.0
    %104 = vmatpush1.msra.mxu0 0.0
    %105 = vmatprep.subr.mxu0 0.0
    %106 = vmatpush1.msra.mxu0 0.0
    %107 = vmatprep.subr.mxu0 0.0
    %108 = vmatpush1.msra.mxu0 0.0
    %109 = vmatprep.subr.mxu0 0.0
    %110 = vmatpush1.msra.mxu0 0.0
    %111 = vmatprep.subr.mxu0 0.0
    %112 = vmatpush1.msra.mxu0 0.0
    %113 = vmatprep.subr.mxu0 0.0
    %114 = vmatpush1.msra.mxu0 0.0
    %115 = vmatprep.subr.mxu0 0.0
    %116 = vmatpush1.msra.mxu0 0.0
    %117 = vmatprep.subr.mxu0 0.0
    %118 = vmatpush1.msra.mxu0 0.0
    %119 = vmatprep.subr.mxu0 0.0
    %120 = vmatpush1.msra.mxu0 0.0
    %121 = vmatprep.subr.mxu0 0.0
    %122 = vmatpush1.msra.mxu0 0.0
    %123 = vmatprep.subr.mxu0 0.0
    %124 = vmatpush1.msra.mxu0 0.0
    %125 = vmatprep.subr.mxu0 0.0
    %126 = vmatpush1.msra.mxu0 0.0
    %127 = vmatprep.subr.mxu0 0.0
    %128 = vmatpush1.msra.mxu0 0.0
    %129 = vmatprep.subr.mxu0 0.0
    %130 = vmatpush1.msra.mxu0 0.0
    %131 = vmatprep.subr.mxu0 0.0
    %132 = vmatpush1.msra.mxu0 0.0
    %133 = vmatprep.subr.mxu0 0.0
    %134 = vmatpush1.msra.mxu0 0.0
    %135 = vmatprep.subr.mxu0 0.0
    %136 = vmatpush1.msra.mxu0 0.0
    %137 = vmatprep.subr.mxu0 0.0
    %138 = vmatpush1.msra.mxu0 0.0
    %139 = vmatprep.mubr.f32.mxu0 0.0
    %140 = vmatmul.mubr.f32.gmra.mrb[0].mxu0 %v52
    %v141 = vpop.f32.mrb[0].mxu0
    %v142 = vadd.f32 %v43, %v141
    %v143 = vpop.f32.mrb[0].mxu0
    %v144 = vadd.f32 %v47, %v143
    %145 = vmatprep.mubr.f32.mxu0 0.0
    %146 = vmatmul.mubr.f32.gmra.mrb[0].mxu0 %v55
    %v147 = vpop.f32.mrb[0].mxu0
    %v148 = vadd.f32 %v43, %v147
    %v149 = vpop.f32.mrb[0].mxu0
    %v150 = vadd.f32 %v47, %v149
    %151 = vmatprep.mubr.f32.mxu0 0.0
    %152 = vmatmul.mubr.f32.gmra.mrb[0].mxu0 %v58
    %v153 = vpop.f32.mrb[0].mxu0
    %v154 = vadd.f32 %v43, %v153
    %v155 = vpop.f32.mrb[0].mxu0
    %v156 = vadd.f32 %v47, %v155
    %157 = vmatprep.mubr.f32.mxu0 0.0
    %158 = vmatmul.mubr.f32.gmra.mrb[0].mxu0 %v61
    %v159 = vpop.f32.mrb[0].mxu0
    %v160 = vadd.f32 %v43, %v159
    %v161 = vpop.f32.mrb[0].mxu0
    %v162 = vadd.f32 %v47, %v161
    %163 = vmatprep.mubr.f32.mxu0 0.0
    %164 = vmatmul.mubr.f32.gmra.mrb[0].mxu0 %v64
    %v165 = vpop.f32.mrb[0].mxu0
    %v166 = vadd.f32 %v43, %v165
    %v167 = vpop.f32.mrb[0].mxu0
    %v168 = vadd.f32 %v47, %v167
    %169 = vmatprep.mubr.f32.mxu0 0.0
    %170 = vmatmul.mubr.f32.gmra.mrb[0].mxu0 %v67
    %v171 = vpop.f32.mrb[0].mxu0
    %v172 = vadd.f32 %v43, %v171
    %v173 = vpop.f32.mrb[0].mxu0
    %v174 = vadd.f32 %v47, %v173
    %175 = vmatprep.mubr.f32.mxu0 0.0
    %176 = vmatmul.mubr.f32.gmra.mrb[0].mxu0 %v70
    %v177 = vpop.f32.mrb[0].mxu0
    %v178 = vadd.f32 %v43, %v177
    %v179 = vpop.f32.mrb[0].mxu0
    %v180 = vadd.f32 %v47, %v179
    %181 = vmatprep.mubr.f32.mxu0 0.0
    %182 = vmatmul.mubr.f32.gmra.mrb[0].mxu0 %v73
    %v183 = vpop.f32.mrb[0].mxu0
    %v184 = vadd.f32 %v43, %v183
    %v185 = vpop.f32.mrb[0].mxu0
    %v186 = vadd.f32 %v47, %v185
    %187 = vdwg.mxu0
    %188 = vst [vmem:[#allocation2] sm:$0xff] %v142
    %189 = vst [vmem:[#allocation2 + $0x8] sm:$0xff] %v144
    %190 = vst [vmem:[#allocation2 + $0x10] sm:$0xff] %v148
    %191 = vst [vmem:[#allocation2 + $0x18] sm:$0xff] %v150
    %192 = vst [vmem:[#allocation2 + $0x20] sm:$0xff] %v154
    %193 = vst [vmem:[#allocation2 + $0x28] sm:$0xff] %v156
    %194 = vst [vmem:[#allocation2 + $0x30] sm:$0xff] %v160
    %195 = vst [vmem:[#allocation2 + $0x38] sm:$0xff] %v162
    %196 = vst [vmem:[#allocation2 + $0x40] sm:$0xff] %v166
    %197 = vst [vmem:[#allocation2 + $0x48] sm:$0xff] %v168
    %198 = vst [vmem:[#allocation2 + $0x50] sm:$0xff] %v172
    %199 = vst [vmem:[#allocation2 + $0x58] sm:$0xff] %v174
    %200 = vst [vmem:[#allocation2 + $0x60] sm:$0xff] %v178
    %201 = vst [vmem:[#allocation2 + $0x68] sm:$0xff] %v180
    %202 = vst [vmem:[#allocation2 + $0x70] sm:$0xff] %v184
    %203 = vst [vmem:[#allocation2 + $0x78] sm:$0xff] %v186
    %v204 = vld [vmem:[%s2] sm:$0xff]
    %v205 = vld [vmem:[%s2 + $0x8] sm:$0xff]
    %v206 = vld [vmem:[%s2 + $0x10] sm:$0xff]
    %v207 = vld [vmem:[%s2 + $0x18] sm:$0xff]
    %v208 = vld [vmem:[%s2 + $0x20] sm:$0xff]
    %v209 = vld [vmem:[%s2 + $0x28] sm:$0xff]
    %v210 = vld [vmem:[%s2 + $0x30] sm:$0xff]
    %v211 = vld [vmem:[%s2 + $0x38] sm:$0xff]
    %s212 = smul.u32 0, 2
    %s213 = smul.addr %s212, 8
    %s214 = scalar_lea.vmem [#allocation2], %s213
    %v215 = vld [vmem:[%s214] sm:$0xff]
    %vm216 = vcmask 261120
    %v218 = vsel %vm216, 0.0, 0
    %220 = vmatprep.subr.mxu0 0.0
    %221 = vmatpush1.msra.mxu0 %v204
    %222 = vmatprep.subr.mxu0 0.0
    %223 = vmatpush1.msra.mxu0 %v205
    %224 = vmatprep.subr.mxu0 0.0
    %225 = vmatpush1.msra.mxu0 %v206
    %226 = vmatprep.subr.mxu0 0.0
    %227 = vmatpush1.msra.mxu0 %v207
    %228 = vmatprep.subr.mxu0 0.0
    %229 = vmatpush1.msra.mxu0 0.0
    %230 = vmatprep.subr.mxu0 0.0
    %231 = vmatpush1.msra.mxu0 0.0
    %232 = vmatprep.subr.mxu0 0.0
    %233 = vmatpush1.msra.mxu0 0.0
    %234 = vmatprep.subr.mxu0 0.0
    %235 = vmatpush1.msra.mxu0 0.0
    %236 = vmatprep.subr.mxu0 0.0
    %237 = vmatpush1.msra.mxu0 0.0
    %238 = vmatprep.subr.mxu0 0.0
    %239 = vmatpush1.msra.mxu0 0.0
    %240 = vmatprep.subr.mxu0 0.0
    %241 = vmatpush1.msra.mxu0 0.0
    %242 = vmatprep.subr.mxu0 0.0
    %243 = vmatpush1.msra.mxu0 0.0
    %244 = vmatprep.subr.mxu0 0.0
    %245 = vmatpush1.msra.mxu0 0.0
    %246 = vmatprep.subr.mxu0 0.0
    %247 = vmatpush1.msra.mxu0 0.0
    %248 = vmatprep.subr.mxu0 0.0
    %249 = vmatpush1.msra.mxu0 0.0
    %250 = vmatprep.subr.mxu0 0.0
    %251 = vmatpush1.msra.mxu0 0.0
    %252 = vmatprep.subr.mxu0 0.0
    %253 = vmatpush1.msra.mxu0 0.0
    %254 = vmatprep.subr.mxu0 0.0
    %255 = vmatpush1.msra.mxu0 0.0
    %256 = vmatprep.subr.mxu0 0.0
    %257 = vmatpush1.msra.mxu0 0.0
    %258 = vmatprep.subr.mxu0 0.0
    %259 = vmatpush1.msra.mxu0 0.0
    %260 = vmatprep.subr.mxu0 0.0
    %261 = vmatpush1.msra.mxu0 0.0
    %262 = vmatprep.subr.mxu0 0.0
    %263 = vmatpush1.msra.mxu0 0.0
    %264 = vmatprep.subr.mxu0 0.0
    %265 = vmatpush1.msra.mxu0 0.0
    %266 = vmatprep.subr.mxu0 0.0
    %267 = vmatpush1.msra.mxu0 0.0
    %268 = vmatprep.subr.mxu0 0.0
    %269 = vmatpush1.msra.mxu0 0.0
    %270 = vmatprep.subr.mxu0 0.0
    %271 = vmatpush1.msra.mxu0 0.0
    %272 = vmatprep.subr.mxu0 0.0
    %273 = vmatpush1.msra.mxu0 0.0
    %274 = vmatprep.subr.mxu0 0.0
    %275 = vmatpush1.msra.mxu0 0.0
    %276 = vmatprep.subr.mxu0 0.0
    %277 = vmatpush1.msra.mxu0 0.0
    %278 = vmatprep.subr.mxu0 0.0
    %279 = vmatpush1.msra.mxu0 0.0
    %280 = vmatprep.subr.mxu0 0.0
    %281 = vmatpush1.msra.mxu0 0.0
    %282 = vmatprep.subr.mxu0 0.0
    %283 = vmatpush1.msra.mxu0 0.0
    %284 = vmatprep.mubr.f32.mxu0 0.0
    %285 = vmatmul.mubr.f32.gmra.mrb[0].mxu0 %v218
    %v286 = vpop.f32.mrb[0].mxu0
    %v287 = vadd.f32 0.0, %v286
    %v288 = vpop.f32.mrb[0].mxu0
    %289 = vdwg.mxu0
    %v290 = vadd.f32 %v215, %v287
    %s291 = smul.u32 7, 2
    %s292 = smul.addr %s291, 8
    %s293 = scalar_lea.vmem [#allocation2], %s292
    %v294 = vld [vmem:[%s293 + $0x8] sm:$0xff]
    %295 = vmatprep.subr.mxu0 0.0
    %296 = vmatpush1.msra.mxu0 %v208
    %297 = vmatprep.subr.mxu0 0.0
    %298 = vmatpush1.msra.mxu0 %v209
    %299 = vmatprep.subr.mxu0 0.0
    %300 = vmatpush1.msra.mxu0 %v210
    %301 = vmatprep.subr.mxu0 0.0
    %302 = vmatpush1.msra.mxu0 %v211
    %303 = vmatprep.subr.mxu0 0.0
    %304 = vmatpush1.msra.mxu0 0.0
    %305 = vmatprep.subr.mxu0 0.0
    %306 = vmatpush1.msra.mxu0 0.0
    %307 = vmatprep.subr.mxu0 0.0
    %308 = vmatpush1.msra.mxu0 0.0
    %309 = vmatprep.subr.mxu0 0.0
    %310 = vmatpush1.msra.mxu0 0.0
    %311 = vmatprep.subr.mxu0 0.0
    %312 = vmatpush1.msra.mxu0 0.0
    %313 = vmatprep.subr.mxu0 0.0
    %314 = vmatpush1.msra.mxu0 0.0
    %315 = vmatprep.subr.mxu0 0.0
    %316 = vmatpush1.msra.mxu0 0.0
    %317 = vmatprep.subr.mxu0 0.0
    %318 = vmatpush1.msra.mxu0 0.0
    %319 = vmatprep.subr.mxu0 0.0
    %320 = vmatpush1.msra.mxu0 0.0
    %321 = vmatprep.subr.mxu0 0.0
    %322 = vmatpush1.msra.mxu0 0.0
    %323 = vmatprep.subr.mxu0 0.0
    %324 = vmatpush1.msra.mxu0 0.0
    %325 = vmatprep.subr.mxu0 0.0
    %326 = vmatpush1.msra.mxu0 0.0
    %327 = vmatprep.subr.mxu0 0.0
    %328 = vmatpush1.msra.mxu0 0.0
    %329 = vmatprep.subr.mxu0 0.0
    %330 = vmatpush1.msra.mxu0 0.0
    %331 = vmatprep.subr.mxu0 0.0
    %332 = vmatpush1.msra.mxu0 0.0
    %333 = vmatprep.subr.mxu0 0.0
    %334 = vmatpush1.msra.mxu0 0.0
    %335 = vmatprep.subr.mxu0 0.0
    %336 = vmatpush1.msra.mxu0 0.0
    %337 = vmatprep.subr.mxu0 0.0
    %338 = vmatpush1.msra.mxu0 0.0
    %339 = vmatprep.subr.mxu0 0.0
    %340 = vmatpush1.msra.mxu0 0.0
    %341 = vmatprep.subr.mxu0 0.0
    %342 = vmatpush1.msra.mxu0 0.0
    %343 = vmatprep.subr.mxu0 0.0
    %344 = vmatpush1.msra.mxu0 0.0
    %345 = vmatprep.subr.mxu0 0.0
    %346 = vmatpush1.msra.mxu0 0.0
    %347 = vmatprep.subr.mxu0 0.0
    %348 = vmatpush1.msra.mxu0 0.0
    %349 = vmatprep.subr.mxu0 0.0
    %350 = vmatpush1.msra.mxu0 0.0
    %351 = vmatprep.subr.mxu0 0.0
    %352 = vmatpush1.msra.mxu0 0.0
    %353 = vmatprep.subr.mxu0 0.0
    %354 = vmatpush1.msra.mxu0 0.0
    %355 = vmatprep.subr.mxu0 0.0
    %356 = vmatpush1.msra.mxu0 0.0
    %357 = vmatprep.subr.mxu0 0.0
    %358 = vmatpush1.msra.mxu0 0.0
    %359 = vmatprep.mubr.f32.mxu0 0.0
    %360 = vmatmul.mubr.f32.gmra.mrb[0].mxu0 %v218
    %v361 = vpop.f32.mrb[0].mxu0
    %v362 = vadd.f32 0.0, %v361
    %v363 = vpop.f32.mrb[0].mxu0
    %364 = vdwg.mxu0
    %v365 = vadd.f32 %v294, %v362
    %v366 = vxor.u32 %v290, 2147483648
    %v367 = vmul.f32 %v366, 1.442695
    %v368 = vpow.pop %v367
    %v369 = vadd.f32 %v368, 1.0
    %v370 = vrcp.pop %v369
    %v371 = vmul.f32 1.0, %v370
    %v372 = vtanh.pop %v290
    %v373 = vxor.u32 %v365, 2147483648
    %v374 = vmul.f32 %v373, 1.442695
    %v375 = vpow.pop %v374
    %v376 = vadd.f32 %v375, 1.0
    %v377 = vrcp.pop %v376
    %v378 = vmul.f32 1.0, %v377
    %v379 = vtanh.pop %v365
    %v380 = vmul.f32 %v371, 0.0
    %382 = vrot.lane.b32.xlu0 %v372, 64
    %v383 = vpop.permute.xlu0 %382
    %v385 = vmul.f32 %v371, %v383
    %387 = vrot.lane.b32.xlu0 %v385, 32
    %v388 = vpop.permute.xlu0 %387
    %v390 = vadd.f32 %v380, %v388
    %v391 = vmul.f32 %v378, 0.0
    %393 = vrot.lane.b32.xlu0 %v379, 64
    %v394 = vpop.permute.xlu0 %393
    %v396 = vmul.f32 %v378, %v394
    %398 = vrot.lane.b32.xlu0 %v396, 32
    %v399 = vpop.permute.xlu0 %398
    %v401 = vadd.f32 %v391, %v399
    %v402 = vtanh.pop %v390
    %404 = vrot.lane.b32.xlu0 %v402, 64
    %v405 = vpop.permute.xlu0 %404
    %v407 = vmul.f32 %v371, %v405
    %v408 = vtanh.pop %v401
    %410 = vrot.lane.b32.xlu0 %v408, 64
    %v411 = vpop.permute.xlu0 %410
    %v413 = vmul.f32 %v378, %v411
    %415 = vrot.lane.b32.xlu0 %v407, 32
    %v416 = vpop.permute.xlu0 %415
    %418 = vst.msk [vmem:[#allocation3] sm:$0xff] %vm216, %v416
    %420 = vrot.lane.b32.xlu0 %v413, 32
    %v421 = vpop.permute.xlu0 %420
    %s423 = scalar_lea.vmem [#allocation4], 56
    %424 = vst.msk [vmem:[%s423] sm:$0xff] %vm216, %v421
    %s425 = smul.u32 1, 2
    %s426 = smul.addr %s425, 8
    %s427 = scalar_lea.vmem [#allocation2], %s426
    %v428 = vld [vmem:[%s427] sm:$0xff]
    %v429 = vsel %vm216, %v416, 0
    %431 = vmatprep.subr.mxu0 0.0
    %432 = vmatpush1.msra.mxu0 %v204
    %433 = vmatprep.subr.mxu0 0.0
    %434 = vmatpush1.msra.mxu0 %v205
    %435 = vmatprep.subr.mxu0 0.0
    %436 = vmatpush1.msra.mxu0 %v206
    %437 = vmatprep.subr.mxu0 0.0
    %438 = vmatpush1.msra.mxu0 %v207
    %439 = vmatprep.subr.mxu0 0.0
    %440 = vmatpush1.msra.mxu0 0.0
    %441 = vmatprep.subr.mxu0 0.0
    %442 = vmatpush1.msra.mxu0 0.0
    %443 = vmatprep.subr.mxu0 0.0
    %444 = vmatpush1.msra.mxu0 0.0
    %445 = vmatprep.subr.mxu0 0.0
    %446 = vmatpush1.msra.mxu0 0.0
    %447 = vmatprep.subr.mxu0 0.0
    %448 = vmatpush1.msra.mxu0 0.0
    %449 = vmatprep.subr.mxu0 0.0
    %450 = vmatpush1.msra.mxu0 0.0
    %451 = vmatprep.subr.mxu0 0.0
    %452 = vmatpush1.msra.mxu0 0.0
    %453 = vmatprep.subr.mxu0 0.0
    %454 = vmatpush1.msra.mxu0 0.0
    %455 = vmatprep.subr.mxu0 0.0
    %456 = vmatpush1.msra.mxu0 0.0
    %457 = vmatprep.subr.mxu0 0.0
    %458 = vmatpush1.msra.mxu0 0.0
    %459 = vmatprep.subr.mxu0 0.0
    %460 = vmatpush1.msra.mxu0 0.0
    %461 = vmatprep.subr.mxu0 0.0
    %462 = vmatpush1.msra.mxu0 0.0
    %463 = vmatprep.subr.mxu0 0.0
    %464 = vmatpush1.msra.mxu0 0.0
    %465 = vmatprep.subr.mxu0 0.0
    %466 = vmatpush1.msra.mxu0 0.0
    %467 = vmatprep.subr.mxu0 0.0
    %468 = vmatpush1.msra.mxu0 0.0
    %469 = vmatprep.subr.mxu0 0.0
    %470 = vmatpush1.msra.mxu0 0.0
    %471 = vmatprep.subr.mxu0 0.0
    %472 = vmatpush1.msra.mxu0 0.0
    %473 = vmatprep.subr.mxu0 0.0
    %474 = vmatpush1.msra.mxu0 0.0
    %475 = vmatprep.subr.mxu0 0.0
    %476 = vmatpush1.msra.mxu0 0.0
    %477 = vmatprep.subr.mxu0 0.0
    %478 = vmatpush1.msra.mxu0 0.0
    %479 = vmatprep.subr.mxu0 0.0
    %480 = vmatpush1.msra.mxu0 0.0
    %481 = vmatprep.subr.mxu0 0.0
    %482 = vmatpush1.msra.mxu0 0.0
    %483 = vmatprep.subr.mxu0 0.0
    %484 = vmatpush1.msra.mxu0 0.0
    %485 = vmatprep.subr.mxu0 0.0
    %486 = vmatpush1.msra.mxu0 0.0
    %487 = vmatprep.subr.mxu0 0.0
    %488 = vmatpush1.msra.mxu0 0.0
    %489 = vmatprep.subr.mxu0 0.0
    %490 = vmatpush1.msra.mxu0 0.0
    %491 = vmatprep.subr.mxu0 0.0
    %492 = vmatpush1.msra.mxu0 0.0
    %493 = vmatprep.subr.mxu0 0.0
    %494 = vmatpush1.msra.mxu0 0.0
    %495 = vmatprep.mubr.f32.mxu0 0.0
    %496 = vmatmul.mubr.f32.gmra.mrb[0].mxu0 %v429
    %v497 = vpop.f32.mrb[0].mxu0
    %v498 = vadd.f32 0.0, %v497
    %v499 = vpop.f32.mrb[0].mxu0
    %500 = vdwg.mxu0
    %v501 = vadd.f32 %v428, %v498
    %s502 = smul.u32 6, 2
    %s503 = smul.addr %s502, 8
    %s504 = scalar_lea.vmem [#allocation2], %s503
    %v505 = vld [vmem:[%s504 + $0x8] sm:$0xff]
    %v506 = vsel %vm216, %v421, 0
    %508 = vmatprep.subr.mxu0 0.0
    %509 = vmatpush1.msra.mxu0 %v208
    %510 = vmatprep.subr.mxu0 0.0
    %511 = vmatpush1.msra.mxu0 %v209
    %512 = vmatprep.subr.mxu0 0.0
    %513 = vmatpush1.msra.mxu0 %v210
    %514 = vmatprep.subr.mxu0 0.0
    %515 = vmatpush1.msra.mxu0 %v211
    %516 = vmatprep.subr.mxu0 0.0
    %517 = vmatpush1.msra.mxu0 0.0
    %518 = vmatprep.subr.mxu0 0.0
    %519 = vmatpush1.msra.mxu0 0.0
    %520 = vmatprep.subr.mxu0 0.0
    %521 = vmatpush1.msra.mxu0 0.0
    %522 = vmatprep.subr.mxu0 0.0
    %523 = vmatpush1.msra.mxu0 0.0
    %524 = vmatprep.subr.mxu0 0.0
    %525 = vmatpush1.msra.mxu0 0.0
    %526 = vmatprep.subr.mxu0 0.0
    %527 = vmatpush1.msra.mxu0 0.0
    %528 = vmatprep.subr.mxu0 0.0
    %529 = vmatpush1.msra.mxu0 0.0
    %530 = vmatprep.subr.mxu0 0.0
    %531 = vmatpush1.msra.mxu0 0.0
    %532 = vmatprep.subr.mxu0 0.0
    %533 = vmatpush1.msra.mxu0 0.0
    %534 = vmatprep.subr.mxu0 0.0
    %535 = vmatpush1.msra.mxu0 0.0
    %536 = vmatprep.subr.mxu0 0.0
    %537 = vmatpush1.msra.mxu0 0.0
    %538 = vmatprep.subr.mxu0 0.0
    %539 = vmatpush1.msra.mxu0 0.0
    %540 = vmatprep.subr.mxu0 0.0
    %541 = vmatpush1.msra.mxu0 0.0
    %542 = vmatprep.subr.mxu0 0.0
    %543 = vmatpush1.msra.mxu0 0.0
    %544 = vmatprep.subr.mxu0 0.0
    %545 = vmatpush1.msra.mxu0 0.0
    %546 = vmatprep.subr.mxu0 0.0
    %547 = vmatpush1.msra.mxu0 0.0
    %548 = vmatprep.subr.mxu0 0.0
    %549 = vmatpush1.msra.mxu0 0.0
    %550 = vmatprep.subr.mxu0 0.0
    %551 = vmatpush1.msra.mxu0 0.0
    %552 = vmatprep.subr.mxu0 0.0
    %553 = vmatpush1.msra.mxu0 0.0
    %554 = vmatprep.subr.mxu0 0.0
    %555 = vmatpush1.msra.mxu0 0.0
    %556 = vmatprep.subr.mxu0 0.0
    %557 = vmatpush1.msra.mxu0 0.0
    %558 = vmatprep.subr.mxu0 0.0
    %559 = vmatpush1.msra.mxu0 0.0
    %560 = vmatprep.subr.mxu0 0.0
    %561 = vmatpush1.msra.mxu0 0.0
    %562 = vmatprep.subr.mxu0 0.0
    %563 = vmatpush1.msra.mxu0 0.0
    %564 = vmatprep.subr.mxu0 0.0
    %565 = vmatpush1.msra.mxu0 0.0
    %566 = vmatprep.subr.mxu0 0.0
    %567 = vmatpush1.msra.mxu0 0.0
    %568 = vmatprep.subr.mxu0 0.0
    %569 = vmatpush1.msra.mxu0 0.0
    %570 = vmatprep.subr.mxu0 0.0
    %571 = vmatpush1.msra.mxu0 0.0
    %572 = vmatprep.mubr.f32.mxu0 0.0
    %573 = vmatmul.mubr.f32.gmra.mrb[0].mxu0 %v506
    %v574 = vpop.f32.mrb[0].mxu0
    %v575 = vadd.f32 0.0, %v574
    %v576 = vpop.f32.mrb[0].mxu0
    %577 = vdwg.mxu0
    %v578 = vadd.f32 %v505, %v575
    %v579 = vxor.u32 %v501, 2147483648
    %v580 = vmul.f32 %v579, 1.442695
    %v581 = vpow.pop %v580
    %v582 = vadd.f32 %v581, 1.0
    %v583 = vrcp.pop %v582
    %v584 = vmul.f32 1.0, %v583
    %v585 = vtanh.pop %v501
    %v586 = vxor.u32 %v578, 2147483648
    %v587 = vmul.f32 %v586, 1.442695
    %v588 = vpow.pop %v587
    %v589 = vadd.f32 %v588, 1.0
    %v590 = vrcp.pop %v589
    %v591 = vmul.f32 1.0, %v590
    %v592 = vtanh.pop %v578
    %v593 = vmul.f32 %v584, %v390
    %595 = vrot.lane.b32.xlu0 %v585, 64
    %v596 = vpop.permute.xlu0 %595
    %v598 = vmul.f32 %v584, %v596
    %600 = vrot.lane.b32.xlu0 %v598, 32
    %v601 = vpop.permute.xlu0 %600
    %v603 = vadd.f32 %v593, %v601
    %v604 = vmul.f32 %v591, %v401
    %606 = vrot.lane.b32.xlu0 %v592, 64
    %v607 = vpop.permute.xlu0 %606
    %v609 = vmul.f32 %v591, %v607
    %611 = vrot.lane.b32.xlu0 %v609, 32
    %v612 = vpop.permute.xlu0 %611
    %v614 = vadd.f32 %v604, %v612
    %v615 = vtanh.pop %v603
    %617 = vrot.lane.b32.xlu0 %v615, 64
    %v618 = vpop.permute.xlu0 %617
    %v620 = vmul.f32 %v584, %v618
    %v621 = vtanh.pop %v614
    %623 = vrot.lane.b32.xlu0 %v621, 64
    %v624 = vpop.permute.xlu0 %623
    %v626 = vmul.f32 %v591, %v624
    %628 = vrot.lane.b32.xlu0 %v620, 32
    %v629 = vpop.permute.xlu0 %628
    %s631 = scalar_lea.vmem [#allocation3], 8
    %632 = vst.msk [vmem:[%s631] sm:$0xff] %vm216, %v629
    %634 = vrot.lane.b32.xlu0 %v626, 32
    %v635 = vpop.permute.xlu0 %634
    %s637 = scalar_lea.vmem [#allocation4], 48
    %638 = vst.msk [vmem:[%s637] sm:$0xff] %vm216, %v635
    %s639 = smul.u32 2, 2
    %s640 = smul.addr %s639, 8
    %s641 = scalar_lea.vmem [#allocation2], %s640
    %v642 = vld [vmem:[%s641] sm:$0xff]
    %v643 = vsel %vm216, %v629, 0
    %645 = vmatprep.subr.mxu0 0.0
    %646 = vmatpush1.msra.mxu0 %v204
    %647 = vmatprep.subr.mxu0 0.0
    %648 = vmatpush1.msra.mxu0 %v205
    %649 = vmatprep.subr.mxu0 0.0
    %650 = vmatpush1.msra.mxu0 %v206
    %651 = vmatprep.subr.mxu0 0.0
    %652 = vmatpush1.msra.mxu0 %v207
    %653 = vmatprep.subr.mxu0 0.0
    %654 = vmatpush1.msra.mxu0 0.0
    %655 = vmatprep.subr.mxu0 0.0
    %656 = vmatpush1.msra.mxu0 0.0
    %657 = vmatprep.subr.mxu0 0.0
    %658 = vmatpush1.msra.mxu0 0.0
    %659 = vmatprep.subr.mxu0 0.0
    %660 = vmatpush1.msra.mxu0 0.0
    %661 = vmatprep.subr.mxu0 0.0
    %662 = vmatpush1.msra.mxu0 0.0
    %663 = vmatprep.subr.mxu0 0.0
    %664 = vmatpush1.msra.mxu0 0.0
    %665 = vmatprep.subr.mxu0 0.0
    %666 = vmatpush1.msra.mxu0 0.0
    %667 = vmatprep.subr.mxu0 0.0
    %668 = vmatpush1.msra.mxu0 0.0
    %669 = vmatprep.subr.mxu0 0.0
    %670 = vmatpush1.msra.mxu0 0.0
    %671 = vmatprep.subr.mxu0 0.0
    %672 = vmatpush1.msra.mxu0 0.0
    %673 = vmatprep.subr.mxu0 0.0
    %674 = vmatpush1.msra.mxu0 0.0
    %675 = vmatprep.subr.mxu0 0.0
    %676 = vmatpush1.msra.mxu0 0.0
    %677 = vmatprep.subr.mxu0 0.0
    %678 = vmatpush1.msra.mxu0 0.0
    %679 = vmatprep.subr.mxu0 0.0
    %680 = vmatpush1.msra.mxu0 0.0
    %681 = vmatprep.subr.mxu0 0.0
    %682 = vmatpush1.msra.mxu0 0.0
    %683 = vmatprep.subr.mxu0 0.0
    %684 = vmatpush1.msra.mxu0 0.0
    %685 = vmatprep.subr.mxu0 0.0
    %686 = vmatpush1.msra.mxu0 0.0
    %687 = vmatprep.subr.mxu0 0.0
    %688 = vmatpush1.msra.mxu0 0.0
    %689 = vmatprep.subr.mxu0 0.0
    %690 = vmatpush1.msra.mxu0 0.0
    %691 = vmatprep.subr.mxu0 0.0
    %692 = vmatpush1.msra.mxu0 0.0
    %693 = vmatprep.subr.mxu0 0.0
    %694 = vmatpush1.msra.mxu0 0.0
    %695 = vmatprep.subr.mxu0 0.0
    %696 = vmatpush1.msra.mxu0 0.0
    %697 = vmatprep.subr.mxu0 0.0
    %698 = vmatpush1.msra.mxu0 0.0
    %699 = vmatprep.subr.mxu0 0.0
    %700 = vmatpush1.msra.mxu0 0.0
    %701 = vmatprep.subr.mxu0 0.0
    %702 = vmatpush1.msra.mxu0 0.0
    %703 = vmatprep.subr.mxu0 0.0
    %704 = vmatpush1.msra.mxu0 0.0
    %705 = vmatprep.subr.mxu0 0.0
    %706 = vmatpush1.msra.mxu0 0.0
    %707 = vmatprep.subr.mxu0 0.0
    %708 = vmatpush1.msra.mxu0 0.0
    %709 = vmatprep.mubr.f32.mxu0 0.0
    %710 = vmatmul.mubr.f32.gmra.mrb[0].mxu0 %v643
    %v711 = vpop.f32.mrb[0].mxu0
    %v712 = vadd.f32 0.0, %v711
    %v713 = vpop.f32.mrb[0].mxu0
    %714 = vdwg.mxu0
    %v715 = vadd.f32 %v642, %v712
    %s716 = smul.u32 5, 2
    %s717 = smul.addr %s716, 8
    %s718 = scalar_lea.vmem [#allocation2], %s717
    %v719 = vld [vmem:[%s718 + $0x8] sm:$0xff]
    %v720 = vsel %vm216, %v635, 0
    %722 = vmatprep.subr.mxu0 0.0
    %723 = vmatpush1.msra.mxu0 %v208
    %724 = vmatprep.subr.mxu0 0.0
    %725 = vmatpush1.msra.mxu0 %v209
    %726 = vmatprep.subr.mxu0 0.0
    %727 = vmatpush1.msra.mxu0 %v210
    %728 = vmatprep.subr.mxu0 0.0
    %729 = vmatpush1.msra.mxu0 %v211
    %730 = vmatprep.subr.mxu0 0.0
    %731 = vmatpush1.msra.mxu0 0.0
    %732 = vmatprep.subr.mxu0 0.0
    %733 = vmatpush1.msra.mxu0 0.0
    %734 = vmatprep.subr.mxu0 0.0
    %735 = vmatpush1.msra.mxu0 0.0
    %736 = vmatprep.subr.mxu0 0.0
    %737 = vmatpush1.msra.mxu0 0.0
    %738 = vmatprep.subr.mxu0 0.0
    %739 = vmatpush1.msra.mxu0 0.0
    %740 = vmatprep.subr.mxu0 0.0
    %741 = vmatpush1.msra.mxu0 0.0
    %742 = vmatprep.subr.mxu0 0.0
    %743 = vmatpush1.msra.mxu0 0.0
    %744 = vmatprep.subr.mxu0 0.0
    %745 = vmatpush1.msra.mxu0 0.0
    %746 = vmatprep.subr.mxu0 0.0
    %747 = vmatpush1.msra.mxu0 0.0
    %748 = vmatprep.subr.mxu0 0.0
    %749 = vmatpush1.msra.mxu0 0.0
    %750 = vmatprep.subr.mxu0 0.0
    %751 = vmatpush1.msra.mxu0 0.0
    %752 = vmatprep.subr.mxu0 0.0
    %753 = vmatpush1.msra.mxu0 0.0
    %754 = vmatprep.subr.mxu0 0.0
    %755 = vmatpush1.msra.mxu0 0.0
    %756 = vmatprep.subr.mxu0 0.0
    %757 = vmatpush1.msra.mxu0 0.0
    %758 = vmatprep.subr.mxu0 0.0
    %759 = vmatpush1.msra.mxu0 0.0
    %760 = vmatprep.subr.mxu0 0.0
    %761 = vmatpush1.msra.mxu0 0.0
    %762 = vmatprep.subr.mxu0 0.0
    %763 = vmatpush1.msra.mxu0 0.0
    %764 = vmatprep.subr.mxu0 0.0
    %765 = vmatpush1.msra.mxu0 0.0
    %766 = vmatprep.subr.mxu0 0.0
    %767 = vmatpush1.msra.mxu0 0.0
    %768 = vmatprep.subr.mxu0 0.0
    %769 = vmatpush1.msra.mxu0 0.0
    %770 = vmatprep.subr.mxu0 0.0
    %771 = vmatpush1.msra.mxu0 0.0
    %772 = vmatprep.subr.mxu0 0.0
    %773 = vmatpush1.msra.mxu0 0.0
    %774 = vmatprep.subr.mxu0 0.0
    %775 = vmatpush1.msra.mxu0 0.0
    %776 = vmatprep.subr.mxu0 0.0
    %777 = vmatpush1.msra.mxu0 0.0
    %778 = vmatprep.subr.mxu0 0.0
    %779 = vmatpush1.msra.mxu0 0.0
    %780 = vmatprep.subr.mxu0 0.0
    %781 = vmatpush1.msra.mxu0 0.0
    %782 = vmatprep.subr.mxu0 0.0
    %783 = vmatpush1.msra.mxu0 0.0
    %784 = vmatprep.subr.mxu0 0.0
    %785 = vmatpush1.msra.mxu0 0.0
    %786 = vmatprep.mubr.f32.mxu0 0.0
    %787 = vmatmul.mubr.f32.gmra.mrb[0].mxu0 %v720
    %v788 = vpop.f32.mrb[0].mxu0
    %v789 = vadd.f32 0.0, %v788
    %v790 = vpop.f32.mrb[0].mxu0
    %791 = vdwg.mxu0
    %v792 = vadd.f32 %v719, %v789
    %v793 = vxor.u32 %v715, 2147483648
    %v794 = vmul.f32 %v793, 1.442695
    %v795 = vpow.pop %v794
    %v796 = vadd.f32 %v795, 1.0
    %v797 = vrcp.pop %v796
    %v798 = vmul.f32 1.0, %v797
    %v799 = vtanh.pop %v715
    %v800 = vxor.u32 %v792, 2147483648
    %v801 = vmul.f32 %v800, 1.442695
    %v802 = vpow.pop %v801
    %v803 = vadd.f32 %v802, 1.0
    %v804 = vrcp.pop %v803
    %v805 = vmul.f32 1.0, %v804
    %v806 = vtanh.pop %v792
    %v807 = vmul.f32 %v798, %v603
    %809 = vrot.lane.b32.xlu0 %v799, 64
    %v810 = vpop.permute.xlu0 %809
    %v812 = vmul.f32 %v798, %v810
    %814 = vrot.lane.b32.xlu0 %v812, 32
    %v815 = vpop.permute.xlu0 %814
    %v817 = vadd.f32 %v807, %v815
    %v818 = vmul.f32 %v805, %v614
    %820 = vrot.lane.b32.xlu0 %v806, 64
    %v821 = vpop.permute.xlu0 %820
    %v823 = vmul.f32 %v805, %v821
    %825 = vrot.lane.b32.xlu0 %v823, 32
    %v826 = vpop.permute.xlu0 %825
    %v828 = vadd.f32 %v818, %v826
    %v829 = vtanh.pop %v817
    %831 = vrot.lane.b32.xlu0 %v829, 64
    %v832 = vpop.permute.xlu0 %831
    %v834 = vmul.f32 %v798, %v832
    %v835 = vtanh.pop %v828
    %837 = vrot.lane.b32.xlu0 %v835, 64
    %v838 = vpop.permute.xlu0 %837
    %v840 = vmul.f32 %v805, %v838
    %842 = vrot.lane.b32.xlu0 %v834, 32
    %v843 = vpop.permute.xlu0 %842
    %s845 = scalar_lea.vmem [#allocation3], 16
    %846 = vst.msk [vmem:[%s845] sm:$0xff] %vm216, %v843
    %848 = vrot.lane.b32.xlu0 %v840, 32
    %v849 = vpop.permute.xlu0 %848
    %s851 = scalar_lea.vmem [#allocation4], 40
    %852 = vst.msk [vmem:[%s851] sm:$0xff] %vm216, %v849
    %s853 = smul.u32 3, 2
    %s854 = smul.addr %s853, 8
    %s855 = scalar_lea.vmem [#allocation2], %s854
    %v856 = vld [vmem:[%s855] sm:$0xff]
    %v857 = vsel %vm216, %v843, 0
    %859 = vmatprep.subr.mxu0 0.0
    %860 = vmatpush1.msra.mxu0 %v204
    %861 = vmatprep.subr.mxu0 0.0
    %862 = vmatpush1.msra.mxu0 %v205
    %863 = vmatprep.subr.mxu0 0.0
    %864 = vmatpush1.msra.mxu0 %v206
    %865 = vmatprep.subr.mxu0 0.0
    %866 = vmatpush1.msra.mxu0 %v207
    %867 = vmatprep.subr.mxu0 0.0
    %868 = vmatpush1.msra.mxu0 0.0
    %869 = vmatprep.subr.mxu0 0.0
    %870 = vmatpush1.msra.mxu0 0.0
    %871 = vmatprep.subr.mxu0 0.0
    %872 = vmatpush1.msra.mxu0 0.0
    %873 = vmatprep.subr.mxu0 0.0
    %874 = vmatpush1.msra.mxu0 0.0
    %875 = vmatprep.subr.mxu0 0.0
    %876 = vmatpush1.msra.mxu0 0.0
    %877 = vmatprep.subr.mxu0 0.0
    %878 = vmatpush1.msra.mxu0 0.0
    %879 = vmatprep.subr.mxu0 0.0
    %880 = vmatpush1.msra.mxu0 0.0
    %881 = vmatprep.subr.mxu0 0.0
    %882 = vmatpush1.msra.mxu0 0.0
    %883 = vmatprep.subr.mxu0 0.0
    %884 = vmatpush1.msra.mxu0 0.0
    %885 = vmatprep.subr.mxu0 0.0
    %886 = vmatpush1.msra.mxu0 0.0
    %887 = vmatprep.subr.mxu0 0.0
    %888 = vmatpush1.msra.mxu0 0.0
    %889 = vmatprep.subr.mxu0 0.0
    %890 = vmatpush1.msra.mxu0 0.0
    %891 = vmatprep.subr.mxu0 0.0
    %892 = vmatpush1.msra.mxu0 0.0
    %893 = vmatprep.subr.mxu0 0.0
    %894 = vmatpush1.msra.mxu0 0.0
    %895 = vmatprep.subr.mxu0 0.0
    %896 = vmatpush1.msra.mxu0 0.0
    %897 = vmatprep.subr.mxu0 0.0
    %898 = vmatpush1.msra.mxu0 0.0
    %899 = vmatprep.subr.mxu0 0.0
    %900 = vmatpush1.msra.mxu0 0.0
    %901 = vmatprep.subr.mxu0 0.0
    %902 = vmatpush1.msra.mxu0 0.0
    %903 = vmatprep.subr.mxu0 0.0
    %904 = vmatpush1.msra.mxu0 0.0
    %905 = vmatprep.subr.mxu0 0.0
    %906 = vmatpush1.msra.mxu0 0.0
    %907 = vmatprep.subr.mxu0 0.0
    %908 = vmatpush1.msra.mxu0 0.0
    %909 = vmatprep.subr.mxu0 0.0
    %910 = vmatpush1.msra.mxu0 0.0
    %911 = vmatprep.subr.mxu0 0.0
    %912 = vmatpush1.msra.mxu0 0.0
    %913 = vmatprep.subr.mxu0 0.0
    %914 = vmatpush1.msra.mxu0 0.0
    %915 = vmatprep.subr.mxu0 0.0
    %916 = vmatpush1.msra.mxu0 0.0
    %917 = vmatprep.subr.mxu0 0.0
    %918 = vmatpush1.msra.mxu0 0.0
    %919 = vmatprep.subr.mxu0 0.0
    %920 = vmatpush1.msra.mxu0 0.0
    %921 = vmatprep.subr.mxu0 0.0
    %922 = vmatpush1.msra.mxu0 0.0
    %923 = vmatprep.mubr.f32.mxu0 0.0
    %924 = vmatmul.mubr.f32.gmra.mrb[0].mxu0 %v857
    %v925 = vpop.f32.mrb[0].mxu0
    %v926 = vadd.f32 0.0, %v925
    %v927 = vpop.f32.mrb[0].mxu0
    %928 = vdwg.mxu0
    %v929 = vadd.f32 %v856, %v926
    %s930 = smul.u32 4, 2
    %s931 = smul.addr %s930, 8
    %s932 = scalar_lea.vmem [#allocation2], %s931
    %v933 = vld [vmem:[%s932 + $0x8] sm:$0xff]
    %v934 = vsel %vm216, %v849, 0
    %936 = vmatprep.subr.mxu0 0.0
    %937 = vmatpush1.msra.mxu0 %v208
    %938 = vmatprep.subr.mxu0 0.0
    %939 = vmatpush1.msra.mxu0 %v209
    %940 = vmatprep.subr.mxu0 0.0
    %941 = vmatpush1.msra.mxu0 %v210
    %942 = vmatprep.subr.mxu0 0.0
    %943 = vmatpush1.msra.mxu0 %v211
    %944 = vmatprep.subr.mxu0 0.0
    %945 = vmatpush1.msra.mxu0 0.0
    %946 = vmatprep.subr.mxu0 0.0
    %947 = vmatpush1.msra.mxu0 0.0
    %948 = vmatprep.subr.mxu0 0.0
    %949 = vmatpush1.msra.mxu0 0.0
    %950 = vmatprep.subr.mxu0 0.0
    %951 = vmatpush1.msra.mxu0 0.0
    %952 = vmatprep.subr.mxu0 0.0
    %953 = vmatpush1.msra.mxu0 0.0
    %954 = vmatprep.subr.mxu0 0.0
    %955 = vmatpush1.msra.mxu0 0.0
    %956 = vmatprep.subr.mxu0 0.0
    %957 = vmatpush1.msra.mxu0 0.0
    %958 = vmatprep.subr.mxu0 0.0
    %959 = vmatpush1.msra.mxu0 0.0
    %960 = vmatprep.subr.mxu0 0.0
    %961 = vmatpush1.msra.mxu0 0.0
    %962 = vmatprep.subr.mxu0 0.0
    %963 = vmatpush1.msra.mxu0 0.0
    %964 = vmatprep.subr.mxu0 0.0
    %965 = vmatpush1.msra.mxu0 0.0
    %966 = vmatprep.subr.mxu0 0.0
    %967 = vmatpush1.msra.mxu0 0.0
    %968 = vmatprep.subr.mxu0 0.0
    %969 = vmatpush1.msra.mxu0 0.0
    %970 = vmatprep.subr.mxu0 0.0
    %971 = vmatpush1.msra.mxu0 0.0
    %972 = vmatprep.subr.mxu0 0.0
    %973 = vmatpush1.msra.mxu0 0.0
    %974 = vmatprep.subr.mxu0 0.0
    %975 = vmatpush1.msra.mxu0 0.0
    %976 = vmatprep.subr.mxu0 0.0
    %977 = vmatpush1.msra.mxu0 0.0
    %978 = vmatprep.subr.mxu0 0.0
    %979 = vmatpush1.msra.mxu0 0.0
    %980 = vmatprep.subr.mxu0 0.0
    %981 = vmatpush1.msra.mxu0 0.0
    %982 = vmatprep.subr.mxu0 0.0
    %983 = vmatpush1.msra.mxu0 0.0
    %984 = vmatprep.subr.mxu0 0.0
    %985 = vmatpush1.msra.mxu0 0.0
    %986 = vmatprep.subr.mxu0 0.0
    %987 = vmatpush1.msra.mxu0 0.0
    %988 = vmatprep.subr.mxu0 0.0
    %989 = vmatpush1.msra.mxu0 0.0
    %990 = vmatprep.subr.mxu0 0.0
    %991 = vmatpush1.msra.mxu0 0.0
    %992 = vmatprep.subr.mxu0 0.0
    %993 = vmatpush1.msra.mxu0 0.0
    %994 = vmatprep.subr.mxu0 0.0
    %995 = vmatpush1.msra.mxu0 0.0
    %996 = vmatprep.subr.mxu0 0.0
    %997 = vmatpush1.msra.mxu0 0.0
    %998 = vmatprep.subr.mxu0 0.0
    %999 = vmatpush1.msra.mxu0 0.0
    %1000 = vmatprep.mubr.f32.mxu0 0.0
    %1001 = vmatmul.mubr.f32.gmra.mrb[0].mxu0 %v934
    %v1002 = vpop.f32.mrb[0].mxu0
    %v1003 = vadd.f32 0.0, %v1002
    %v1004 = vpop.f32.mrb[0].mxu0
    %1005 = vdwg.mxu0
    %v1006 = vadd.f32 %v933, %v1003
    %v1007 = vxor.u32 %v929, 2147483648
    %v1008 = vmul.f32 %v1007, 1.442695
    %v1009 = vpow.pop %v1008
    %v1010 = vadd.f32 %v1009, 1.0
    %v1011 = vrcp.pop %v1010
    %v1012 = vmul.f32 1.0, %v1011
    %v1013 = vtanh.pop %v929
    %v1014 = vxor.u32 %v1006, 2147483648
    %v1015 = vmul.f32 %v1014, 1.442695
    %v1016 = vpow.pop %v1015
    %v1017 = vadd.f32 %v1016, 1.0
    %v1018 = vrcp.pop %v1017
    %v1019 = vmul.f32 1.0, %v1018
    %v1020 = vtanh.pop %v1006
    %v1021 = vmul.f32 %v1012, %v817
    %1023 = vrot.lane.b32.xlu0 %v1013, 64
    %v1024 = vpop.permute.xlu0 %1023
    %v1026 = vmul.f32 %v1012, %v1024
    %1028 = vrot.lane.b32.xlu0 %v1026, 32
    %v1029 = vpop.permute.xlu0 %1028
    %v1031 = vadd.f32 %v1021, %v1029
    %v1032 = vmul.f32 %v1019, %v828
    %1034 = vrot.lane.b32.xlu0 %v1020, 64
    %v1035 = vpop.permute.xlu0 %1034
    %v1037 = vmul.f32 %v1019, %v1035
    %1039 = vrot.lane.b32.xlu0 %v1037, 32
    %v1040 = vpop.permute.xlu0 %1039
    %v1042 = vadd.f32 %v1032, %v1040
    %v1043 = vtanh.pop %v1031
    %1045 = vrot.lane.b32.xlu0 %v1043, 64
    %v1046 = vpop.permute.xlu0 %1045
    %v1048 = vmul.f32 %v1012, %v1046
    %v1049 = vtanh.pop %v1042
    %1051 = vrot.lane.b32.xlu0 %v1049, 64
    %v1052 = vpop.permute.xlu0 %1051
    %v1054 = vmul.f32 %v1019, %v1052
    %1056 = vrot.lane.b32.xlu0 %v1048, 32
    %v1057 = vpop.permute.xlu0 %1056
    %s1059 = scalar_lea.vmem [#allocation3], 24
    %1060 = vst.msk [vmem:[%s1059] sm:$0xff] %vm216, %v1057
    %1062 = vrot.lane.b32.xlu0 %v1054, 32
    %v1063 = vpop.permute.xlu0 %1062
    %s1065 = scalar_lea.vmem [#allocation4], 32
    %1066 = vst.msk [vmem:[%s1065] sm:$0xff] %vm216, %v1063
    %v1067 = vld [vmem:[%s932] sm:$0xff]
    %v1068 = vsel %vm216, %v1057, 0
    %1070 = vmatprep.subr.mxu0 0.0
    %1071 = vmatpush1.msra.mxu0 %v204
    %1072 = vmatprep.subr.mxu0 0.0
    %1073 = vmatpush1.msra.mxu0 %v205
    %1074 = vmatprep.subr.mxu0 0.0
    %1075 = vmatpush1.msra.mxu0 %v206
    %1076 = vmatprep.subr.mxu0 0.0
    %1077 = vmatpush1.msra.mxu0 %v207
    %1078 = vmatprep.subr.mxu0 0.0
    %1079 = vmatpush1.msra.mxu0 0.0
    %1080 = vmatprep.subr.mxu0 0.0
    %1081 = vmatpush1.msra.mxu0 0.0
    %1082 = vmatprep.subr.mxu0 0.0
    %1083 = vmatpush1.msra.mxu0 0.0
    %1084 = vmatprep.subr.mxu0 0.0
    %1085 = vmatpush1.msra.mxu0 0.0
    %1086 = vmatprep.subr.mxu0 0.0
    %1087 = vmatpush1.msra.mxu0 0.0
    %1088 = vmatprep.subr.mxu0 0.0
    %1089 = vmatpush1.msra.mxu0 0.0
    %1090 = vmatprep.subr.mxu0 0.0
    %1091 = vmatpush1.msra.mxu0 0.0
    %1092 = vmatprep.subr.mxu0 0.0
    %1093 = vmatpush1.msra.mxu0 0.0
    %1094 = vmatprep.subr.mxu0 0.0
    %1095 = vmatpush1.msra.mxu0 0.0
    %1096 = vmatprep.subr.mxu0 0.0
    %1097 = vmatpush1.msra.mxu0 0.0
    %1098 = vmatprep.subr.mxu0 0.0
    %1099 = vmatpush1.msra.mxu0 0.0
    %1100 = vmatprep.subr.mxu0 0.0
    %1101 = vmatpush1.msra.mxu0 0.0
    %1102 = vmatprep.subr.mxu0 0.0
    %1103 = vmatpush1.msra.mxu0 0.0
    %1104 = vmatprep.subr.mxu0 0.0
    %1105 = vmatpush1.msra.mxu0 0.0
    %1106 = vmatprep.subr.mxu0 0.0
    %1107 = vmatpush1.msra.mxu0 0.0
    %1108 = vmatprep.subr.mxu0 0.0
    %1109 = vmatpush1.msra.mxu0 0.0
    %1110 = vmatprep.subr.mxu0 0.0
    %1111 = vmatpush1.msra.mxu0 0.0
    %1112 = vmatprep.subr.mxu0 0.0
    %1113 = vmatpush1.msra.mxu0 0.0
    %1114 = vmatprep.subr.mxu0 0.0
    %1115 = vmatpush1.msra.mxu0 0.0
    %1116 = vmatprep.subr.mxu0 0.0
    %1117 = vmatpush1.msra.mxu0 0.0
    %1118 = vmatprep.subr.mxu0 0.0
    %1119 = vmatpush1.msra.mxu0 0.0
    %1120 = vmatprep.subr.mxu0 0.0
    %1121 = vmatpush1.msra.mxu0 0.0
    %1122 = vmatprep.subr.mxu0 0.0
    %1123 = vmatpush1.msra.mxu0 0.0
    %1124 = vmatprep.subr.mxu0 0.0
    %1125 = vmatpush1.msra.mxu0 0.0
    %1126 = vmatprep.subr.mxu0 0.0
    %1127 = vmatpush1.msra.mxu0 0.0
    %1128 = vmatprep.subr.mxu0 0.0
    %1129 = vmatpush1.msra.mxu0 0.0
    %1130 = vmatprep.subr.mxu0 0.0
    %1131 = vmatpush1.msra.mxu0 0.0
    %1132 = vmatprep.subr.mxu0 0.0
    %1133 = vmatpush1.msra.mxu0 0.0
    %1134 = vmatprep.mubr.f32.mxu0 0.0
    %1135 = vmatmul.mubr.f32.gmra.mrb[0].mxu0 %v1068
    %v1136 = vpop.f32.mrb[0].mxu0
    %v1137 = vadd.f32 0.0, %v1136
    %v1138 = vpop.f32.mrb[0].mxu0
    %1139 = vdwg.mxu0
    %v1140 = vadd.f32 %v1067, %v1137
    %v1141 = vld [vmem:[%s855 + $0x8] sm:$0xff]
    %v1142 = vsel %vm216, %v1063, 0
    %1144 = vmatprep.subr.mxu0 0.0
    %1145 = vmatpush1.msra.mxu0 %v208
    %1146 = vmatprep.subr.mxu0 0.0
    %1147 = vmatpush1.msra.mxu0 %v209
    %1148 = vmatprep.subr.mxu0 0.0
    %1149 = vmatpush1.msra.mxu0 %v210
    %1150 = vmatprep.subr.mxu0 0.0
    %1151 = vmatpush1.msra.mxu0 %v211
    %1152 = vmatprep.subr.mxu0 0.0
    %1153 = vmatpush1.msra.mxu0 0.0
    %1154 = vmatprep.subr.mxu0 0.0
    %1155 = vmatpush1.msra.mxu0 0.0
    %1156 = vmatprep.subr.mxu0 0.0
    %1157 = vmatpush1.msra.mxu0 0.0
    %1158 = vmatprep.subr.mxu0 0.0
    %1159 = vmatpush1.msra.mxu0 0.0
    %1160 = vmatprep.subr.mxu0 0.0
    %1161 = vmatpush1.msra.mxu0 0.0
    %1162 = vmatprep.subr.mxu0 0.0
    %1163 = vmatpush1.msra.mxu0 0.0
    %1164 = vmatprep.subr.mxu0 0.0
    %1165 = vmatpush1.msra.mxu0 0.0
    %1166 = vmatprep.subr.mxu0 0.0
    %1167 = vmatpush1.msra.mxu0 0.0
    %1168 = vmatprep.subr.mxu0 0.0
    %1169 = vmatpush1.msra.mxu0 0.0
    %1170 = vmatprep.subr.mxu0 0.0
    %1171 = vmatpush1.msra.mxu0 0.0
    %1172 = vmatprep.subr.mxu0 0.0
    %1173 = vmatpush1.msra.mxu0 0.0
    %1174 = vmatprep.subr.mxu0 0.0
    %1175 = vmatpush1.msra.mxu0 0.0
    %1176 = vmatprep.subr.mxu0 0.0
    %1177 = vmatpush1.msra.mxu0 0.0
    %1178 = vmatprep.subr.mxu0 0.0
    %1179 = vmatpush1.msra.mxu0 0.0
    %1180 = vmatprep.subr.mxu0 0.0
    %1181 = vmatpush1.msra.mxu0 0.0
    %1182 = vmatprep.subr.mxu0 0.0
    %1183 = vmatpush1.msra.mxu0 0.0
    %1184 = vmatprep.subr.mxu0 0.0
    %1185 = vmatpush1.msra.mxu0 0.0
    %1186 = vmatprep.subr.mxu0 0.0
    %1187 = vmatpush1.msra.mxu0 0.0
    %1188 = vmatprep.subr.mxu0 0.0
    %1189 = vmatpush1.msra.mxu0 0.0
    %1190 = vmatprep.subr.mxu0 0.0
    %1191 = vmatpush1.msra.mxu0 0.0
    %1192 = vmatprep.subr.mxu0 0.0
    %1193 = vmatpush1.msra.mxu0 0.0
    %1194 = vmatprep.subr.mxu0 0.0
    %1195 = vmatpush1.msra.mxu0 0.0
    %1196 = vmatprep.subr.mxu0 0.0
    %1197 = vmatpush1.msra.mxu0 0.0
    %1198 = vmatprep.subr.mxu0 0.0
    %1199 = vmatpush1.msra.mxu0 0.0
    %1200 = vmatprep.subr.mxu0 0.0
    %1201 = vmatpush1.msra.mxu0 0.0
    %1202 = vmatprep.subr.mxu0 0.0
    %1203 = vmatpush1.msra.mxu0 0.0
    %1204 = vmatprep.subr.mxu0 0.0
    %1205 = vmatpush1.msra.mxu0 0.0
    %1206 = vmatprep.subr.mxu0 0.0
    %1207 = vmatpush1.msra.mxu0 0.0
    %1208 = vmatprep.mubr.f32.mxu0 0.0
    %1209 = vmatmul.mubr.f32.gmra.mrb[0].mxu0 %v1142
    %v1210 = vpop.f32.mrb[0].mxu0
    %v1211 = vadd.f32 0.0, %v1210
    %v1212 = vpop.f32.mrb[0].mxu0
    %1213 = vdwg.mxu0
    %v1214 = vadd.f32 %v1141, %v1211
    %v1215 = vxor.u32 %v1140, 2147483648
    %v1216 = vmul.f32 %v1215, 1.442695
    %v1217 = vpow.pop %v1216
    %v1218 = vadd.f32 %v1217, 1.0
    %v1219 = vrcp.pop %v1218
    %v1220 = vmul.f32 1.0, %v1219
    %v1221 = vtanh.pop %v1140
    %v1222 = vxor.u32 %v1214, 2147483648
    %v1223 = vmul.f32 %v1222, 1.442695
    %v1224 = vpow.pop %v1223
    %v1225 = vadd.f32 %v1224, 1.0
    %v1226 = vrcp.pop %v1225
    %v1227 = vmul.f32 1.0, %v1226
    %v1228 = vtanh.pop %v1214
    %v1229 = vmul.f32 %v1220, %v1031
    %1231 = vrot.lane.b32.xlu0 %v1221, 64
    %v1232 = vpop.permute.xlu0 %1231
    %v1234 = vmul.f32 %v1220, %v1232
    %1236 = vrot.lane.b32.xlu0 %v1234, 32
    %v1237 = vpop.permute.xlu0 %1236
    %v1239 = vadd.f32 %v1229, %v1237
    %v1240 = vmul.f32 %v1227, %v1042
    %1242 = vrot.lane.b32.xlu0 %v1228, 64
    %v1243 = vpop.permute.xlu0 %1242
    %v1245 = vmul.f32 %v1227, %v1243
    %1247 = vrot.lane.b32.xlu0 %v1245, 32
    %v1248 = vpop.permute.xlu0 %1247
    %v1250 = vadd.f32 %v1240, %v1248
    %v1251 = vtanh.pop %v1239
    %1253 = vrot.lane.b32.xlu0 %v1251, 64
    %v1254 = vpop.permute.xlu0 %1253
    %v1256 = vmul.f32 %v1220, %v1254
    %v1257 = vtanh.pop %v1250
    %1259 = vrot.lane.b32.xlu0 %v1257, 64
    %v1260 = vpop.permute.xlu0 %1259
    %v1262 = vmul.f32 %v1227, %v1260
    %1264 = vrot.lane.b32.xlu0 %v1256, 32
    %v1265 = vpop.permute.xlu0 %1264
    %s1267 = scalar_lea.vmem [#allocation3], 32
    %1268 = vst.msk [vmem:[%s1267] sm:$0xff] %vm216, %v1265
    %1270 = vrot.lane.b32.xlu0 %v1262, 32
    %v1271 = vpop.permute.xlu0 %1270
    %s1273 = scalar_lea.vmem [#allocation4], 24
    %1274 = vst.msk [vmem:[%s1273] sm:$0xff] %vm216, %v1271
    %v1275 = vld [vmem:[%s718] sm:$0xff]
    %v1276 = vsel %vm216, %v1265, 0
    %1278 = vmatprep.subr.mxu0 0.0
    %1279 = vmatpush1.msra.mxu0 %v204
    %1280 = vmatprep.subr.mxu0 0.0
    %1281 = vmatpush1.msra.mxu0 %v205
    %1282 = vmatprep.subr.mxu0 0.0
    %1283 = vmatpush1.msra.mxu0 %v206
    %1284 = vmatprep.subr.mxu0 0.0
    %1285 = vmatpush1.msra.mxu0 %v207
    %1286 = vmatprep.subr.mxu0 0.0
    %1287 = vmatpush1.msra.mxu0 0.0
    %1288 = vmatprep.subr.mxu0 0.0
    %1289 = vmatpush1.msra.mxu0 0.0
    %1290 = vmatprep.subr.mxu0 0.0
    %1291 = vmatpush1.msra.mxu0 0.0
    %1292 = vmatprep.subr.mxu0 0.0
    %1293 = vmatpush1.msra.mxu0 0.0
    %1294 = vmatprep.subr.mxu0 0.0
    %1295 = vmatpush1.msra.mxu0 0.0
    %1296 = vmatprep.subr.mxu0 0.0
    %1297 = vmatpush1.msra.mxu0 0.0
    %1298 = vmatprep.subr.mxu0 0.0
    %1299 = vmatpush1.msra.mxu0 0.0
    %1300 = vmatprep.subr.mxu0 0.0
    %1301 = vmatpush1.msra.mxu0 0.0
    %1302 = vmatprep.subr.mxu0 0.0
    %1303 = vmatpush1.msra.mxu0 0.0
    %1304 = vmatprep.subr.mxu0 0.0
    %1305 = vmatpush1.msra.mxu0 0.0
    %1306 = vmatprep.subr.mxu0 0.0
    %1307 = vmatpush1.msra.mxu0 0.0
    %1308 = vmatprep.subr.mxu0 0.0
    %1309 = vmatpush1.msra.mxu0 0.0
    %1310 = vmatprep.subr.mxu0 0.0
    %1311 = vmatpush1.msra.mxu0 0.0
    %1312 = vmatprep.subr.mxu0 0.0
    %1313 = vmatpush1.msra.mxu0 0.0
    %1314 = vmatprep.subr.mxu0 0.0
    %1315 = vmatpush1.msra.mxu0 0.0
    %1316 = vmatprep.subr.mxu0 0.0
    %1317 = vmatpush1.msra.mxu0 0.0
    %1318 = vmatprep.subr.mxu0 0.0
    %1319 = vmatpush1.msra.mxu0 0.0
    %1320 = vmatprep.subr.mxu0 0.0
    %1321 = vmatpush1.msra.mxu0 0.0
    %1322 = vmatprep.subr.mxu0 0.0
    %1323 = vmatpush1.msra.mxu0 0.0
    %1324 = vmatprep.subr.mxu0 0.0
    %1325 = vmatpush1.msra.mxu0 0.0
    %1326 = vmatprep.subr.mxu0 0.0
    %1327 = vmatpush1.msra.mxu0 0.0
    %1328 = vmatprep.subr.mxu0 0.0
    %1329 = vmatpush1.msra.mxu0 0.0
    %1330 = vmatprep.subr.mxu0 0.0
    %1331 = vmatpush1.msra.mxu0 0.0
    %1332 = vmatprep.subr.mxu0 0.0
    %1333 = vmatpush1.msra.mxu0 0.0
    %1334 = vmatprep.subr.mxu0 0.0
    %1335 = vmatpush1.msra.mxu0 0.0
    %1336 = vmatprep.subr.mxu0 0.0
    %1337 = vmatpush1.msra.mxu0 0.0
    %1338 = vmatprep.subr.mxu0 0.0
    %1339 = vmatpush1.msra.mxu0 0.0
    %1340 = vmatprep.subr.mxu0 0.0
    %1341 = vmatpush1.msra.mxu0 0.0
    %1342 = vmatprep.mubr.f32.mxu0 0.0
    %1343 = vmatmul.mubr.f32.gmra.mrb[0].mxu0 %v1276
    %v1344 = vpop.f32.mrb[0].mxu0
    %v1345 = vadd.f32 0.0, %v1344
    %v1346 = vpop.f32.mrb[0].mxu0
    %1347 = vdwg.mxu0
    %v1348 = vadd.f32 %v1275, %v1345
    %v1349 = vld [vmem:[%s641 + $0x8] sm:$0xff]
    %v1350 = vsel %vm216, %v1271, 0
    %1352 = vmatprep.subr.mxu0 0.0
    %1353 = vmatpush1.msra.mxu0 %v208
    %1354 = vmatprep.subr.mxu0 0.0
    %1355 = vmatpush1.msra.mxu0 %v209
    %1356 = vmatprep.subr.mxu0 0.0
    %1357 = vmatpush1.msra.mxu0 %v210
    %1358 = vmatprep.subr.mxu0 0.0
    %1359 = vmatpush1.msra.mxu0 %v211
    %1360 = vmatprep.subr.mxu0 0.0
    %1361 = vmatpush1.msra.mxu0 0.0
    %1362 = vmatprep.subr.mxu0 0.0
    %1363 = vmatpush1.msra.mxu0 0.0
    %1364 = vmatprep.subr.mxu0 0.0
    %1365 = vmatpush1.msra.mxu0 0.0
    %1366 = vmatprep.subr.mxu0 0.0
    %1367 = vmatpush1.msra.mxu0 0.0
    %1368 = vmatprep.subr.mxu0 0.0
    %1369 = vmatpush1.msra.mxu0 0.0
    %1370 = vmatprep.subr.mxu0 0.0
    %1371 = vmatpush1.msra.mxu0 0.0
    %1372 = vmatprep.subr.mxu0 0.0
    %1373 = vmatpush1.msra.mxu0 0.0
    %1374 = vmatprep.subr.mxu0 0.0
    %1375 = vmatpush1.msra.mxu0 0.0
    %1376 = vmatprep.subr.mxu0 0.0
    %1377 = vmatpush1.msra.mxu0 0.0
    %1378 = vmatprep.subr.mxu0 0.0
    %1379 = vmatpush1.msra.mxu0 0.0
    %1380 = vmatprep.subr.mxu0 0.0
    %1381 = vmatpush1.msra.mxu0 0.0
    %1382 = vmatprep.subr.mxu0 0.0
    %1383 = vmatpush1.msra.mxu0 0.0
    %1384 = vmatprep.subr.mxu0 0.0
    %1385 = vmatpush1.msra.mxu0 0.0
    %1386 = vmatprep.subr.mxu0 0.0
    %1387 = vmatpush1.msra.mxu0 0.0
    %1388 = vmatprep.subr.mxu0 0.0
    %1389 = vmatpush1.msra.mxu0 0.0
    %1390 = vmatprep.subr.mxu0 0.0
    %1391 = vmatpush1.msra.mxu0 0.0
    %1392 = vmatprep.subr.mxu0 0.0
    %1393 = vmatpush1.msra.mxu0 0.0
    %1394 = vmatprep.subr.mxu0 0.0
    %1395 = vmatpush1.msra.mxu0 0.0
    %1396 = vmatprep.subr.mxu0 0.0
    %1397 = vmatpush1.msra.mxu0 0.0
    %1398 = vmatprep.subr.mxu0 0.0
    %1399 = vmatpush1.msra.mxu0 0.0
    %1400 = vmatprep.subr.mxu0 0.0
    %1401 = vmatpush1.msra.mxu0 0.0
    %1402 = vmatprep.subr.mxu0 0.0
    %1403 = vmatpush1.msra.mxu0 0.0
    %1404 = vmatprep.subr.mxu0 0.0
    %1405 = vmatpush1.msra.mxu0 0.0
    %1406 = vmatprep.subr.mxu0 0.0
    %1407 = vmatpush1.msra.mxu0 0.0
    %1408 = vmatprep.subr.mxu0 0.0
    %1409 = vmatpush1.msra.mxu0 0.0
    %1410 = vmatprep.subr.mxu0 0.0
    %1411 = vmatpush1.msra.mxu0 0.0
    %1412 = vmatprep.subr.mxu0 0.0
    %1413 = vmatpush1.msra.mxu0 0.0
    %1414 = vmatprep.subr.mxu0 0.0
    %1415 = vmatpush1.msra.mxu0 0.0
    %1416 = vmatprep.mubr.f32.mxu0 0.0
    %1417 = vmatmul.mubr.f32.gmra.mrb[0].mxu0 %v1350
    %v1418 = vpop.f32.mrb[0].mxu0
    %v1419 = vadd.f32 0.0, %v1418
    %v1420 = vpop.f32.mrb[0].mxu0
    %1421 = vdwg.mxu0
    %v1422 = vadd.f32 %v1349, %v1419
    %v1423 = vxor.u32 %v1348, 2147483648
    %v1424 = vmul.f32 %v1423, 1.442695
    %v1425 = vpow.pop %v1424
    %v1426 = vadd.f32 %v1425, 1.0
    %v1427 = vrcp.pop %v1426
    %v1428 = vmul.f32 1.0, %v1427
    %v1429 = vtanh.pop %v1348
    %v1430 = vxor.u32 %v1422, 2147483648
    %v1431 = vmul.f32 %v1430, 1.442695
    %v1432 = vpow.pop %v1431
    %v1433 = vadd.f32 %v1432, 1.0
    %v1434 = vrcp.pop %v1433
    %v1435 = vmul.f32 1.0, %v1434
    %v1436 = vtanh.pop %v1422
    %v1437 = vmul.f32 %v1428, %v1239
    %1439 = vrot.lane.b32.xlu0 %v1429, 64
    %v1440 = vpop.permute.xlu0 %1439
    %v1442 = vmul.f32 %v1428, %v1440
    %1444 = vrot.lane.b32.xlu0 %v1442, 32
    %v1445 = vpop.permute.xlu0 %1444
    %v1447 = vadd.f32 %v1437, %v1445
    %v1448 = vmul.f32 %v1435, %v1250
    %1450 = vrot.lane.b32.xlu0 %v1436, 64
    %v1451 = vpop.permute.xlu0 %1450
    %v1453 = vmul.f32 %v1435, %v1451
    %1455 = vrot.lane.b32.xlu0 %v1453, 32
    %v1456 = vpop.permute.xlu0 %1455
    %v1458 = vadd.f32 %v1448, %v1456
    %v1459 = vtanh.pop %v1447
    %1461 = vrot.lane.b32.xlu0 %v1459, 64
    %v1462 = vpop.permute.xlu0 %1461
    %v1464 = vmul.f32 %v1428, %v1462
    %v1465 = vtanh.pop %v1458
    %1467 = vrot.lane.b32.xlu0 %v1465, 64
    %v1468 = vpop.permute.xlu0 %1467
    %v1470 = vmul.f32 %v1435, %v1468
    %1472 = vrot.lane.b32.xlu0 %v1464, 32
    %v1473 = vpop.permute.xlu0 %1472
    %s1475 = scalar_lea.vmem [#allocation3], 40
    %1476 = vst.msk [vmem:[%s1475] sm:$0xff] %vm216, %v1473
    %1478 = vrot.lane.b32.xlu0 %v1470, 32
    %v1479 = vpop.permute.xlu0 %1478
    %s1481 = scalar_lea.vmem [#allocation4], 16
    %1482 = vst.msk [vmem:[%s1481] sm:$0xff] %vm216, %v1479
    %v1483 = vld [vmem:[%s504] sm:$0xff]
    %v1484 = vsel %vm216, %v1473, 0
    %1486 = vmatprep.subr.mxu0 0.0
    %1487 = vmatpush1.msra.mxu0 %v204
    %1488 = vmatprep.subr.mxu0 0.0
    %1489 = vmatpush1.msra.mxu0 %v205
    %1490 = vmatprep.subr.mxu0 0.0
    %1491 = vmatpush1.msra.mxu0 %v206
    %1492 = vmatprep.subr.mxu0 0.0
    %1493 = vmatpush1.msra.mxu0 %v207
    %1494 = vmatprep.subr.mxu0 0.0
    %1495 = vmatpush1.msra.mxu0 0.0
    %1496 = vmatprep.subr.mxu0 0.0
    %1497 = vmatpush1.msra.mxu0 0.0
    %1498 = vmatprep.subr.mxu0 0.0
    %1499 = vmatpush1.msra.mxu0 0.0
    %1500 = vmatprep.subr.mxu0 0.0
    %1501 = vmatpush1.msra.mxu0 0.0
    %1502 = vmatprep.subr.mxu0 0.0
    %1503 = vmatpush1.msra.mxu0 0.0
    %1504 = vmatprep.subr.mxu0 0.0
    %1505 = vmatpush1.msra.mxu0 0.0
    %1506 = vmatprep.subr.mxu0 0.0
    %1507 = vmatpush1.msra.mxu0 0.0
    %1508 = vmatprep.subr.mxu0 0.0
    %1509 = vmatpush1.msra.mxu0 0.0
    %1510 = vmatprep.subr.mxu0 0.0
    %1511 = vmatpush1.msra.mxu0 0.0
    %1512 = vmatprep.subr.mxu0 0.0
    %1513 = vmatpush1.msra.mxu0 0.0
    %1514 = vmatprep.subr.mxu0 0.0
    %1515 = vmatpush1.msra.mxu0 0.0
    %1516 = vmatprep.subr.mxu0 0.0
    %1517 = vmatpush1.msra.mxu0 0.0
    %1518 = vmatprep.subr.mxu0 0.0
    %1519 = vmatpush1.msra.mxu0 0.0
    %1520 = vmatprep.subr.mxu0 0.0
    %1521 = vmatpush1.msra.mxu0 0.0
    %1522 = vmatprep.subr.mxu0 0.0
    %1523 = vmatpush1.msra.mxu0 0.0
    %1524 = vmatprep.subr.mxu0 0.0
    %1525 = vmatpush1.msra.mxu0 0.0
    %1526 = vmatprep.subr.mxu0 0.0
    %1527 = vmatpush1.msra.mxu0 0.0
    %1528 = vmatprep.subr.mxu0 0.0
    %1529 = vmatpush1.msra.mxu0 0.0
    %1530 = vmatprep.subr.mxu0 0.0
    %1531 = vmatpush1.msra.mxu0 0.0
    %1532 = vmatprep.subr.mxu0 0.0
    %1533 = vmatpush1.msra.mxu0 0.0
    %1534 = vmatprep.subr.mxu0 0.0
    %1535 = vmatpush1.msra.mxu0 0.0
    %1536 = vmatprep.subr.mxu0 0.0
    %1537 = vmatpush1.msra.mxu0 0.0
    %1538 = vmatprep.subr.mxu0 0.0
    %1539 = vmatpush1.msra.mxu0 0.0
    %1540 = vmatprep.subr.mxu0 0.0
    %1541 = vmatpush1.msra.mxu0 0.0
    %1542 = vmatprep.subr.mxu0 0.0
    %1543 = vmatpush1.msra.mxu0 0.0
    %1544 = vmatprep.subr.mxu0 0.0
    %1545 = vmatpush1.msra.mxu0 0.0
    %1546 = vmatprep.subr.mxu0 0.0
    %1547 = vmatpush1.msra.mxu0 0.0
    %1548 = vmatprep.subr.mxu0 0.0
    %1549 = vmatpush1.msra.mxu0 0.0
    %1550 = vmatprep.mubr.f32.mxu0 0.0
    %1551 = vmatmul.mubr.f32.gmra.mrb[0].mxu0 %v1484
    %v1552 = vpop.f32.mrb[0].mxu0
    %v1553 = vadd.f32 0.0, %v1552
    %v1554 = vpop.f32.mrb[0].mxu0
    %1555 = vdwg.mxu0
    %v1556 = vadd.f32 %v1483, %v1553
    %v1557 = vld [vmem:[%s427 + $0x8] sm:$0xff]
    %v1558 = vsel %vm216, %v1479, 0
    %1560 = vmatprep.subr.mxu0 0.0
    %1561 = vmatpush1.msra.mxu0 %v208
    %1562 = vmatprep.subr.mxu0 0.0
    %1563 = vmatpush1.msra.mxu0 %v209
    %1564 = vmatprep.subr.mxu0 0.0
    %1565 = vmatpush1.msra.mxu0 %v210
    %1566 = vmatprep.subr.mxu0 0.0
    %1567 = vmatpush1.msra.mxu0 %v211
    %1568 = vmatprep.subr.mxu0 0.0
    %1569 = vmatpush1.msra.mxu0 0.0
    %1570 = vmatprep.subr.mxu0 0.0
    %1571 = vmatpush1.msra.mxu0 0.0
    %1572 = vmatprep.subr.mxu0 0.0
    %1573 = vmatpush1.msra.mxu0 0.0
    %1574 = vmatprep.subr.mxu0 0.0
    %1575 = vmatpush1.msra.mxu0 0.0
    %1576 = vmatprep.subr.mxu0 0.0
    %1577 = vmatpush1.msra.mxu0 0.0
    %1578 = vmatprep.subr.mxu0 0.0
    %1579 = vmatpush1.msra.mxu0 0.0
    %1580 = vmatprep.subr.mxu0 0.0
    %1581 = vmatpush1.msra.mxu0 0.0
    %1582 = vmatprep.subr.mxu0 0.0
    %1583 = vmatpush1.msra.mxu0 0.0
    %1584 = vmatprep.subr.mxu0 0.0
    %1585 = vmatpush1.msra.mxu0 0.0
    %1586 = vmatprep.subr.mxu0 0.0
    %1587 = vmatpush1.msra.mxu0 0.0
    %1588 = vmatprep.subr.mxu0 0.0
    %1589 = vmatpush1.msra.mxu0 0.0
    %1590 = vmatprep.subr.mxu0 0.0
    %1591 = vmatpush1.msra.mxu0 0.0
    %1592 = vmatprep.subr.mxu0 0.0
    %1593 = vmatpush1.msra.mxu0 0.0
    %1594 = vmatprep.subr.mxu0 0.0
    %1595 = vmatpush1.msra.mxu0 0.0
    %1596 = vmatprep.subr.mxu0 0.0
    %1597 = vmatpush1.msra.mxu0 0.0
    %1598 = vmatprep.subr.mxu0 0.0
    %1599 = vmatpush1.msra.mxu0 0.0
    %1600 = vmatprep.subr.mxu0 0.0
    %1601 = vmatpush1.msra.mxu0 0.0
    %1602 = vmatprep.subr.mxu0 0.0
    %1603 = vmatpush1.msra.mxu0 0.0
    %1604 = vmatprep.subr.mxu0 0.0
    %1605 = vmatpush1.msra.mxu0 0.0
    %1606 = vmatprep.subr.mxu0 0.0
    %1607 = vmatpush1.msra.mxu0 0.0
    %1608 = vmatprep.subr.mxu0 0.0
    %1609 = vmatpush1.msra.mxu0 0.0
    %1610 = vmatprep.subr.mxu0 0.0
    %1611 = vmatpush1.msra.mxu0 0.0
    %1612 = vmatprep.subr.mxu0 0.0
    %1613 = vmatpush1.msra.mxu0 0.0
    %1614 = vmatprep.subr.mxu0 0.0
    %1615 = vmatpush1.msra.mxu0 0.0
    %1616 = vmatprep.subr.mxu0 0.0
    %1617 = vmatpush1.msra.mxu0 0.0
    %1618 = vmatprep.subr.mxu0 0.0
    %1619 = vmatpush1.msra.mxu0 0.0
    %1620 = vmatprep.subr.mxu0 0.0
    %1621 = vmatpush1.msra.mxu0 0.0
    %1622 = vmatprep.subr.mxu0 0.0
    %1623 = vmatpush1.msra.mxu0 0.0
    %1624 = vmatprep.mubr.f32.mxu0 0.0
    %1625 = vmatmul.mubr.f32.gmra.mrb[0].mxu0 %v1558
    %v1626 = vpop.f32.mrb[0].mxu0
    %v1627 = vadd.f32 0.0, %v1626
    %v1628 = vpop.f32.mrb[0].mxu0
    %1629 = vdwg.mxu0
    %v1630 = vadd.f32 %v1557, %v1627
    %v1631 = vxor.u32 %v1556, 2147483648
    %v1632 = vmul.f32 %v1631, 1.442695
    %v1633 = vpow.pop %v1632
    %v1634 = vadd.f32 %v1633, 1.0
    %v1635 = vrcp.pop %v1634
    %v1636 = vmul.f32 1.0, %v1635
    %v1637 = vtanh.pop %v1556
    %v1638 = vxor.u32 %v1630, 2147483648
    %v1639 = vmul.f32 %v1638, 1.442695
    %v1640 = vpow.pop %v1639
    %v1641 = vadd.f32 %v1640, 1.0
    %v1642 = vrcp.pop %v1641
    %v1643 = vmul.f32 1.0, %v1642
    %v1644 = vtanh.pop %v1630
    %v1645 = vmul.f32 %v1636, %v1447
    %1647 = vrot.lane.b32.xlu0 %v1637, 64
    %v1648 = vpop.permute.xlu0 %1647
    %v1650 = vmul.f32 %v1636, %v1648
    %1652 = vrot.lane.b32.xlu0 %v1650, 32
    %v1653 = vpop.permute.xlu0 %1652
    %v1655 = vadd.f32 %v1645, %v1653
    %v1656 = vmul.f32 %v1643, %v1458
    %1658 = vrot.lane.b32.xlu0 %v1644, 64
    %v1659 = vpop.permute.xlu0 %1658
    %v1661 = vmul.f32 %v1643, %v1659
    %1663 = vrot.lane.b32.xlu0 %v1661, 32
    %v1664 = vpop.permute.xlu0 %1663
    %v1666 = vadd.f32 %v1656, %v1664
    %v1667 = vtanh.pop %v1655
    %1669 = vrot.lane.b32.xlu0 %v1667, 64
    %v1670 = vpop.permute.xlu0 %1669
    %v1672 = vmul.f32 %v1636, %v1670
    %v1673 = vtanh.pop %v1666
    %1675 = vrot.lane.b32.xlu0 %v1673, 64
    %v1676 = vpop.permute.xlu0 %1675
    %v1678 = vmul.f32 %v1643, %v1676
    %1680 = vrot.lane.b32.xlu0 %v1672, 32
    %v1681 = vpop.permute.xlu0 %1680
    %s1683 = scalar_lea.vmem [#allocation3], 48
    %1684 = vst.msk [vmem:[%s1683] sm:$0xff] %vm216, %v1681
    %1686 = vrot.lane.b32.xlu0 %v1678, 32
    %v1687 = vpop.permute.xlu0 %1686
    %s1689 = scalar_lea.vmem [#allocation4], 8
    %1690 = vst.msk [vmem:[%s1689] sm:$0xff] %vm216, %v1687
    %v1691 = vld [vmem:[%s293] sm:$0xff]
    %v1692 = vsel %vm216, %v1681, 0
    %1694 = vmatprep.subr.mxu0 0.0
    %1695 = vmatpush1.msra.mxu0 %v204
    %1696 = vmatprep.subr.mxu0 0.0
    %1697 = vmatpush1.msra.mxu0 %v205
    %1698 = vmatprep.subr.mxu0 0.0
    %1699 = vmatpush1.msra.mxu0 %v206
    %1700 = vmatprep.subr.mxu0 0.0
    %1701 = vmatpush1.msra.mxu0 %v207
    %1702 = vmatprep.subr.mxu0 0.0
    %1703 = vmatpush1.msra.mxu0 0.0
    %1704 = vmatprep.subr.mxu0 0.0
    %1705 = vmatpush1.msra.mxu0 0.0
    %1706 = vmatprep.subr.mxu0 0.0
    %1707 = vmatpush1.msra.mxu0 0.0
    %1708 = vmatprep.subr.mxu0 0.0
    %1709 = vmatpush1.msra.mxu0 0.0
    %1710 = vmatprep.subr.mxu0 0.0
    %1711 = vmatpush1.msra.mxu0 0.0
    %1712 = vmatprep.subr.mxu0 0.0
    %1713 = vmatpush1.msra.mxu0 0.0
    %1714 = vmatprep.subr.mxu0 0.0
    %1715 = vmatpush1.msra.mxu0 0.0
    %1716 = vmatprep.subr.mxu0 0.0
    %1717 = vmatpush1.msra.mxu0 0.0
    %1718 = vmatprep.subr.mxu0 0.0
    %1719 = vmatpush1.msra.mxu0 0.0
    %1720 = vmatprep.subr.mxu0 0.0
    %1721 = vmatpush1.msra.mxu0 0.0
    %1722 = vmatprep.subr.mxu0 0.0
    %1723 = vmatpush1.msra.mxu0 0.0
    %1724 = vmatprep.subr.mxu0 0.0
    %1725 = vmatpush1.msra.mxu0 0.0
    %1726 = vmatprep.subr.mxu0 0.0
    %1727 = vmatpush1.msra.mxu0 0.0
    %1728 = vmatprep.subr.mxu0 0.0
    %1729 = vmatpush1.msra.mxu0 0.0
    %1730 = vmatprep.subr.mxu0 0.0
    %1731 = vmatpush1.msra.mxu0 0.0
    %1732 = vmatprep.subr.mxu0 0.0
    %1733 = vmatpush1.msra.mxu0 0.0
    %1734 = vmatprep.subr.mxu0 0.0
    %1735 = vmatpush1.msra.mxu0 0.0
    %1736 = vmatprep.subr.mxu0 0.0
    %1737 = vmatpush1.msra.mxu0 0.0
    %1738 = vmatprep.subr.mxu0 0.0
    %1739 = vmatpush1.msra.mxu0 0.0
    %1740 = vmatprep.subr.mxu0 0.0
    %1741 = vmatpush1.msra.mxu0 0.0
    %1742 = vmatprep.subr.mxu0 0.0
    %1743 = vmatpush1.msra.mxu0 0.0
    %1744 = vmatprep.subr.mxu0 0.0
    %1745 = vmatpush1.msra.mxu0 0.0
    %1746 = vmatprep.subr.mxu0 0.0
    %1747 = vmatpush1.msra.mxu0 0.0
    %1748 = vmatprep.subr.mxu0 0.0
    %1749 = vmatpush1.msra.mxu0 0.0
    %1750 = vmatprep.subr.mxu0 0.0
    %1751 = vmatpush1.msra.mxu0 0.0
    %1752 = vmatprep.subr.mxu0 0.0
    %1753 = vmatpush1.msra.mxu0 0.0
    %1754 = vmatprep.subr.mxu0 0.0
    %1755 = vmatpush1.msra.mxu0 0.0
    %1756 = vmatprep.subr.mxu0 0.0
    %1757 = vmatpush1.msra.mxu0 0.0
    %1758 = vmatprep.mubr.f32.mxu0 0.0
    %1759 = vmatmul.mubr.f32.gmra.mrb[0].mxu0 %v1692
    %v1760 = vpop.f32.mrb[0].mxu0
    %v1761 = vadd.f32 0.0, %v1760
    %v1762 = vpop.f32.mrb[0].mxu0
    %1763 = vdwg.mxu0
    %v1764 = vadd.f32 %v1691, %v1761
    %v1765 = vld [vmem:[%s214 + $0x8] sm:$0xff]
    %v1766 = vsel %vm216, %v1687, 0
    %1768 = vmatprep.subr.mxu0 0.0
    %1769 = vmatpush1.msra.mxu0 %v208
    %1770 = vmatprep.subr.mxu0 0.0
    %1771 = vmatpush1.msra.mxu0 %v209
    %1772 = vmatprep.subr.mxu0 0.0
    %1773 = vmatpush1.msra.mxu0 %v210
    %1774 = vmatprep.subr.mxu0 0.0
    %1775 = vmatpush1.msra.mxu0 %v211
    %1776 = vmatprep.subr.mxu0 0.0
    %1777 = vmatpush1.msra.mxu0 0.0
    %1778 = vmatprep.subr.mxu0 0.0
    %1779 = vmatpush1.msra.mxu0 0.0
    %1780 = vmatprep.subr.mxu0 0.0
    %1781 = vmatpush1.msra.mxu0 0.0
    %1782 = vmatprep.subr.mxu0 0.0
    %1783 = vmatpush1.msra.mxu0 0.0
    %1784 = vmatprep.subr.mxu0 0.0
    %1785 = vmatpush1.msra.mxu0 0.0
    %1786 = vmatprep.subr.mxu0 0.0
    %1787 = vmatpush1.msra.mxu0 0.0
    %1788 = vmatprep.subr.mxu0 0.0
    %1789 = vmatpush1.msra.mxu0 0.0
    %1790 = vmatprep.subr.mxu0 0.0
    %1791 = vmatpush1.msra.mxu0 0.0
    %1792 = vmatprep.subr.mxu0 0.0
    %1793 = vmatpush1.msra.mxu0 0.0
    %1794 = vmatprep.subr.mxu0 0.0
    %1795 = vmatpush1.msra.mxu0 0.0
    %1796 = vmatprep.subr.mxu0 0.0
    %1797 = vmatpush1.msra.mxu0 0.0
    %1798 = vmatprep.subr.mxu0 0.0
    %1799 = vmatpush1.msra.mxu0 0.0
    %1800 = vmatprep.subr.mxu0 0.0
    %1801 = vmatpush1.msra.mxu0 0.0
    %1802 = vmatprep.subr.mxu0 0.0
    %1803 = vmatpush1.msra.mxu0 0.0
    %1804 = vmatprep.subr.mxu0 0.0
    %1805 = vmatpush1.msra.mxu0 0.0
    %1806 = vmatprep.subr.mxu0 0.0
    %1807 = vmatpush1.msra.mxu0 0.0
    %1808 = vmatprep.subr.mxu0 0.0
    %1809 = vmatpush1.msra.mxu0 0.0
    %1810 = vmatprep.subr.mxu0 0.0
    %1811 = vmatpush1.msra.mxu0 0.0
    %1812 = vmatprep.subr.mxu0 0.0
    %1813 = vmatpush1.msra.mxu0 0.0
    %1814 = vmatprep.subr.mxu0 0.0
    %1815 = vmatpush1.msra.mxu0 0.0
    %1816 = vmatprep.subr.mxu0 0.0
    %1817 = vmatpush1.msra.mxu0 0.0
    %1818 = vmatprep.subr.mxu0 0.0
    %1819 = vmatpush1.msra.mxu0 0.0
    %1820 = vmatprep.subr.mxu0 0.0
    %1821 = vmatpush1.msra.mxu0 0.0
    %1822 = vmatprep.subr.mxu0 0.0
    %1823 = vmatpush1.msra.mxu0 0.0
    %1824 = vmatprep.subr.mxu0 0.0
    %1825 = vmatpush1.msra.mxu0 0.0
    %1826 = vmatprep.subr.mxu0 0.0
    %1827 = vmatpush1.msra.mxu0 0.0
    %1828 = vmatprep.subr.mxu0 0.0
    %1829 = vmatpush1.msra.mxu0 0.0
    %1830 = vmatprep.subr.mxu0 0.0
    %1831 = vmatpush1.msra.mxu0 0.0
    %1832 = vmatprep.mubr.f32.mxu0 0.0
    %1833 = vmatmul.mubr.f32.gmra.mrb[0].mxu0 %v1766
    %v1834 = vpop.f32.mrb[0].mxu0
    %v1835 = vadd.f32 0.0, %v1834
    %v1836 = vpop.f32.mrb[0].mxu0
    %1837 = vdwg.mxu0
    %v1838 = vadd.f32 %v1765, %v1835
    %v1839 = vxor.u32 %v1764, 2147483648
    %v1840 = vmul.f32 %v1839, 1.442695
    %v1841 = vpow.pop %v1840
    %v1842 = vadd.f32 %v1841, 1.0
    %v1843 = vrcp.pop %v1842
    %v1844 = vmul.f32 1.0, %v1843
    %v1845 = vtanh.pop %v1764
    %v1846 = vxor.u32 %v1838, 2147483648
    %v1847 = vmul.f32 %v1846, 1.442695
    %v1848 = vpow.pop %v1847
    %v1849 = vadd.f32 %v1848, 1.0
    %v1850 = vrcp.pop %v1849
    %v1851 = vmul.f32 1.0, %v1850
    %v1852 = vtanh.pop %v1838
    %v1853 = vmul.f32 %v1844, %v1655
    %1855 = vrot.lane.b32.xlu0 %v1845, 64
    %v1856 = vpop.permute.xlu0 %1855
    %v1858 = vmul.f32 %v1844, %v1856
    %1860 = vrot.lane.b32.xlu0 %v1858, 32
    %v1861 = vpop.permute.xlu0 %1860
    %v1863 = vadd.f32 %v1853, %v1861
    %v1864 = vmul.f32 %v1851, %v1666
    %1866 = vrot.lane.b32.xlu0 %v1852, 64
    %v1867 = vpop.permute.xlu0 %1866
    %v1869 = vmul.f32 %v1851, %v1867
    %1871 = vrot.lane.b32.xlu0 %v1869, 32
    %v1872 = vpop.permute.xlu0 %1871
    %v1874 = vadd.f32 %v1864, %v1872
    %v1875 = vtanh.pop %v1863
    %1877 = vrot.lane.b32.xlu0 %v1875, 64
    %v1878 = vpop.permute.xlu0 %1877
    %v1880 = vmul.f32 %v1844, %v1878
    %v1881 = vtanh.pop %v1874
    %1883 = vrot.lane.b32.xlu0 %v1881, 64
    %v1884 = vpop.permute.xlu0 %1883
    %v1886 = vmul.f32 %v1851, %v1884
    %1888 = vrot.lane.b32.xlu0 %v1880, 32
    %v1889 = vpop.permute.xlu0 %1888
    %s1891 = scalar_lea.vmem [#allocation3], 56
    %1892 = vst.msk [vmem:[%s1891] sm:$0xff] %vm216, %v1889
    %1894 = vrot.lane.b32.xlu0 %v1886, 32
    %v1895 = vpop.permute.xlu0 %1894
    %1897 = vst.msk [vmem:[#allocation4] sm:$0xff] %vm216, %v1895
    %v1898 = vld [vmem:[#allocation3] sm:$0xff]
    %v1899 = vld [vmem:[#allocation3 + $0x8] sm:$0xff]
    %v1900 = vld [vmem:[#allocation3 + $0x10] sm:$0xff]
    %v1901 = vld [vmem:[#allocation3 + $0x18] sm:$0xff]
    %v1902 = vld [vmem:[#allocation3 + $0x20] sm:$0xff]
    %v1903 = vld [vmem:[#allocation3 + $0x28] sm:$0xff]
    %v1904 = vld [vmem:[#allocation3 + $0x30] sm:$0xff]
    %v1905 = vld [vmem:[#allocation3 + $0x38] sm:$0xff]
    %v1906 = vld [vmem:[%s4] sm:$0xff]
    %v1907 = vld [vmem:[%s4 + $0x8] sm:$0xff]
    %v1908 = vld [vmem:[%s4 + $0x10] sm:$0xff]
    %v1909 = vld [vmem:[%s4 + $0x18] sm:$0xff]
    %v1910 = vld [vmem:[#allocation4] sm:$0xff]
    %v1911 = vld [vmem:[#allocation4 + $0x8] sm:$0xff]
    %v1912 = vld [vmem:[#allocation4 + $0x10] sm:$0xff]
    %v1913 = vld [vmem:[#allocation4 + $0x18] sm:$0xff]
    %v1914 = vld [vmem:[#allocation4 + $0x20] sm:$0xff]
    %v1915 = vld [vmem:[#allocation4 + $0x28] sm:$0xff]
    %v1916 = vld [vmem:[#allocation4 + $0x30] sm:$0xff]
    %v1917 = vld [vmem:[#allocation4 + $0x38] sm:$0xff]
    %v1918 = vld [vmem:[%s4 + $0x20] sm:$0xff]
    %v1919 = vld [vmem:[%s4 + $0x28] sm:$0xff]
    %v1920 = vld [vmem:[%s4 + $0x30] sm:$0xff]
    %v1921 = vld [vmem:[%s4 + $0x38] sm:$0xff]
    %v1923 = vsel %vm216, %v1910, 0
    %v1926 = vsel %vm216, %v1911, 0
    %v1929 = vsel %vm216, %v1912, 0
    %v1932 = vsel %vm216, %v1913, 0
    %v1935 = vsel %vm216, %v1914, 0
    %v1938 = vsel %vm216, %v1915, 0
    %v1941 = vsel %vm216, %v1916, 0
    %v1944 = vsel %vm216, %v1917, 0
    %1946 = vmatprep.subr.mxu0 0.0
    %1947 = vmatpush1.msra.mxu0 %v1918
    %1948 = vmatprep.subr.mxu0 0.0
    %1949 = vmatpush1.msra.mxu0 %v1919
    %1950 = vmatprep.subr.mxu0 0.0
    %1951 = vmatpush1.msra.mxu0 %v1920
    %1952 = vmatprep.subr.mxu0 0.0
    %1953 = vmatpush1.msra.mxu0 %v1921
    %1954 = vmatprep.subr.mxu0 0.0
    %1955 = vmatpush1.msra.mxu0 0.0
    %1956 = vmatprep.subr.mxu0 0.0
    %1957 = vmatpush1.msra.mxu0 0.0
    %1958 = vmatprep.subr.mxu0 0.0
    %1959 = vmatpush1.msra.mxu0 0.0
    %1960 = vmatprep.subr.mxu0 0.0
    %1961 = vmatpush1.msra.mxu0 0.0
    %1962 = vmatprep.subr.mxu0 0.0
    %1963 = vmatpush1.msra.mxu0 0.0
    %1964 = vmatprep.subr.mxu0 0.0
    %1965 = vmatpush1.msra.mxu0 0.0
    %1966 = vmatprep.subr.mxu0 0.0
    %1967 = vmatpush1.msra.mxu0 0.0
    %1968 = vmatprep.subr.mxu0 0.0
    %1969 = vmatpush1.msra.mxu0 0.0
    %1970 = vmatprep.subr.mxu0 0.0
    %1971 = vmatpush1.msra.mxu0 0.0
    %1972 = vmatprep.subr.mxu0 0.0
    %1973 = vmatpush1.msra.mxu0 0.0
    %1974 = vmatprep.subr.mxu0 0.0
    %1975 = vmatpush1.msra.mxu0 0.0
    %1976 = vmatprep.subr.mxu0 0.0
    %1977 = vmatpush1.msra.mxu0 0.0
    %1978 = vmatprep.subr.mxu0 0.0
    %1979 = vmatpush1.msra.mxu0 0.0
    %1980 = vmatprep.subr.mxu0 0.0
    %1981 = vmatpush1.msra.mxu0 0.0
    %1982 = vmatprep.subr.mxu0 0.0
    %1983 = vmatpush1.msra.mxu0 0.0
    %1984 = vmatprep.subr.mxu0 0.0
    %1985 = vmatpush1.msra.mxu0 0.0
    %1986 = vmatprep.subr.mxu0 0.0
    %1987 = vmatpush1.msra.mxu0 0.0
    %1988 = vmatprep.subr.mxu0 0.0
    %1989 = vmatpush1.msra.mxu0 0.0
    %1990 = vmatprep.subr.mxu0 0.0
    %1991 = vmatpush1.msra.mxu0 0.0
    %1992 = vmatprep.subr.mxu0 0.0
    %1993 = vmatpush1.msra.mxu0 0.0
    %1994 = vmatprep.subr.mxu0 0.0
    %1995 = vmatpush1.msra.mxu0 0.0
    %1996 = vmatprep.subr.mxu0 0.0
    %1997 = vmatpush1.msra.mxu0 0.0
    %1998 = vmatprep.subr.mxu0 0.0
    %1999 = vmatpush1.msra.mxu0 0.0
    %2000 = vmatprep.subr.mxu0 0.0
    %2001 = vmatpush1.msra.mxu0 0.0
    %2002 = vmatprep.subr.mxu0 0.0
    %2003 = vmatpush1.msra.mxu0 0.0
    %2004 = vmatprep.subr.mxu0 0.0
    %2005 = vmatpush1.msra.mxu0 0.0
    %2006 = vmatprep.subr.mxu0 0.0
    %2007 = vmatpush1.msra.mxu0 0.0
    %2008 = vmatprep.subr.mxu0 0.0
    %2009 = vmatpush1.msra.mxu0 0.0
    %2010 = vmatprep.mubr.f32.mxu0 0.0
    %2011 = vmatmul.mubr.f32.gmra.mrb[0].mxu0 %v1923
    %v2012 = vpop.f32.mrb[0].mxu0
    %v2013 = vadd.f32 0.0, %v2012
    %v2014 = vpop.f32.mrb[0].mxu0
    %2015 = vmatprep.mubr.f32.mxu0 0.0
    %2016 = vmatmul.mubr.f32.gmra.mrb[0].mxu0 %v1926
    %v2017 = vpop.f32.mrb[0].mxu0
    %v2018 = vadd.f32 0.0, %v2017
    %v2019 = vpop.f32.mrb[0].mxu0
    %2020 = vmatprep.mubr.f32.mxu0 0.0
    %2021 = vmatmul.mubr.f32.gmra.mrb[0].mxu0 %v1929
    %v2022 = vpop.f32.mrb[0].mxu0
    %v2023 = vadd.f32 0.0, %v2022
    %v2024 = vpop.f32.mrb[0].mxu0
    %2025 = vmatprep.mubr.f32.mxu0 0.0
    %2026 = vmatmul.mubr.f32.gmra.mrb[0].mxu0 %v1932
    %v2027 = vpop.f32.mrb[0].mxu0
    %v2028 = vadd.f32 0.0, %v2027
    %v2029 = vpop.f32.mrb[0].mxu0
    %2030 = vmatprep.mubr.f32.mxu0 0.0
    %2031 = vmatmul.mubr.f32.gmra.mrb[0].mxu0 %v1935
    %v2032 = vpop.f32.mrb[0].mxu0
    %v2033 = vadd.f32 0.0, %v2032
    %v2034 = vpop.f32.mrb[0].mxu0
    %2035 = vmatprep.mubr.f32.mxu0 0.0
    %2036 = vmatmul.mubr.f32.gmra.mrb[0].mxu0 %v1938
    %v2037 = vpop.f32.mrb[0].mxu0
    %v2038 = vadd.f32 0.0, %v2037
    %v2039 = vpop.f32.mrb[0].mxu0
    %2040 = vmatprep.mubr.f32.mxu0 0.0
    %2041 = vmatmul.mubr.f32.gmra.mrb[0].mxu0 %v1941
    %v2042 = vpop.f32.mrb[0].mxu0
    %v2043 = vadd.f32 0.0, %v2042
    %v2044 = vpop.f32.mrb[0].mxu0
    %2045 = vmatprep.mubr.f32.mxu0 0.0
    %2046 = vmatmul.mubr.f32.gmra.mrb[0].mxu0 %v1944
    %v2047 = vpop.f32.mrb[0].mxu0
    %v2048 = vadd.f32 0.0, %v2047
    %v2049 = vpop.f32.mrb[0].mxu0
    %2050 = vdwg.mxu0
    %v2052 = vsel %vm216, %v1898, 0
    %v2055 = vsel %vm216, %v1899, 0
    %v2058 = vsel %vm216, %v1900, 0
    %v2061 = vsel %vm216, %v1901, 0
    %v2064 = vsel %vm216, %v1902, 0
    %v2067 = vsel %vm216, %v1903, 0
    %v2070 = vsel %vm216, %v1904, 0
    %v2073 = vsel %vm216, %v1905, 0
    %2075 = vmatprep.subr.mxu0 0.0
    %2076 = vmatpush1.msra.mxu0 %v1906
    %2077 = vmatprep.subr.mxu0 0.0
    %2078 = vmatpush1.msra.mxu0 %v1907
    %2079 = vmatprep.subr.mxu0 0.0
    %2080 = vmatpush1.msra.mxu0 %v1908
    %2081 = vmatprep.subr.mxu0 0.0
    %2082 = vmatpush1.msra.mxu0 %v1909
    %2083 = vmatprep.subr.mxu0 0.0
    %2084 = vmatpush1.msra.mxu0 0.0
    %2085 = vmatprep.subr.mxu0 0.0
    %2086 = vmatpush1.msra.mxu0 0.0
    %2087 = vmatprep.subr.mxu0 0.0
    %2088 = vmatpush1.msra.mxu0 0.0
    %2089 = vmatprep.subr.mxu0 0.0
    %2090 = vmatpush1.msra.mxu0 0.0
    %2091 = vmatprep.subr.mxu0 0.0
    %2092 = vmatpush1.msra.mxu0 0.0
    %2093 = vmatprep.subr.mxu0 0.0
    %2094 = vmatpush1.msra.mxu0 0.0
    %2095 = vmatprep.subr.mxu0 0.0
    %2096 = vmatpush1.msra.mxu0 0.0
    %2097 = vmatprep.subr.mxu0 0.0
    %2098 = vmatpush1.msra.mxu0 0.0
    %2099 = vmatprep.subr.mxu0 0.0
    %2100 = vmatpush1.msra.mxu0 0.0
    %2101 = vmatprep.subr.mxu0 0.0
    %2102 = vmatpush1.msra.mxu0 0.0
    %2103 = vmatprep.subr.mxu0 0.0
    %2104 = vmatpush1.msra.mxu0 0.0
    %2105 = vmatprep.subr.mxu0 0.0
    %2106 = vmatpush1.msra.mxu0 0.0
    %2107 = vmatprep.subr.mxu0 0.0
    %2108 = vmatpush1.msra.mxu0 0.0
    %2109 = vmatprep.subr.mxu0 0.0
    %2110 = vmatpush1.msra.mxu0 0.0
    %2111 = vmatprep.subr.mxu0 0.0
    %2112 = vmatpush1.msra.mxu0 0.0
    %2113 = vmatprep.subr.mxu0 0.0
    %2114 = vmatpush1.msra.mxu0 0.0
    %2115 = vmatprep.subr.mxu0 0.0
    %2116 = vmatpush1.msra.mxu0 0.0
    %2117 = vmatprep.subr.mxu0 0.0
    %2118 = vmatpush1.msra.mxu0 0.0
    %2119 = vmatprep.subr.mxu0 0.0
    %2120 = vmatpush1.msra.mxu0 0.0
    %2121 = vmatprep.subr.mxu0 0.0
    %2122 = vmatpush1.msra.mxu0 0.0
    %2123 = vmatprep.subr.mxu0 0.0
    %2124 = vmatpush1.msra.mxu0 0.0
    %2125 = vmatprep.subr.mxu0 0.0
    %2126 = vmatpush1.msra.mxu0 0.0
    %2127 = vmatprep.subr.mxu0 0.0
    %2128 = vmatpush1.msra.mxu0 0.0
    %2129 = vmatprep.subr.mxu0 0.0
    %2130 = vmatpush1.msra.mxu0 0.0
    %2131 = vmatprep.subr.mxu0 0.0
    %2132 = vmatpush1.msra.mxu0 0.0
    %2133 = vmatprep.subr.mxu0 0.0
    %2134 = vmatpush1.msra.mxu0 0.0
    %2135 = vmatprep.subr.mxu0 0.0
    %2136 = vmatpush1.msra.mxu0 0.0
    %2137 = vmatprep.subr.mxu0 0.0
    %2138 = vmatpush1.msra.mxu0 0.0
    %2139 = vmatprep.mubr.f32.mxu0 0.0
    %2140 = vmatmul.mubr.f32.gmra.mrb[0].mxu0 %v2052
    %v2141 = vpop.f32.mrb[0].mxu0
    %v2142 = vadd.f32 %v2013, %v2141
    %v2143 = vpop.f32.mrb[0].mxu0
    %2144 = vmatprep.mubr.f32.mxu0 0.0
    %2145 = vmatmul.mubr.f32.gmra.mrb[0].mxu0 %v2055
    %v2146 = vpop.f32.mrb[0].mxu0
    %v2147 = vadd.f32 %v2018, %v2146
    %v2148 = vpop.f32.mrb[0].mxu0
    %2149 = vmatprep.mubr.f32.mxu0 0.0
    %2150 = vmatmul.mubr.f32.gmra.mrb[0].mxu0 %v2058
    %v2151 = vpop.f32.mrb[0].mxu0
    %v2152 = vadd.f32 %v2023, %v2151
    %v2153 = vpop.f32.mrb[0].mxu0
    %2154 = vmatprep.mubr.f32.mxu0 0.0
    %2155 = vmatmul.mubr.f32.gmra.mrb[0].mxu0 %v2061
    %v2156 = vpop.f32.mrb[0].mxu0
    %v2157 = vadd.f32 %v2028, %v2156
    %v2158 = vpop.f32.mrb[0].mxu0
    %2159 = vmatprep.mubr.f32.mxu0 0.0
    %2160 = vmatmul.mubr.f32.gmra.mrb[0].mxu0 %v2064
    %v2161 = vpop.f32.mrb[0].mxu0
    %v2162 = vadd.f32 %v2033, %v2161
    %v2163 = vpop.f32.mrb[0].mxu0
    %2164 = vmatprep.mubr.f32.mxu0 0.0
    %2165 = vmatmul.mubr.f32.gmra.mrb[0].mxu0 %v2067
    %v2166 = vpop.f32.mrb[0].mxu0
    %v2167 = vadd.f32 %v2038, %v2166
    %v2168 = vpop.f32.mrb[0].mxu0
    %2169 = vmatprep.mubr.f32.mxu0 0.0
    %2170 = vmatmul.mubr.f32.gmra.mrb[0].mxu0 %v2070
    %v2171 = vpop.f32.mrb[0].mxu0
    %v2172 = vadd.f32 %v2043, %v2171
    %v2173 = vpop.f32.mrb[0].mxu0
    %2174 = vmatprep.mubr.f32.mxu0 0.0
    %2175 = vmatmul.mubr.f32.gmra.mrb[0].mxu0 %v2073
    %v2176 = vpop.f32.mrb[0].mxu0
    %v2177 = vadd.f32 %v2048, %v2176
    %v2178 = vpop.f32.mrb[0].mxu0
    %2179 = vdwg.mxu0
    %v2180 = vld [vmem:[%s5] sm:$0x1]
    %v2182 = vlaneseq
    %v2183 = vshrl.u32 %v2182, 7
    %v2184 = vsub.s32 0, %v2183
    %v2185 = vrot.slane %v2180, %v2184
    %v2187 = vadd.f32 %v2142, %v2185
    %v2188 = vadd.f32 %v2147, %v2185
    %v2189 = vadd.f32 %v2152, %v2185
    %v2190 = vadd.f32 %v2157, %v2185
    %v2191 = vadd.f32 %v2162, %v2185
    %v2192 = vadd.f32 %v2167, %v2185
    %v2193 = vadd.f32 %v2172, %v2185
    %v2194 = vadd.f32 %v2177, %v2185
    %vm2195 = vcmask 39936
    %2196 = vst.msk [vmem:[#allocation5] sm:$0xff] %vm2195, %v2187
    %2197 = vst.msk [vmem:[#allocation5 + $0x8] sm:$0xff] %vm2195, %v2188
    %2198 = vst.msk [vmem:[#allocation5 + $0x10] sm:$0xff] %vm2195, %v2189
    %2199 = vst.msk [vmem:[#allocation5 + $0x18] sm:$0xff] %vm2195, %v2190
    %2200 = vst.msk [vmem:[#allocation5 + $0x20] sm:$0xff] %vm2195, %v2191
    %2201 = vst.msk [vmem:[#allocation5 + $0x28] sm:$0xff] %vm2195, %v2192
    %2202 = vst.msk [vmem:[#allocation5 + $0x30] sm:$0xff] %vm2195, %v2193
    %2203 = vst.msk [vmem:[#allocation5 + $0x38] sm:$0xff] %vm2195, %v2194
    %v2204 = vlaneseq
    %v2205 = vand.u32 %v2204, 127
    %v2206 = vsel %vm2195, %v2187, -inf
    %2207 = vmax.xlane.f32.xlu0 %v2206
    %v2208 = vpop.xlane.xlu0 %2207
    %v2209 = vsel %vm2195, %v2188, -inf
    %2210 = vmax.xlane.f32.xlu0 %v2209
    %v2211 = vpop.xlane.xlu0 %2210
    %v2212 = vsel %vm2195, %v2189, -inf
    %2213 = vmax.xlane.f32.xlu0 %v2212
    %v2214 = vpop.xlane.xlu0 %2213
    %v2215 = vsel %vm2195, %v2190, -inf
    %2216 = vmax.xlane.f32.xlu0 %v2215
    %v2217 = vpop.xlane.xlu0 %2216
    %v2218 = vsel %vm2195, %v2191, -inf
    %2219 = vmax.xlane.f32.xlu0 %v2218
    %v2220 = vpop.xlane.xlu0 %2219
    %v2221 = vsel %vm2195, %v2192, -inf
    %2222 = vmax.xlane.f32.xlu0 %v2221
    %v2223 = vpop.xlane.xlu0 %2222
    %v2224 = vsel %vm2195, %v2193, -inf
    %2225 = vmax.xlane.f32.xlu0 %v2224
    %v2226 = vpop.xlane.xlu0 %2225
    %v2227 = vsel %vm2195, %v2194, -inf
    %2228 = vmax.xlane.f32.xlu0 %v2227
    %v2229 = vpop.xlane.xlu0 %2228
    %vm2230 = vcmp.eq.f32.partialorder %v2187, %v2208
    %vm2231 = vcmp.eq.f32.partialorder %v2188, %v2211
    %vm2232 = vcmp.eq.f32.partialorder %v2189, %v2214
    %vm2233 = vcmp.eq.f32.partialorder %v2190, %v2217
    %vm2234 = vcmp.eq.f32.partialorder %v2191, %v2220
    %vm2235 = vcmp.eq.f32.partialorder %v2192, %v2223
    %vm2236 = vcmp.eq.f32.partialorder %v2193, %v2226
    %vm2237 = vcmp.eq.f32.partialorder %v2194, %v2229
    %v2238 = vsel %vm2230, %v2205, 5
    %v2239 = vsel %vm2231, %v2205, 5
    %v2240 = vsel %vm2232, %v2205, 5
    %v2241 = vsel %vm2233, %v2205, 5
    %v2242 = vsel %vm2234, %v2205, 5
    %v2243 = vsel %vm2235, %v2205, 5
    %v2244 = vsel %vm2236, %v2205, 5
    %v2245 = vsel %vm2237, %v2205, 5
    %v2246 = vsel %vm2195, %v2238, 2147483647
    %v2247 = vand.u32 %v2246, 65535
    %v2248 = vshra.s32 %v2246, 16
    %v2249 = vcvt.s32.f32 %v2247
    %v2250 = vcvt.s32.f32 %v2248
    %2251 = vmin.xlane.f32.xlu0 %v2250
    %v2252 = vpop.xlane.xlu0 %2251
    %vm2253 = vcmp.eq.f32.partialorder %v2250, %v2252
    %v2254 = vsel %vm2253, %v2249, inf
    %2255 = vmin.xlane.f32.xlu0 %v2254
    %v2256 = vpop.xlane.xlu0 %2255
    %v2257 = vcvt.f32.s32 %v2256
    %v2258 = vcvt.f32.s32 %v2252
    %v2259 = vshll.u32 %v2258, 16
    %v2260 = vadd.s32 %v2259, %v2257
    %v2261 = vsel %vm2195, %v2239, 2147483647
    %v2262 = vand.u32 %v2261, 65535
    %v2263 = vshra.s32 %v2261, 16
    %v2264 = vcvt.s32.f32 %v2262
    %v2265 = vcvt.s32.f32 %v2263
    %2266 = vmin.xlane.f32.xlu0 %v2265
    %v2267 = vpop.xlane.xlu0 %2266
    %vm2268 = vcmp.eq.f32.partialorder %v2265, %v2267
    %v2269 = vsel %vm2268, %v2264, inf
    %2270 = vmin.xlane.f32.xlu0 %v2269
    %v2271 = vpop.xlane.xlu0 %2270
    %v2272 = vcvt.f32.s32 %v2271
    %v2273 = vcvt.f32.s32 %v2267
    %v2274 = vshll.u32 %v2273, 16
    %v2275 = vadd.s32 %v2274, %v2272
    %v2276 = vsel %vm2195, %v2240, 2147483647
    %v2277 = vand.u32 %v2276, 65535
    %v2278 = vshra.s32 %v2276, 16
    %v2279 = vcvt.s32.f32 %v2277
    %v2280 = vcvt.s32.f32 %v2278
    %2281 = vmin.xlane.f32.xlu0 %v2280
    %v2282 = vpop.xlane.xlu0 %2281
    %vm2283 = vcmp.eq.f32.partialorder %v2280, %v2282
    %v2284 = vsel %vm2283, %v2279, inf
    %2285 = vmin.xlane.f32.xlu0 %v2284
    %v2286 = vpop.xlane.xlu0 %2285
    %v2287 = vcvt.f32.s32 %v2286
    %v2288 = vcvt.f32.s32 %v2282
    %v2289 = vshll.u32 %v2288, 16
    %v2290 = vadd.s32 %v2289, %v2287
    %v2291 = vsel %vm2195, %v2241, 2147483647
    %v2292 = vand.u32 %v2291, 65535
    %v2293 = vshra.s32 %v2291, 16
    %v2294 = vcvt.s32.f32 %v2292
    %v2295 = vcvt.s32.f32 %v2293
    %2296 = vmin.xlane.f32.xlu0 %v2295
    %v2297 = vpop.xlane.xlu0 %2296
    %vm2298 = vcmp.eq.f32.partialorder %v2295, %v2297
    %v2299 = vsel %vm2298, %v2294, inf
    %2300 = vmin.xlane.f32.xlu0 %v2299
    %v2301 = vpop.xlane.xlu0 %2300
    %v2302 = vcvt.f32.s32 %v2301
    %v2303 = vcvt.f32.s32 %v2297
    %v2304 = vshll.u32 %v2303, 16
    %v2305 = vadd.s32 %v2304, %v2302
    %v2306 = vsel %vm2195, %v2242, 2147483647
    %v2307 = vand.u32 %v2306, 65535
    %v2308 = vshra.s32 %v2306, 16
    %v2309 = vcvt.s32.f32 %v2307
    %v2310 = vcvt.s32.f32 %v2308
    %2311 = vmin.xlane.f32.xlu0 %v2310
    %v2312 = vpop.xlane.xlu0 %2311
    %vm2313 = vcmp.eq.f32.partialorder %v2310, %v2312
    %v2314 = vsel %vm2313, %v2309, inf
    %2315 = vmin.xlane.f32.xlu0 %v2314
    %v2316 = vpop.xlane.xlu0 %2315
    %v2317 = vcvt.f32.s32 %v2316
    %v2318 = vcvt.f32.s32 %v2312
    %v2319 = vshll.u32 %v2318, 16
    %v2320 = vadd.s32 %v2319, %v2317
    %v2321 = vsel %vm2195, %v2243, 2147483647
    %v2322 = vand.u32 %v2321, 65535
    %v2323 = vshra.s32 %v2321, 16
    %v2324 = vcvt.s32.f32 %v2322
    %v2325 = vcvt.s32.f32 %v2323
    %2326 = vmin.xlane.f32.xlu0 %v2325
    %v2327 = vpop.xlane.xlu0 %2326
    %vm2328 = vcmp.eq.f32.partialorder %v2325, %v2327
    %v2329 = vsel %vm2328, %v2324, inf
    %2330 = vmin.xlane.f32.xlu0 %v2329
    %v2331 = vpop.xlane.xlu0 %2330
    %v2332 = vcvt.f32.s32 %v2331
    %v2333 = vcvt.f32.s32 %v2327
    %v2334 = vshll.u32 %v2333, 16
    %v2335 = vadd.s32 %v2334, %v2332
    %v2336 = vsel %vm2195, %v2244, 2147483647
    %v2337 = vand.u32 %v2336, 65535
    %v2338 = vshra.s32 %v2336, 16
    %v2339 = vcvt.s32.f32 %v2337
    %v2340 = vcvt.s32.f32 %v2338
    %2341 = vmin.xlane.f32.xlu0 %v2340
    %v2342 = vpop.xlane.xlu0 %2341
    %vm2343 = vcmp.eq.f32.partialorder %v2340, %v2342
    %v2344 = vsel %vm2343, %v2339, inf
    %2345 = vmin.xlane.f32.xlu0 %v2344
    %v2346 = vpop.xlane.xlu0 %2345
    %v2347 = vcvt.f32.s32 %v2346
    %v2348 = vcvt.f32.s32 %v2342
    %v2349 = vshll.u32 %v2348, 16
    %v2350 = vadd.s32 %v2349, %v2347
    %v2351 = vsel %vm2195, %v2245, 2147483647
    %v2352 = vand.u32 %v2351, 65535
    %v2353 = vshra.s32 %v2351, 16
    %v2354 = vcvt.s32.f32 %v2352
    %v2355 = vcvt.s32.f32 %v2353
    %2356 = vmin.xlane.f32.xlu0 %v2355
    %v2357 = vpop.xlane.xlu0 %2356
    %vm2358 = vcmp.eq.f32.partialorder %v2355, %v2357
    %v2359 = vsel %vm2358, %v2354, inf
    %2360 = vmin.xlane.f32.xlu0 %v2359
    %v2361 = vpop.xlane.xlu0 %2360
    %v2362 = vcvt.f32.s32 %v2361
    %v2363 = vcvt.f32.s32 %v2357
    %v2364 = vshll.u32 %v2363, 16
    %v2365 = vadd.s32 %v2364, %v2362
    %vm2366 = vcmask 7168
    %2367 = vst.msk [vmem:[%s7] sm:$0xff] %vm2366, %v2260
    %2368 = vst.msk [vmem:[%s7 + $0x8] sm:$0xff] %vm2366, %v2275
    %2369 = vst.msk [vmem:[%s7 + $0x10] sm:$0xff] %vm2366, %v2290
    %2370 = vst.msk [vmem:[%s7 + $0x18] sm:$0xff] %vm2366, %v2305
    %2371 = vst.msk [vmem:[%s7 + $0x20] sm:$0xff] %vm2366, %v2320
    %2372 = vst.msk [vmem:[%s7 + $0x28] sm:$0xff] %vm2366, %v2335
    %2373 = vst.msk [vmem:[%s7 + $0x30] sm:$0xff] %vm2366, %v2350
    %2374 = vst.msk [vmem:[%s7 + $0x38] sm:$0xff] %vm2366, %v2365
    // Predicated region
    $region26: #{predict.1} parent=1 // pred_check
      _
    $region27: #{predict.1} parent=1 // pred_check_branch
      %2376 = sbr.rel (0) target = $region29
    $region28: #{predict.1} parent=1 // pred_region
      %s2378 = ssub.s32 1024, 1024
      %2379 = vsyncadd [#allocation6], %s2378
      %s2380 = sshll.u32 [#allocation5], 4
      %s2381 = int_to_ptr.vmem [resolvable:$true] %s2380
      %2386 = dma.vmem_to_hbm [thread:$0]  %s2381, 1024, %s6, [#allocation6], 128, 128, 8
    $region29: #{predict.1} parent=1 // pred_fallthru
      _
    // Predicated region
    $region30: #{predict.1} parent=1 // pred_check
      _
    $region31: #{predict.1} parent=1 // pred_check_branch
      %2388 = sbr.rel (0) target = $region33
    $region32: #{predict.1} parent=1 // pred_region
      _
    $region33: #{predict.1} parent=1 // pred_fallthru
      _
    // Predicated region
    $region34: #{predict.1} parent=1 // pred_check
      _
    $region35: #{predict.1} parent=1 // pred_check_branch
      %2390 = sbr.rel (0) target = $region37
    $region36: #{predict.1} parent=1 // pred_region
      %2391 = dma.done [#allocation6], 1024
    $region37: #{predict.1} parent=1 // pred_fallthru
      _
    // Predicated region
    $region38: #{predict.1} parent=1 // pred_check
      _
    $region39: #{predict.1} parent=1 // pred_check_branch
      %2393 = sbr.rel (0) target = $region41
    $region40: #{predict.1} parent=1 // pred_region
      _
    $region41: #{predict.1} parent=1 // pred_fallthru
      _
    %2394 = vsyncpa [#allocation6], 1

</llo_original>
